<compile_context>
chip_gen: v5e
topology: v5e:2x2
jax: 0.10.0
libtpu: 0.0.40
codegen_flags: <defaults>
</compile_context>

<pallas_src>
import math

import jax
import jax.numpy as jnp
from jax.experimental import pallas as pl
from jax.experimental.pallas import tpu as pltpu

# ----------------------------- hyperparameters ------------------------------
B = 2              # batch
S_TGT = 8          # decoder (target) sequence length
S_SRC = 8          # encoder (source) sequence length
D = 32             # feat_dim
H = 4              # num_head
DH = D // H        # per-head dim
HID = 64           # FFN hidden dim
N_DEC = 2          # num_dec_block
TGT_VOCAB = 18
V_PAD = 128        # final projection padded to a full lane width
LN_EPS = 1e-5
NEG_INF = -1e9

M_TGT = B * S_TGT  # flattened decoder rows
M_SRC = B * S_SRC  # flattened encoder rows


# ------------------------------ fused kernel --------------------------------
def _decoder_kernel(
    dec_ref, enc_ref, smask_ref, cmask_ref, hmask_ref,
    w_sqkv_ref, b_sqkv_ref, w_so_ref, b_so_ref,
    w_cq_ref, b_cq_ref, w_ckv_ref, b_ckv_ref, w_co_ref, b_co_ref,
    w_f1_ref, b_f1_ref, w_f2_ref, b_f2_ref,
    ln_g_ref, ln_b_ref, w_out_ref, b_out_ref,
    out_ref,
):
    x = dec_ref[...]          # [M_TGT, D]
    enc = enc_ref[...]        # [M_SRC, D]
    smask = smask_ref[...]    # [H*M_TGT, M_TGT]  additive bias, tiled per head
    cmask = cmask_ref[...]    # [H*M_TGT, M_SRC]
    hmask = hmask_ref[...]    # [H*M_TGT, D] head-lane selector (0/1), hoisted

    def layer_norm(h, g, b):
        mu = jnp.mean(h, axis=-1, keepdims=True)
        ms = jnp.mean(h * h, axis=-1, keepdims=True)        # var = E[x^2]-mu^2
        return (h - mu) * jax.lax.rsqrt(ms - mu * mu + LN_EPS) * g + b

    def mha(q, k, v, w_o, b_o, mask_bias):
        # q: [Mq, D], k/v: [Mk, D].  1/sqrt(dh) already folded into W_q.
        kT = k.T                                             # ONE transpose/MHA
        # All-head scores in ONE matmul: replicate q per head along sublanes,
        # zero out other heads' lanes, contract against full K^T.
        q_rep = jnp.concatenate([q] * H, axis=0) * hmask     # [H*Mq, D]
        s = jnp.dot(q_rep, kT, preferred_element_type=jnp.float32) + mask_bias
        # Batched softmax over all (head, query) rows: one max/exp/sum/recip.
        s = s - jnp.max(s, axis=-1, keepdims=True)
        e = jnp.exp(s)
        p = e * pl.reciprocal(jnp.sum(e, axis=-1, keepdims=True), approx=True)
        mq = q.shape[0]
        acc = None
        for hh in range(H):
            lanes = slice(hh * DH, (hh + 1) * DH)
            p_h = p[hh * mq:(hh + 1) * mq, :]                # 8-aligned sublane slice
            ctx = jnp.dot(p_h, v[:, lanes], preferred_element_type=jnp.float32)
            term = jnp.dot(ctx, w_o[lanes, :], preferred_element_type=jnp.float32)
            acc = term if acc is None else acc + term        # MXU-accumulate friendly
        return acc + b_o

    # Hoisted cross-attention K/V projection: all layers, one 128-lane matmul.
    enc_kv = (jnp.dot(enc, w_ckv_ref[...], preferred_element_type=jnp.float32)
              + b_ckv_ref[...])                              # [M_SRC, N_DEC*2D]

    for l in range(N_DEC):    # unrolled at trace time; weights stay VMEM-resident
        ln_g = ln_g_ref[l]    # [3, D]
        ln_b = ln_b_ref[l]    # [3, D]

        # --- masked self-attention + post-LN ---
        qkv = (jnp.dot(x, w_sqkv_ref[l], preferred_element_type=jnp.float32)
               + b_sqkv_ref[l])                              # [M_TGT, 3D]
        a = mha(qkv[:, 0:D], qkv[:, D:2 * D], qkv[:, 2 * D:3 * D],
                w_so_ref[l], b_so_ref[l], smask)
        x = layer_norm(x + a, ln_g[0:1, :], ln_b[0:1, :])

        # --- cross-attention + post-LN (K/V precomputed above) ---
        q = (jnp.dot(x, w_cq_ref[l], preferred_element_type=jnp.float32)
             + b_cq_ref[l])
        base = l * 2 * D
        a = mha(q, enc_kv[:, base:base + D], enc_kv[:, base + D:base + 2 * D],
                w_co_ref[l], b_co_ref[l], cmask)
        x = layer_norm(x + a, ln_g[1:2, :], ln_b[1:2, :])

        # --- feed-forward + post-LN (dropout is eval-mode no-op) ---
        hid = (jnp.dot(x, w_f1_ref[l], preferred_element_type=jnp.float32)
               + b_f1_ref[l])
        hid = jnp.maximum(hid, 0.0)
        f = (jnp.dot(hid, w_f2_ref[l], preferred_element_type=jnp.float32)
             + b_f2_ref[l])
        x = layer_norm(x + f, ln_g[2:3, :], ln_b[2:3, :])

    # lane-dense (128-wide) final projection; sliced to TGT_VOCAB outside.
    out_ref[...] = (
        jnp.dot(x, w_out_ref[...], preferred_element_type=jnp.float32) + b_out_ref[...]
    ).astype(out_ref.dtype)


# ------------------------------- host wrapper --------------------------------
def _full_spec(shape):
    zeros = (0,) * len(shape)
    return pl.BlockSpec(shape, lambda: zeros)


def _flatten_mask(mask_b1qk):
    """[B,1,Sq,Sk] bool -> [H*B*Sq, B*Sk] additive bias, block-diag over batch,
    tiled over heads (one row-block per head)."""
    Bb, _, Sq, Sk = mask_b1qk.shape
    same_batch = jnp.eye(Bb, dtype=bool)[:, None, :, None]        # [B,1,B,1]
    keep = same_batch & mask_b1qk[:, 0][:, :, None, :]            # [B,Sq,B,Sk]
    keep = keep.reshape(Bb * Sq, Bb * Sk)
    bias = jnp.where(keep, 0.0, NEG_INF).astype(jnp.float32)
    return jnp.tile(bias, (H, 1))


def _head_mask():
    """[H*M_TGT, D] selector: row-block h keeps only head-h lanes."""
    row_head = jnp.arange(H * M_TGT) // M_TGT
    col_head = jnp.arange(D) // DH
    return (row_head[:, None] == col_head[None, :]).astype(jnp.float32)


@jax.jit
def decoder_forward(params, dec_input, enc_output, mhma_mask, mhca_mask):
    Bb, St, Dd = dec_input.shape
    Ss = enc_output.shape[1]
    dec2d = dec_input.reshape(Bb * St, Dd)
    enc2d = enc_output.reshape(Bb * Ss, Dd)
    smask = _flatten_mask(mhma_mask)      # [H*B*St, B*St]
    cmask = _flatten_mask(mhca_mask)      # [H*B*St, B*Ss]
    hmask = _head_mask()                  # [H*B*St, D] (constant-folded by XLA)

    args = (
        dec2d, enc2d, smask, cmask, hmask,
        params["w_sqkv"], params["b_sqkv"], params["w_so"], params["b_so"],
        params["w_cq"], params["b_cq"], params["w_ckv"], params["b_ckv"],
        params["w_co"], params["b_co"],
        params["w_f1"], params["b_f1"], params["w_f2"], params["b_f2"],
        params["ln_g"], params["ln_b"], params["w_out"], params["b_out"],
    )
    out = pl.pallas_call(
        _decoder_kernel,
        out_shape=jax.ShapeDtypeStruct((Bb * St, V_PAD), jnp.float32),
        in_specs=[_full_spec(a.shape) for a in args],
        out_specs=_full_spec((Bb * St, V_PAD)),
    )(*args)
    return out[:, :TGT_VOCAB].reshape(Bb, St, TGT_VOCAB)


# ------------------------------ parameter init -------------------------------
def init_params(key):
    keys = iter(jax.random.split(key, 64))

    def xavier(shape):
        fan_in, fan_out = shape
        lim = math.sqrt(6.0 / (fan_in + fan_out))
        return jax.random.uniform(next(keys), shape, jnp.float32, -lim, lim)

    scale = 1.0 / math.sqrt(DH)     # folded into W_q (Q biases are zero)
    w_sqkv, w_so, w_cq, w_ckv, w_co, w_f1, w_f2 = ([] for _ in range(7))
    for _ in range(N_DEC):
        wq, wk, wv, wo = (xavier((D, D)) for _ in range(4))
        w_sqkv.append(jnp.concatenate([wq * scale, wk, wv], axis=1))
        w_so.append(wo)
        wq2, wk2, wv2, wo2 = (xavier((D, D)) for _ in range(4))
        w_cq.append(wq2 * scale)
        w_ckv.append(jnp.concatenate([wk2, wv2], axis=1))   # [D, 2D] per layer
        w_co.append(wo2)
        w_f1.append(xavier((D, HID)))
        w_f2.append(xavier((HID, D)))

    w_out = xavier((D, TGT_VOCAB))                          # xavier_uniform, zero bias
    w_out_pad = jnp.zeros((D, V_PAD), jnp.float32).at[:, :TGT_VOCAB].set(w_out)

    return {
        "w_sqkv": jnp.stack(w_sqkv), "b_sqkv": jnp.zeros((N_DEC, 1, 3 * D), jnp.float32),
        "w_so": jnp.stack(w_so),     "b_so": jnp.zeros((N_DEC, 1, D), jnp.float32),
        "w_cq": jnp.stack(w_cq),     "b_cq": jnp.zeros((N_DEC, 1, D), jnp.float32),
        # cross-attn K/V weights concatenated over layers -> one [D, N_DEC*2D] matmul
        "w_ckv": jnp.concatenate(w_ckv, axis=1),
        "b_ckv": jnp.zeros((1, N_DEC * 2 * D), jnp.float32),
        "w_co": jnp.stack(w_co),     "b_co": jnp.zeros((N_DEC, 1, D), jnp.float32),
        "w_f1": jnp.stack(w_f1),     "b_f1": jnp.zeros((N_DEC, 1, HID), jnp.float32),
        "w_f2": jnp.stack(w_f2),     "b_f2": jnp.zeros((N_DEC, 1, D), jnp.float32),
        "ln_g": jnp.ones((N_DEC, 3, D), jnp.float32),
        "ln_b": jnp.zeros((N_DEC, 3, D), jnp.float32),
        "w_out": w_out_pad, "b_out": jnp.zeros((1, V_PAD), jnp.float32),
    }


# ---------------------------------- main -------------------------------------
if __name__ == "__main__":
    key = jax.random.PRNGKey(0)
    kp, kd, ke = jax.random.split(key, 3)
    params = init_params(kp)

    # Decoder inputs: already-embedded activations + attention masks.
    dec_input = jax.random.normal(kd, (B, S_TGT, D), jnp.float32)
    enc_output = jax.random.normal(ke, (B, S_SRC, D), jnp.float32)

    # Synthetic padding: batch 0 has 2 padded source positions,
    # batch 1 has 1 padded target position.  Masks mask KEY positions.
    src_valid = jnp.ones((B, S_SRC), bool).at[0, -2:].set(False)
    tgt_valid = jnp.ones((B, S_TGT), bool).at[1, -1:].set(False)
    causal = jnp.tril(jnp.ones((S_TGT, S_TGT), bool))
    mhma_mask = (causal[None, :, :] & tgt_valid[:, None, :])[:, None]          # [B,1,St,St]
    mhca_mask = jnp.broadcast_to(src_valid[:, None, None, :], (B, 1, S_TGT, S_SRC))

    out = decoder_forward(params, dec_input, enc_output, mhma_mask, mhca_mask)
    out = jax.block_until_ready(out)
    assert out.shape == (B, S_TGT, TGT_VOCAB)
    assert bool(jnp.all(jnp.isfinite(out)))
    print("KERNEL_OK")
</pallas_src>

<mosaic_0001>
module attributes {stable_mosaic.version = 11 : i64} {
  func.func @_decoder_kernel(%arg0: memref<16x32xf32, #tpu.memory_space<vmem>>, %arg1: memref<16x32xf32, #tpu.memory_space<vmem>>, %arg2: memref<64x16xf32, #tpu.memory_space<vmem>>, %arg3: memref<64x16xf32, #tpu.memory_space<vmem>>, %arg4: memref<64x32xf32, #tpu.memory_space<vmem>>, %arg5: memref<2x32x96xf32, #tpu.memory_space<vmem>>, %arg6: memref<2x1x96xf32, #tpu.memory_space<vmem>>, %arg7: memref<2x32x32xf32, #tpu.memory_space<vmem>>, %arg8: memref<2x1x32xf32, #tpu.memory_space<vmem>>, %arg9: memref<2x32x32xf32, #tpu.memory_space<vmem>>, %arg10: memref<2x1x32xf32, #tpu.memory_space<vmem>>, %arg11: memref<32x128xf32, #tpu.memory_space<vmem>>, %arg12: memref<1x128xf32, #tpu.memory_space<vmem>>, %arg13: memref<2x32x32xf32, #tpu.memory_space<vmem>>, %arg14: memref<2x1x32xf32, #tpu.memory_space<vmem>>, %arg15: memref<2x32x64xf32, #tpu.memory_space<vmem>>, %arg16: memref<2x1x64xf32, #tpu.memory_space<vmem>>, %arg17: memref<2x64x32xf32, #tpu.memory_space<vmem>>, %arg18: memref<2x1x32xf32, #tpu.memory_space<vmem>>, %arg19: memref<2x3x32xf32, #tpu.memory_space<vmem>>, %arg20: memref<2x3x32xf32, #tpu.memory_space<vmem>>, %arg21: memref<32x128xf32, #tpu.memory_space<vmem>>, %arg22: memref<1x128xf32, #tpu.memory_space<vmem>>, %arg23: memref<16x128xf32, #tpu.memory_space<vmem>>) attributes {dimension_semantics = [], scalar_prefetch = 0 : i64, scratch_operands = 0 : i64, tpu.core_type = #tpu.core_type<tc>} {
    %c0 = arith.constant 0 : index
    %c0_0 = arith.constant 0 : index
    %0 = vector.load %arg0[%c0, %c0_0] : memref<16x32xf32, #tpu.memory_space<vmem>>, vector<16x32xf32>
    %c0_1 = arith.constant 0 : index
    %c0_2 = arith.constant 0 : index
    %1 = vector.load %arg1[%c0_1, %c0_2] : memref<16x32xf32, #tpu.memory_space<vmem>>, vector<16x32xf32>
    %c0_3 = arith.constant 0 : index
    %c0_4 = arith.constant 0 : index
    %2 = vector.load %arg2[%c0_3, %c0_4] : memref<64x16xf32, #tpu.memory_space<vmem>>, vector<64x16xf32>
    %c0_5 = arith.constant 0 : index
    %c0_6 = arith.constant 0 : index
    %3 = vector.load %arg3[%c0_5, %c0_6] : memref<64x16xf32, #tpu.memory_space<vmem>>, vector<64x16xf32>
    %c0_7 = arith.constant 0 : index
    %c0_8 = arith.constant 0 : index
    %4 = vector.load %arg4[%c0_7, %c0_8] : memref<64x32xf32, #tpu.memory_space<vmem>>, vector<64x32xf32>
    %c0_9 = arith.constant 0 : index
    %c0_10 = arith.constant 0 : index
    %5 = vector.load %arg11[%c0_9, %c0_10] : memref<32x128xf32, #tpu.memory_space<vmem>>, vector<32x128xf32>
    %cst = arith.constant dense<0.000000e+00> : vector<16x128xf32>
    %6 = tpu.matmul %1, %5, %cst {dimension_numbers = #tpu.dot_dimension_numbers<[1], [0], [0], [1], [0, 0, 1, 1], [], []>} : vector<16x32xf32>, vector<32x128xf32>, vector<16x128xf32> -> vector<16x128xf32>
    %c0_11 = arith.constant 0 : index
    %c0_12 = arith.constant 0 : index
    %7 = vector.load %arg12[%c0_11, %c0_12] : memref<1x128xf32, #tpu.memory_space<vmem>>, vector<1x128xf32>
    %8 = vector.broadcast %7 : vector<1x128xf32> to vector<16x128xf32>
    %9 = arith.addf %6, %8 : vector<16x128xf32>
    %c0_13 = arith.constant 0 : index
    %c0_14 = arith.constant 0 : index
    %c0_15 = arith.constant 0 : index
    %10 = vector.load %arg19[%c0_13, %c0_14, %c0_15] : memref<2x3x32xf32, #tpu.memory_space<vmem>>, vector<1x3x32xf32>
    %11 = vector.shape_cast %10 : vector<1x3x32xf32> to vector<3x32xf32>
    %c0_16 = arith.constant 0 : index
    %c0_17 = arith.constant 0 : index
    %c0_18 = arith.constant 0 : index
    %12 = vector.load %arg20[%c0_16, %c0_17, %c0_18] : memref<2x3x32xf32, #tpu.memory_space<vmem>>, vector<1x3x32xf32>
    %13 = vector.shape_cast %12 : vector<1x3x32xf32> to vector<3x32xf32>
    %c0_19 = arith.constant 0 : index
    %c0_20 = arith.constant 0 : index
    %c0_21 = arith.constant 0 : index
    %14 = vector.load %arg5[%c0_19, %c0_20, %c0_21] : memref<2x32x96xf32, #tpu.memory_space<vmem>>, vector<1x32x96xf32>
    %15 = vector.shape_cast %14 : vector<1x32x96xf32> to vector<32x96xf32>
    %cst_22 = arith.constant dense<0.000000e+00> : vector<16x96xf32>
    %16 = tpu.matmul %0, %15, %cst_22 {dimension_numbers = #tpu.dot_dimension_numbers<[1], [0], [0], [1], [0, 0, 1, 1], [], []>} : vector<16x32xf32>, vector<32x96xf32>, vector<16x96xf32> -> vector<16x96xf32>
    %c0_23 = arith.constant 0 : index
    %c0_24 = arith.constant 0 : index
    %c0_25 = arith.constant 0 : index
    %17 = vector.load %arg6[%c0_23, %c0_24, %c0_25] : memref<2x1x96xf32, #tpu.memory_space<vmem>>, vector<1x1x96xf32>
    %18 = vector.shape_cast %17 : vector<1x1x96xf32> to vector<1x96xf32>
    %19 = vector.broadcast %18 : vector<1x96xf32> to vector<16x96xf32>
    %20 = arith.addf %16, %19 : vector<16x96xf32>
    %21 = vector.extract_strided_slice %20 {offsets = [0, 0], sizes = [16, 32], strides = [1, 1]} : vector<16x96xf32> to vector<16x32xf32>
    %22 = vector.extract_strided_slice %20 {offsets = [0, 32], sizes = [16, 32], strides = [1, 1]} : vector<16x96xf32> to vector<16x32xf32>
    %23 = vector.extract_strided_slice %20 {offsets = [0, 64], sizes = [16, 32], strides = [1, 1]} : vector<16x96xf32> to vector<16x32xf32>
    %c0_26 = arith.constant 0 : index
    %c0_27 = arith.constant 0 : index
    %c0_28 = arith.constant 0 : index
    %24 = vector.load %arg7[%c0_26, %c0_27, %c0_28] : memref<2x32x32xf32, #tpu.memory_space<vmem>>, vector<1x32x32xf32>
    %25 = vector.shape_cast %24 : vector<1x32x32xf32> to vector<32x32xf32>
    %c0_29 = arith.constant 0 : index
    %c0_30 = arith.constant 0 : index
    %c0_31 = arith.constant 0 : index
    %26 = vector.load %arg8[%c0_29, %c0_30, %c0_31] : memref<2x1x32xf32, #tpu.memory_space<vmem>>, vector<1x1x32xf32>
    %27 = vector.shape_cast %26 : vector<1x1x32xf32> to vector<1x32xf32>
    %28 = tpu.transpose %22, [1, 0] : vector<16x32xf32> -> vector<32x16xf32>
    %29 = tpu.concatenate %21, %21, %21, %21 in 0 : vector<16x32xf32>, vector<16x32xf32>, vector<16x32xf32>, vector<16x32xf32> -> vector<64x32xf32>
    %30 = arith.mulf %29, %4 : vector<64x32xf32>
    %cst_32 = arith.constant dense<0.000000e+00> : vector<64x16xf32>
    %31 = tpu.matmul %30, %28, %cst_32 {dimension_numbers = #tpu.dot_dimension_numbers<[1], [0], [0], [1], [0, 0, 1, 1], [], []>} : vector<64x32xf32>, vector<32x16xf32>, vector<64x16xf32> -> vector<64x16xf32>
    %32 = arith.addf %31, %2 : vector<64x16xf32>
    %cst_33 = arith.constant dense<0xFF800000> : vector<64xf32>
    %33 = vector.multi_reduction <maximumf>, %32, %cst_33 [1] : vector<64x16xf32> to vector<64xf32>
    %34 = vector.shape_cast %33 : vector<64xf32> to vector<64x1xf32>
    %35 = vector.broadcast %34 : vector<64x1xf32> to vector<64x16xf32>
    %36 = arith.subf %32, %35 : vector<64x16xf32>
    %37 = math.exp %36 : vector<64x16xf32>
    %cst_34 = arith.constant dense<0.000000e+00> : vector<64xf32>
    %38 = vector.multi_reduction <add>, %37, %cst_34 [1] : vector<64x16xf32> to vector<64xf32>
    %39 = vector.shape_cast %38 : vector<64xf32> to vector<64x1xf32>
    %40 = tpu.reciprocal %39 {approx = true} : vector<64x1xf32> -> vector<64x1xf32>
    %41 = vector.broadcast %40 : vector<64x1xf32> to vector<64x16xf32>
    %42 = arith.mulf %37, %41 : vector<64x16xf32>
    %43 = vector.extract_strided_slice %42 {offsets = [0, 0], sizes = [16, 16], strides = [1, 1]} : vector<64x16xf32> to vector<16x16xf32>
    %44 = vector.extract_strided_slice %23 {offsets = [0, 0], sizes = [16, 8], strides = [1, 1]} : vector<16x32xf32> to vector<16x8xf32>
    %cst_35 = arith.constant dense<0.000000e+00> : vector<16x8xf32>
    %45 = tpu.matmul %43, %44, %cst_35 {dimension_numbers = #tpu.dot_dimension_numbers<[1], [0], [0], [1], [0, 0, 1, 1], [], []>} : vector<16x16xf32>, vector<16x8xf32>, vector<16x8xf32> -> vector<16x8xf32>
    %46 = vector.extract_strided_slice %25 {offsets = [0, 0], sizes = [8, 32], strides = [1, 1]} : vector<32x32xf32> to vector<8x32xf32>
    %cst_36 = arith.constant dense<0.000000e+00> : vector<16x32xf32>
    %47 = tpu.matmul %45, %46, %cst_36 {dimension_numbers = #tpu.dot_dimension_numbers<[1], [0], [0], [1], [0, 0, 1, 1], [], []>} : vector<16x8xf32>, vector<8x32xf32>, vector<16x32xf32> -> vector<16x32xf32>
    %48 = vector.extract_strided_slice %42 {offsets = [16, 0], sizes = [16, 16], strides = [1, 1]} : vector<64x16xf32> to vector<16x16xf32>
    %49 = vector.extract_strided_slice %23 {offsets = [0, 8], sizes = [16, 8], strides = [1, 1]} : vector<16x32xf32> to vector<16x8xf32>
    %cst_37 = arith.constant dense<0.000000e+00> : vector<16x8xf32>
    %50 = tpu.matmul %48, %49, %cst_37 {dimension_numbers = #tpu.dot_dimension_numbers<[1], [0], [0], [1], [0, 0, 1, 1], [], []>} : vector<16x16xf32>, vector<16x8xf32>, vector<16x8xf32> -> vector<16x8xf32>
    %51 = vector.extract_strided_slice %25 {offsets = [8, 0], sizes = [8, 32], strides = [1, 1]} : vector<32x32xf32> to vector<8x32xf32>
    %cst_38 = arith.constant dense<0.000000e+00> : vector<16x32xf32>
    %52 = tpu.matmul %50, %51, %cst_38 {dimension_numbers = #tpu.dot_dimension_numbers<[1], [0], [0], [1], [0, 0, 1, 1], [], []>} : vector<16x8xf32>, vector<8x32xf32>, vector<16x32xf32> -> vector<16x32xf32>
    %53 = arith.addf %47, %52 : vector<16x32xf32>
    %54 = vector.extract_strided_slice %42 {offsets = [32, 0], sizes = [16, 16], strides = [1, 1]} : vector<64x16xf32> to vector<16x16xf32>
    %55 = vector.extract_strided_slice %23 {offsets = [0, 16], sizes = [16, 8], strides = [1, 1]} : vector<16x32xf32> to vector<16x8xf32>
    %cst_39 = arith.constant dense<0.000000e+00> : vector<16x8xf32>
    %56 = tpu.matmul %54, %55, %cst_39 {dimension_numbers = #tpu.dot_dimension_numbers<[1], [0], [0], [1], [0, 0, 1, 1], [], []>} : vector<16x16xf32>, vector<16x8xf32>, vector<16x8xf32> -> vector<16x8xf32>
    %57 = vector.extract_strided_slice %25 {offsets = [16, 0], sizes = [8, 32], strides = [1, 1]} : vector<32x32xf32> to vector<8x32xf32>
    %cst_40 = arith.constant dense<0.000000e+00> : vector<16x32xf32>
    %58 = tpu.matmul %56, %57, %cst_40 {dimension_numbers = #tpu.dot_dimension_numbers<[1], [0], [0], [1], [0, 0, 1, 1], [], []>} : vector<16x8xf32>, vector<8x32xf32>, vector<16x32xf32> -> vector<16x32xf32>
    %59 = arith.addf %53, %58 : vector<16x32xf32>
    %60 = vector.extract_strided_slice %42 {offsets = [48, 0], sizes = [16, 16], strides = [1, 1]} : vector<64x16xf32> to vector<16x16xf32>
    %61 = vector.extract_strided_slice %23 {offsets = [0, 24], sizes = [16, 8], strides = [1, 1]} : vector<16x32xf32> to vector<16x8xf32>
    %cst_41 = arith.constant dense<0.000000e+00> : vector<16x8xf32>
    %62 = tpu.matmul %60, %61, %cst_41 {dimension_numbers = #tpu.dot_dimension_numbers<[1], [0], [0], [1], [0, 0, 1, 1], [], []>} : vector<16x16xf32>, vector<16x8xf32>, vector<16x8xf32> -> vector<16x8xf32>
    %63 = vector.extract_strided_slice %25 {offsets = [24, 0], sizes = [8, 32], strides = [1, 1]} : vector<32x32xf32> to vector<8x32xf32>
    %cst_42 = arith.constant dense<0.000000e+00> : vector<16x32xf32>
    %64 = tpu.matmul %62, %63, %cst_42 {dimension_numbers = #tpu.dot_dimension_numbers<[1], [0], [0], [1], [0, 0, 1, 1], [], []>} : vector<16x8xf32>, vector<8x32xf32>, vector<16x32xf32> -> vector<16x32xf32>
    %65 = arith.addf %59, %64 : vector<16x32xf32>
    %66 = vector.broadcast %27 : vector<1x32xf32> to vector<16x32xf32>
    %67 = arith.addf %65, %66 : vector<16x32xf32>
    %68 = arith.addf %0, %67 : vector<16x32xf32>
    %69 = vector.extract_strided_slice %11 {offsets = [0, 0], sizes = [1, 32], strides = [1, 1]} : vector<3x32xf32> to vector<1x32xf32>
    %70 = vector.extract_strided_slice %13 {offsets = [0, 0], sizes = [1, 32], strides = [1, 1]} : vector<3x32xf32> to vector<1x32xf32>
    %cst_43 = arith.constant dense<0.000000e+00> : vector<16xf32>
    %71 = vector.multi_reduction <add>, %68, %cst_43 [1] : vector<16x32xf32> to vector<16xf32>
    %72 = vector.shape_cast %71 : vector<16xf32> to vector<16x1xf32>
    %cst_44 = arith.constant 3.200000e+01 : f32
    %73 = vector.broadcast %cst_44 : f32 to vector<16x1xf32>
    %74 = arith.divf %72, %73 : vector<16x1xf32>
    %75 = arith.mulf %68, %68 : vector<16x32xf32>
    %cst_45 = arith.constant dense<0.000000e+00> : vector<16xf32>
    %76 = vector.multi_reduction <add>, %75, %cst_45 [1] : vector<16x32xf32> to vector<16xf32>
    %77 = vector.shape_cast %76 : vector<16xf32> to vector<16x1xf32>
    %cst_46 = arith.constant 3.200000e+01 : f32
    %78 = vector.broadcast %cst_46 : f32 to vector<16x1xf32>
    %79 = arith.divf %77, %78 : vector<16x1xf32>
    %80 = vector.broadcast %74 : vector<16x1xf32> to vector<16x32xf32>
    %81 = arith.subf %68, %80 : vector<16x32xf32>
    %82 = arith.mulf %74, %74 : vector<16x1xf32>
    %83 = arith.subf %79, %82 : vector<16x1xf32>
    %cst_47 = arith.constant 9.99999974E-6 : f32
    %84 = vector.broadcast %cst_47 : f32 to vector<16x1xf32>
    %85 = arith.addf %83, %84 : vector<16x1xf32>
    %86 = math.rsqrt %85 : vector<16x1xf32>
    %87 = vector.broadcast %86 : vector<16x1xf32> to vector<16x32xf32>
    %88 = arith.mulf %81, %87 : vector<16x32xf32>
    %89 = vector.broadcast %69 : vector<1x32xf32> to vector<16x32xf32>
    %90 = arith.mulf %88, %89 : vector<16x32xf32>
    %91 = vector.broadcast %70 : vector<1x32xf32> to vector<16x32xf32>
    %92 = arith.addf %90, %91 : vector<16x32xf32>
    %c0_48 = arith.constant 0 : index
    %c0_49 = arith.constant 0 : index
    %c0_50 = arith.constant 0 : index
    %93 = vector.load %arg9[%c0_48, %c0_49, %c0_50] : memref<2x32x32xf32, #tpu.memory_space<vmem>>, vector<1x32x32xf32>
    %94 = vector.shape_cast %93 : vector<1x32x32xf32> to vector<32x32xf32>
    %cst_51 = arith.constant dense<0.000000e+00> : vector<16x32xf32>
    %95 = tpu.matmul %92, %94, %cst_51 {dimension_numbers = #tpu.dot_dimension_numbers<[1], [0], [0], [1], [0, 0, 1, 1], [], []>} : vector<16x32xf32>, vector<32x32xf32>, vector<16x32xf32> -> vector<16x32xf32>
    %c0_52 = arith.constant 0 : index
    %c0_53 = arith.constant 0 : index
    %c0_54 = arith.constant 0 : index
    %96 = vector.load %arg10[%c0_52, %c0_53, %c0_54] : memref<2x1x32xf32, #tpu.memory_space<vmem>>, vector<1x1x32xf32>
    %97 = vector.shape_cast %96 : vector<1x1x32xf32> to vector<1x32xf32>
    %98 = vector.broadcast %97 : vector<1x32xf32> to vector<16x32xf32>
    %99 = arith.addf %95, %98 : vector<16x32xf32>
    %100 = vector.extract_strided_slice %9 {offsets = [0, 0], sizes = [16, 32], strides = [1, 1]} : vector<16x128xf32> to vector<16x32xf32>
    %101 = vector.extract_strided_slice %9 {offsets = [0, 32], sizes = [16, 32], strides = [1, 1]} : vector<16x128xf32> to vector<16x32xf32>
    %c0_55 = arith.constant 0 : index
    %c0_56 = arith.constant 0 : index
    %c0_57 = arith.constant 0 : index
    %102 = vector.load %arg13[%c0_55, %c0_56, %c0_57] : memref<2x32x32xf32, #tpu.memory_space<vmem>>, vector<1x32x32xf32>
    %103 = vector.shape_cast %102 : vector<1x32x32xf32> to vector<32x32xf32>
    %c0_58 = arith.constant 0 : index
    %c0_59 = arith.constant 0 : index
    %c0_60 = arith.constant 0 : index
    %104 = vector.load %arg14[%c0_58, %c0_59, %c0_60] : memref<2x1x32xf32, #tpu.memory_space<vmem>>, vector<1x1x32xf32>
    %105 = vector.shape_cast %104 : vector<1x1x32xf32> to vector<1x32xf32>
    %106 = tpu.transpose %100, [1, 0] : vector<16x32xf32> -> vector<32x16xf32>
    %107 = tpu.concatenate %99, %99, %99, %99 in 0 : vector<16x32xf32>, vector<16x32xf32>, vector<16x32xf32>, vector<16x32xf32> -> vector<64x32xf32>
    %108 = arith.mulf %107, %4 : vector<64x32xf32>
    %cst_61 = arith.constant dense<0.000000e+00> : vector<64x16xf32>
    %109 = tpu.matmul %108, %106, %cst_61 {dimension_numbers = #tpu.dot_dimension_numbers<[1], [0], [0], [1], [0, 0, 1, 1], [], []>} : vector<64x32xf32>, vector<32x16xf32>, vector<64x16xf32> -> vector<64x16xf32>
    %110 = arith.addf %109, %3 : vector<64x16xf32>
    %cst_62 = arith.constant dense<0xFF800000> : vector<64xf32>
    %111 = vector.multi_reduction <maximumf>, %110, %cst_62 [1] : vector<64x16xf32> to vector<64xf32>
    %112 = vector.shape_cast %111 : vector<64xf32> to vector<64x1xf32>
    %113 = vector.broadcast %112 : vector<64x1xf32> to vector<64x16xf32>
    %114 = arith.subf %110, %113 : vector<64x16xf32>
    %115 = math.exp %114 : vector<64x16xf32>
    %cst_63 = arith.constant dense<0.000000e+00> : vector<64xf32>
    %116 = vector.multi_reduction <add>, %115, %cst_63 [1] : vector<64x16xf32> to vector<64xf32>
    %117 = vector.shape_cast %116 : vector<64xf32> to vector<64x1xf32>
    %118 = tpu.reciprocal %117 {approx = true} : vector<64x1xf32> -> vector<64x1xf32>
    %119 = vector.broadcast %118 : vector<64x1xf32> to vector<64x16xf32>
    %120 = arith.mulf %115, %119 : vector<64x16xf32>
    %121 = vector.extract_strided_slice %120 {offsets = [0, 0], sizes = [16, 16], strides = [1, 1]} : vector<64x16xf32> to vector<16x16xf32>
    %122 = vector.extract_strided_slice %101 {offsets = [0, 0], sizes = [16, 8], strides = [1, 1]} : vector<16x32xf32> to vector<16x8xf32>
    %cst_64 = arith.constant dense<0.000000e+00> : vector<16x8xf32>
    %123 = tpu.matmul %121, %122, %cst_64 {dimension_numbers = #tpu.dot_dimension_numbers<[1], [0], [0], [1], [0, 0, 1, 1], [], []>} : vector<16x16xf32>, vector<16x8xf32>, vector<16x8xf32> -> vector<16x8xf32>
    %124 = vector.extract_strided_slice %103 {offsets = [0, 0], sizes = [8, 32], strides = [1, 1]} : vector<32x32xf32> to vector<8x32xf32>
    %cst_65 = arith.constant dense<0.000000e+00> : vector<16x32xf32>
    %125 = tpu.matmul %123, %124, %cst_65 {dimension_numbers = #tpu.dot_dimension_numbers<[1], [0], [0], [1], [0, 0, 1, 1], [], []>} : vector<16x8xf32>, vector<8x32xf32>, vector<16x32xf32> -> vector<16x32xf32>
    %126 = vector.extract_strided_slice %120 {offsets = [16, 0], sizes = [16, 16], strides = [1, 1]} : vector<64x16xf32> to vector<16x16xf32>
    %127 = vector.extract_strided_slice %101 {offsets = [0, 8], sizes = [16, 8], strides = [1, 1]} : vector<16x32xf32> to vector<16x8xf32>
    %cst_66 = arith.constant dense<0.000000e+00> : vector<16x8xf32>
    %128 = tpu.matmul %126, %127, %cst_66 {dimension_numbers = #tpu.dot_dimension_numbers<[1], [0], [0], [1], [0, 0, 1, 1], [], []>} : vector<16x16xf32>, vector<16x8xf32>, vector<16x8xf32> -> vector<16x8xf32>
    %129 = vector.extract_strided_slice %103 {offsets = [8, 0], sizes = [8, 32], strides = [1, 1]} : vector<32x32xf32> to vector<8x32xf32>
    %cst_67 = arith.constant dense<0.000000e+00> : vector<16x32xf32>
    %130 = tpu.matmul %128, %129, %cst_67 {dimension_numbers = #tpu.dot_dimension_numbers<[1], [0], [0], [1], [0, 0, 1, 1], [], []>} : vector<16x8xf32>, vector<8x32xf32>, vector<16x32xf32> -> vector<16x32xf32>
    %131 = arith.addf %125, %130 : vector<16x32xf32>
    %132 = vector.extract_strided_slice %120 {offsets = [32, 0], sizes = [16, 16], strides = [1, 1]} : vector<64x16xf32> to vector<16x16xf32>
    %133 = vector.extract_strided_slice %101 {offsets = [0, 16], sizes = [16, 8], strides = [1, 1]} : vector<16x32xf32> to vector<16x8xf32>
    %cst_68 = arith.constant dense<0.000000e+00> : vector<16x8xf32>
    %134 = tpu.matmul %132, %133, %cst_68 {dimension_numbers = #tpu.dot_dimension_numbers<[1], [0], [0], [1], [0, 0, 1, 1], [], []>} : vector<16x16xf32>, vector<16x8xf32>, vector<16x8xf32> -> vector<16x8xf32>
    %135 = vector.extract_strided_slice %103 {offsets = [16, 0], sizes = [8, 32], strides = [1, 1]} : vector<32x32xf32> to vector<8x32xf32>
    %cst_69 = arith.constant dense<0.000000e+00> : vector<16x32xf32>
    %136 = tpu.matmul %134, %135, %cst_69 {dimension_numbers = #tpu.dot_dimension_numbers<[1], [0], [0], [1], [0, 0, 1, 1], [], []>} : vector<16x8xf32>, vector<8x32xf32>, vector<16x32xf32> -> vector<16x32xf32>
    %137 = arith.addf %131, %136 : vector<16x32xf32>
    %138 = vector.extract_strided_slice %120 {offsets = [48, 0], sizes = [16, 16], strides = [1, 1]} : vector<64x16xf32> to vector<16x16xf32>
    %139 = vector.extract_strided_slice %101 {offsets = [0, 24], sizes = [16, 8], strides = [1, 1]} : vector<16x32xf32> to vector<16x8xf32>
    %cst_70 = arith.constant dense<0.000000e+00> : vector<16x8xf32>
    %140 = tpu.matmul %138, %139, %cst_70 {dimension_numbers = #tpu.dot_dimension_numbers<[1], [0], [0], [1], [0, 0, 1, 1], [], []>} : vector<16x16xf32>, vector<16x8xf32>, vector<16x8xf32> -> vector<16x8xf32>
    %141 = vector.extract_strided_slice %103 {offsets = [24, 0], sizes = [8, 32], strides = [1, 1]} : vector<32x32xf32> to vector<8x32xf32>
    %cst_71 = arith.constant dense<0.000000e+00> : vector<16x32xf32>
    %142 = tpu.matmul %140, %141, %cst_71 {dimension_numbers = #tpu.dot_dimension_numbers<[1], [0], [0], [1], [0, 0, 1, 1], [], []>} : vector<16x8xf32>, vector<8x32xf32>, vector<16x32xf32> -> vector<16x32xf32>
    %143 = arith.addf %137, %142 : vector<16x32xf32>
    %144 = vector.broadcast %105 : vector<1x32xf32> to vector<16x32xf32>
    %145 = arith.addf %143, %144 : vector<16x32xf32>
    %146 = arith.addf %92, %145 : vector<16x32xf32>
    %147 = vector.extract_strided_slice %11 {offsets = [1, 0], sizes = [1, 32], strides = [1, 1]} : vector<3x32xf32> to vector<1x32xf32>
    %148 = vector.extract_strided_slice %13 {offsets = [1, 0], sizes = [1, 32], strides = [1, 1]} : vector<3x32xf32> to vector<1x32xf32>
    %cst_72 = arith.constant dense<0.000000e+00> : vector<16xf32>
    %149 = vector.multi_reduction <add>, %146, %cst_72 [1] : vector<16x32xf32> to vector<16xf32>
    %150 = vector.shape_cast %149 : vector<16xf32> to vector<16x1xf32>
    %cst_73 = arith.constant 3.200000e+01 : f32
    %151 = vector.broadcast %cst_73 : f32 to vector<16x1xf32>
    %152 = arith.divf %150, %151 : vector<16x1xf32>
    %153 = arith.mulf %146, %146 : vector<16x32xf32>
    %cst_74 = arith.constant dense<0.000000e+00> : vector<16xf32>
    %154 = vector.multi_reduction <add>, %153, %cst_74 [1] : vector<16x32xf32> to vector<16xf32>
    %155 = vector.shape_cast %154 : vector<16xf32> to vector<16x1xf32>
    %cst_75 = arith.constant 3.200000e+01 : f32
    %156 = vector.broadcast %cst_75 : f32 to vector<16x1xf32>
    %157 = arith.divf %155, %156 : vector<16x1xf32>
    %158 = vector.broadcast %152 : vector<16x1xf32> to vector<16x32xf32>
    %159 = arith.subf %146, %158 : vector<16x32xf32>
    %160 = arith.mulf %152, %152 : vector<16x1xf32>
    %161 = arith.subf %157, %160 : vector<16x1xf32>
    %cst_76 = arith.constant 9.99999974E-6 : f32
    %162 = vector.broadcast %cst_76 : f32 to vector<16x1xf32>
    %163 = arith.addf %161, %162 : vector<16x1xf32>
    %164 = math.rsqrt %163 : vector<16x1xf32>
    %165 = vector.broadcast %164 : vector<16x1xf32> to vector<16x32xf32>
    %166 = arith.mulf %159, %165 : vector<16x32xf32>
    %167 = vector.broadcast %147 : vector<1x32xf32> to vector<16x32xf32>
    %168 = arith.mulf %166, %167 : vector<16x32xf32>
    %169 = vector.broadcast %148 : vector<1x32xf32> to vector<16x32xf32>
    %170 = arith.addf %168, %169 : vector<16x32xf32>
    %c0_77 = arith.constant 0 : index
    %c0_78 = arith.constant 0 : index
    %c0_79 = arith.constant 0 : index
    %171 = vector.load %arg15[%c0_77, %c0_78, %c0_79] : memref<2x32x64xf32, #tpu.memory_space<vmem>>, vector<1x32x64xf32>
    %172 = vector.shape_cast %171 : vector<1x32x64xf32> to vector<32x64xf32>
    %cst_80 = arith.constant dense<0.000000e+00> : vector<16x64xf32>
    %173 = tpu.matmul %170, %172, %cst_80 {dimension_numbers = #tpu.dot_dimension_numbers<[1], [0], [0], [1], [0, 0, 1, 1], [], []>} : vector<16x32xf32>, vector<32x64xf32>, vector<16x64xf32> -> vector<16x64xf32>
    %c0_81 = arith.constant 0 : index
    %c0_82 = arith.constant 0 : index
    %c0_83 = arith.constant 0 : index
    %174 = vector.load %arg16[%c0_81, %c0_82, %c0_83] : memref<2x1x64xf32, #tpu.memory_space<vmem>>, vector<1x1x64xf32>
    %175 = vector.shape_cast %174 : vector<1x1x64xf32> to vector<1x64xf32>
    %176 = vector.broadcast %175 : vector<1x64xf32> to vector<16x64xf32>
    %177 = arith.addf %173, %176 : vector<16x64xf32>
    %cst_84 = arith.constant 0.000000e+00 : f32
    %178 = vector.broadcast %cst_84 : f32 to vector<16x64xf32>
    %179 = arith.maximumf %177, %178 : vector<16x64xf32>
    %c0_85 = arith.constant 0 : index
    %c0_86 = arith.constant 0 : index
    %c0_87 = arith.constant 0 : index
    %180 = vector.load %arg17[%c0_85, %c0_86, %c0_87] : memref<2x64x32xf32, #tpu.memory_space<vmem>>, vector<1x64x32xf32>
    %181 = vector.shape_cast %180 : vector<1x64x32xf32> to vector<64x32xf32>
    %cst_88 = arith.constant dense<0.000000e+00> : vector<16x32xf32>
    %182 = tpu.matmul %179, %181, %cst_88 {dimension_numbers = #tpu.dot_dimension_numbers<[1], [0], [0], [1], [0, 0, 1, 1], [], []>} : vector<16x64xf32>, vector<64x32xf32>, vector<16x32xf32> -> vector<16x32xf32>
    %c0_89 = arith.constant 0 : index
    %c0_90 = arith.constant 0 : index
    %c0_91 = arith.constant 0 : index
    %183 = vector.load %arg18[%c0_89, %c0_90, %c0_91] : memref<2x1x32xf32, #tpu.memory_space<vmem>>, vector<1x1x32xf32>
    %184 = vector.shape_cast %183 : vector<1x1x32xf32> to vector<1x32xf32>
    %185 = vector.broadcast %184 : vector<1x32xf32> to vector<16x32xf32>
    %186 = arith.addf %182, %185 : vector<16x32xf32>
    %187 = arith.addf %170, %186 : vector<16x32xf32>
    %188 = vector.extract_strided_slice %11 {offsets = [2, 0], sizes = [1, 32], strides = [1, 1]} : vector<3x32xf32> to vector<1x32xf32>
    %189 = vector.extract_strided_slice %13 {offsets = [2, 0], sizes = [1, 32], strides = [1, 1]} : vector<3x32xf32> to vector<1x32xf32>
    %cst_92 = arith.constant dense<0.000000e+00> : vector<16xf32>
    %190 = vector.multi_reduction <add>, %187, %cst_92 [1] : vector<16x32xf32> to vector<16xf32>
    %191 = vector.shape_cast %190 : vector<16xf32> to vector<16x1xf32>
    %cst_93 = arith.constant 3.200000e+01 : f32
    %192 = vector.broadcast %cst_93 : f32 to vector<16x1xf32>
    %193 = arith.divf %191, %192 : vector<16x1xf32>
    %194 = arith.mulf %187, %187 : vector<16x32xf32>
    %cst_94 = arith.constant dense<0.000000e+00> : vector<16xf32>
    %195 = vector.multi_reduction <add>, %194, %cst_94 [1] : vector<16x32xf32> to vector<16xf32>
    %196 = vector.shape_cast %195 : vector<16xf32> to vector<16x1xf32>
    %cst_95 = arith.constant 3.200000e+01 : f32
    %197 = vector.broadcast %cst_95 : f32 to vector<16x1xf32>
    %198 = arith.divf %196, %197 : vector<16x1xf32>
    %199 = vector.broadcast %193 : vector<16x1xf32> to vector<16x32xf32>
    %200 = arith.subf %187, %199 : vector<16x32xf32>
    %201 = arith.mulf %193, %193 : vector<16x1xf32>
    %202 = arith.subf %198, %201 : vector<16x1xf32>
    %cst_96 = arith.constant 9.99999974E-6 : f32
    %203 = vector.broadcast %cst_96 : f32 to vector<16x1xf32>
    %204 = arith.addf %202, %203 : vector<16x1xf32>
    %205 = math.rsqrt %204 : vector<16x1xf32>
    %206 = vector.broadcast %205 : vector<16x1xf32> to vector<16x32xf32>
    %207 = arith.mulf %200, %206 : vector<16x32xf32>
    %208 = vector.broadcast %188 : vector<1x32xf32> to vector<16x32xf32>
    %209 = arith.mulf %207, %208 : vector<16x32xf32>
    %210 = vector.broadcast %189 : vector<1x32xf32> to vector<16x32xf32>
    %211 = arith.addf %209, %210 : vector<16x32xf32>
    %c1 = arith.constant 1 : index
    %c0_97 = arith.constant 0 : index
    %c0_98 = arith.constant 0 : index
    %212 = vector.load %arg19[%c1, %c0_97, %c0_98] : memref<2x3x32xf32, #tpu.memory_space<vmem>>, vector<1x3x32xf32>
    %213 = vector.shape_cast %212 : vector<1x3x32xf32> to vector<3x32xf32>
    %c1_99 = arith.constant 1 : index
    %c0_100 = arith.constant 0 : index
    %c0_101 = arith.constant 0 : index
    %214 = vector.load %arg20[%c1_99, %c0_100, %c0_101] : memref<2x3x32xf32, #tpu.memory_space<vmem>>, vector<1x3x32xf32>
    %215 = vector.shape_cast %214 : vector<1x3x32xf32> to vector<3x32xf32>
    %c1_102 = arith.constant 1 : index
    %c0_103 = arith.constant 0 : index
    %c0_104 = arith.constant 0 : index
    %216 = vector.load %arg5[%c1_102, %c0_103, %c0_104] : memref<2x32x96xf32, #tpu.memory_space<vmem>>, vector<1x32x96xf32>
    %217 = vector.shape_cast %216 : vector<1x32x96xf32> to vector<32x96xf32>
    %cst_105 = arith.constant dense<0.000000e+00> : vector<16x96xf32>
    %218 = tpu.matmul %211, %217, %cst_105 {dimension_numbers = #tpu.dot_dimension_numbers<[1], [0], [0], [1], [0, 0, 1, 1], [], []>} : vector<16x32xf32>, vector<32x96xf32>, vector<16x96xf32> -> vector<16x96xf32>
    %c1_106 = arith.constant 1 : index
    %c0_107 = arith.constant 0 : index
    %c0_108 = arith.constant 0 : index
    %219 = vector.load %arg6[%c1_106, %c0_107, %c0_108] : memref<2x1x96xf32, #tpu.memory_space<vmem>>, vector<1x1x96xf32>
    %220 = vector.shape_cast %219 : vector<1x1x96xf32> to vector<1x96xf32>
    %221 = vector.broadcast %220 : vector<1x96xf32> to vector<16x96xf32>
    %222 = arith.addf %218, %221 : vector<16x96xf32>
    %223 = vector.extract_strided_slice %222 {offsets = [0, 0], sizes = [16, 32], strides = [1, 1]} : vector<16x96xf32> to vector<16x32xf32>
    %224 = vector.extract_strided_slice %222 {offsets = [0, 32], sizes = [16, 32], strides = [1, 1]} : vector<16x96xf32> to vector<16x32xf32>
    %225 = vector.extract_strided_slice %222 {offsets = [0, 64], sizes = [16, 32], strides = [1, 1]} : vector<16x96xf32> to vector<16x32xf32>
    %c1_109 = arith.constant 1 : index
    %c0_110 = arith.constant 0 : index
    %c0_111 = arith.constant 0 : index
    %226 = vector.load %arg7[%c1_109, %c0_110, %c0_111] : memref<2x32x32xf32, #tpu.memory_space<vmem>>, vector<1x32x32xf32>
    %227 = vector.shape_cast %226 : vector<1x32x32xf32> to vector<32x32xf32>
    %c1_112 = arith.constant 1 : index
    %c0_113 = arith.constant 0 : index
    %c0_114 = arith.constant 0 : index
    %228 = vector.load %arg8[%c1_112, %c0_113, %c0_114] : memref<2x1x32xf32, #tpu.memory_space<vmem>>, vector<1x1x32xf32>
    %229 = vector.shape_cast %228 : vector<1x1x32xf32> to vector<1x32xf32>
    %230 = tpu.transpose %224, [1, 0] : vector<16x32xf32> -> vector<32x16xf32>
    %231 = tpu.concatenate %223, %223, %223, %223 in 0 : vector<16x32xf32>, vector<16x32xf32>, vector<16x32xf32>, vector<16x32xf32> -> vector<64x32xf32>
    %232 = arith.mulf %231, %4 : vector<64x32xf32>
    %cst_115 = arith.constant dense<0.000000e+00> : vector<64x16xf32>
    %233 = tpu.matmul %232, %230, %cst_115 {dimension_numbers = #tpu.dot_dimension_numbers<[1], [0], [0], [1], [0, 0, 1, 1], [], []>} : vector<64x32xf32>, vector<32x16xf32>, vector<64x16xf32> -> vector<64x16xf32>
    %234 = arith.addf %233, %2 : vector<64x16xf32>
    %cst_116 = arith.constant dense<0xFF800000> : vector<64xf32>
    %235 = vector.multi_reduction <maximumf>, %234, %cst_116 [1] : vector<64x16xf32> to vector<64xf32>
    %236 = vector.shape_cast %235 : vector<64xf32> to vector<64x1xf32>
    %237 = vector.broadcast %236 : vector<64x1xf32> to vector<64x16xf32>
    %238 = arith.subf %234, %237 : vector<64x16xf32>
    %239 = math.exp %238 : vector<64x16xf32>
    %cst_117 = arith.constant dense<0.000000e+00> : vector<64xf32>
    %240 = vector.multi_reduction <add>, %239, %cst_117 [1] : vector<64x16xf32> to vector<64xf32>
    %241 = vector.shape_cast %240 : vector<64xf32> to vector<64x1xf32>
    %242 = tpu.reciprocal %241 {approx = true} : vector<64x1xf32> -> vector<64x1xf32>
    %243 = vector.broadcast %242 : vector<64x1xf32> to vector<64x16xf32>
    %244 = arith.mulf %239, %243 : vector<64x16xf32>
    %245 = vector.extract_strided_slice %244 {offsets = [0, 0], sizes = [16, 16], strides = [1, 1]} : vector<64x16xf32> to vector<16x16xf32>
    %246 = vector.extract_strided_slice %225 {offsets = [0, 0], sizes = [16, 8], strides = [1, 1]} : vector<16x32xf32> to vector<16x8xf32>
    %cst_118 = arith.constant dense<0.000000e+00> : vector<16x8xf32>
    %247 = tpu.matmul %245, %246, %cst_118 {dimension_numbers = #tpu.dot_dimension_numbers<[1], [0], [0], [1], [0, 0, 1, 1], [], []>} : vector<16x16xf32>, vector<16x8xf32>, vector<16x8xf32> -> vector<16x8xf32>
    %248 = vector.extract_strided_slice %227 {offsets = [0, 0], sizes = [8, 32], strides = [1, 1]} : vector<32x32xf32> to vector<8x32xf32>
    %cst_119 = arith.constant dense<0.000000e+00> : vector<16x32xf32>
    %249 = tpu.matmul %247, %248, %cst_119 {dimension_numbers = #tpu.dot_dimension_numbers<[1], [0], [0], [1], [0, 0, 1, 1], [], []>} : vector<16x8xf32>, vector<8x32xf32>, vector<16x32xf32> -> vector<16x32xf32>
    %250 = vector.extract_strided_slice %244 {offsets = [16, 0], sizes = [16, 16], strides = [1, 1]} : vector<64x16xf32> to vector<16x16xf32>
    %251 = vector.extract_strided_slice %225 {offsets = [0, 8], sizes = [16, 8], strides = [1, 1]} : vector<16x32xf32> to vector<16x8xf32>
    %cst_120 = arith.constant dense<0.000000e+00> : vector<16x8xf32>
    %252 = tpu.matmul %250, %251, %cst_120 {dimension_numbers = #tpu.dot_dimension_numbers<[1], [0], [0], [1], [0, 0, 1, 1], [], []>} : vector<16x16xf32>, vector<16x8xf32>, vector<16x8xf32> -> vector<16x8xf32>
    %253 = vector.extract_strided_slice %227 {offsets = [8, 0], sizes = [8, 32], strides = [1, 1]} : vector<32x32xf32> to vector<8x32xf32>
    %cst_121 = arith.constant dense<0.000000e+00> : vector<16x32xf32>
    %254 = tpu.matmul %252, %253, %cst_121 {dimension_numbers = #tpu.dot_dimension_numbers<[1], [0], [0], [1], [0, 0, 1, 1], [], []>} : vector<16x8xf32>, vector<8x32xf32>, vector<16x32xf32> -> vector<16x32xf32>
    %255 = arith.addf %249, %254 : vector<16x32xf32>
    %256 = vector.extract_strided_slice %244 {offsets = [32, 0], sizes = [16, 16], strides = [1, 1]} : vector<64x16xf32> to vector<16x16xf32>
    %257 = vector.extract_strided_slice %225 {offsets = [0, 16], sizes = [16, 8], strides = [1, 1]} : vector<16x32xf32> to vector<16x8xf32>
    %cst_122 = arith.constant dense<0.000000e+00> : vector<16x8xf32>
    %258 = tpu.matmul %256, %257, %cst_122 {dimension_numbers = #tpu.dot_dimension_numbers<[1], [0], [0], [1], [0, 0, 1, 1], [], []>} : vector<16x16xf32>, vector<16x8xf32>, vector<16x8xf32> -> vector<16x8xf32>
    %259 = vector.extract_strided_slice %227 {offsets = [16, 0], sizes = [8, 32], strides = [1, 1]} : vector<32x32xf32> to vector<8x32xf32>
    %cst_123 = arith.constant dense<0.000000e+00> : vector<16x32xf32>
    %260 = tpu.matmul %258, %259, %cst_123 {dimension_numbers = #tpu.dot_dimension_numbers<[1], [0], [0], [1], [0, 0, 1, 1], [], []>} : vector<16x8xf32>, vector<8x32xf32>, vector<16x32xf32> -> vector<16x32xf32>
    %261 = arith.addf %255, %260 : vector<16x32xf32>
    %262 = vector.extract_strided_slice %244 {offsets = [48, 0], sizes = [16, 16], strides = [1, 1]} : vector<64x16xf32> to vector<16x16xf32>
    %263 = vector.extract_strided_slice %225 {offsets = [0, 24], sizes = [16, 8], strides = [1, 1]} : vector<16x32xf32> to vector<16x8xf32>
    %cst_124 = arith.constant dense<0.000000e+00> : vector<16x8xf32>
    %264 = tpu.matmul %262, %263, %cst_124 {dimension_numbers = #tpu.dot_dimension_numbers<[1], [0], [0], [1], [0, 0, 1, 1], [], []>} : vector<16x16xf32>, vector<16x8xf32>, vector<16x8xf32> -> vector<16x8xf32>
    %265 = vector.extract_strided_slice %227 {offsets = [24, 0], sizes = [8, 32], strides = [1, 1]} : vector<32x32xf32> to vector<8x32xf32>
    %cst_125 = arith.constant dense<0.000000e+00> : vector<16x32xf32>
    %266 = tpu.matmul %264, %265, %cst_125 {dimension_numbers = #tpu.dot_dimension_numbers<[1], [0], [0], [1], [0, 0, 1, 1], [], []>} : vector<16x8xf32>, vector<8x32xf32>, vector<16x32xf32> -> vector<16x32xf32>
    %267 = arith.addf %261, %266 : vector<16x32xf32>
    %268 = vector.broadcast %229 : vector<1x32xf32> to vector<16x32xf32>
    %269 = arith.addf %267, %268 : vector<16x32xf32>
    %270 = arith.addf %211, %269 : vector<16x32xf32>
    %271 = vector.extract_strided_slice %213 {offsets = [0, 0], sizes = [1, 32], strides = [1, 1]} : vector<3x32xf32> to vector<1x32xf32>
    %272 = vector.extract_strided_slice %215 {offsets = [0, 0], sizes = [1, 32], strides = [1, 1]} : vector<3x32xf32> to vector<1x32xf32>
    %cst_126 = arith.constant dense<0.000000e+00> : vector<16xf32>
    %273 = vector.multi_reduction <add>, %270, %cst_126 [1] : vector<16x32xf32> to vector<16xf32>
    %274 = vector.shape_cast %273 : vector<16xf32> to vector<16x1xf32>
    %cst_127 = arith.constant 3.200000e+01 : f32
    %275 = vector.broadcast %cst_127 : f32 to vector<16x1xf32>
    %276 = arith.divf %274, %275 : vector<16x1xf32>
    %277 = arith.mulf %270, %270 : vector<16x32xf32>
    %cst_128 = arith.constant dense<0.000000e+00> : vector<16xf32>
    %278 = vector.multi_reduction <add>, %277, %cst_128 [1] : vector<16x32xf32> to vector<16xf32>
    %279 = vector.shape_cast %278 : vector<16xf32> to vector<16x1xf32>
    %cst_129 = arith.constant 3.200000e+01 : f32
    %280 = vector.broadcast %cst_129 : f32 to vector<16x1xf32>
    %281 = arith.divf %279, %280 : vector<16x1xf32>
    %282 = vector.broadcast %276 : vector<16x1xf32> to vector<16x32xf32>
    %283 = arith.subf %270, %282 : vector<16x32xf32>
    %284 = arith.mulf %276, %276 : vector<16x1xf32>
    %285 = arith.subf %281, %284 : vector<16x1xf32>
    %cst_130 = arith.constant 9.99999974E-6 : f32
    %286 = vector.broadcast %cst_130 : f32 to vector<16x1xf32>
    %287 = arith.addf %285, %286 : vector<16x1xf32>
    %288 = math.rsqrt %287 : vector<16x1xf32>
    %289 = vector.broadcast %288 : vector<16x1xf32> to vector<16x32xf32>
    %290 = arith.mulf %283, %289 : vector<16x32xf32>
    %291 = vector.broadcast %271 : vector<1x32xf32> to vector<16x32xf32>
    %292 = arith.mulf %290, %291 : vector<16x32xf32>
    %293 = vector.broadcast %272 : vector<1x32xf32> to vector<16x32xf32>
    %294 = arith.addf %292, %293 : vector<16x32xf32>
    %c1_131 = arith.constant 1 : index
    %c0_132 = arith.constant 0 : index
    %c0_133 = arith.constant 0 : index
    %295 = vector.load %arg9[%c1_131, %c0_132, %c0_133] : memref<2x32x32xf32, #tpu.memory_space<vmem>>, vector<1x32x32xf32>
    %296 = vector.shape_cast %295 : vector<1x32x32xf32> to vector<32x32xf32>
    %cst_134 = arith.constant dense<0.000000e+00> : vector<16x32xf32>
    %297 = tpu.matmul %294, %296, %cst_134 {dimension_numbers = #tpu.dot_dimension_numbers<[1], [0], [0], [1], [0, 0, 1, 1], [], []>} : vector<16x32xf32>, vector<32x32xf32>, vector<16x32xf32> -> vector<16x32xf32>
    %c1_135 = arith.constant 1 : index
    %c0_136 = arith.constant 0 : index
    %c0_137 = arith.constant 0 : index
    %298 = vector.load %arg10[%c1_135, %c0_136, %c0_137] : memref<2x1x32xf32, #tpu.memory_space<vmem>>, vector<1x1x32xf32>
    %299 = vector.shape_cast %298 : vector<1x1x32xf32> to vector<1x32xf32>
    %300 = vector.broadcast %299 : vector<1x32xf32> to vector<16x32xf32>
    %301 = arith.addf %297, %300 : vector<16x32xf32>
    %302 = vector.extract_strided_slice %9 {offsets = [0, 64], sizes = [16, 32], strides = [1, 1]} : vector<16x128xf32> to vector<16x32xf32>
    %303 = vector.extract_strided_slice %9 {offsets = [0, 96], sizes = [16, 32], strides = [1, 1]} : vector<16x128xf32> to vector<16x32xf32>
    %c1_138 = arith.constant 1 : index
    %c0_139 = arith.constant 0 : index
    %c0_140 = arith.constant 0 : index
    %304 = vector.load %arg13[%c1_138, %c0_139, %c0_140] : memref<2x32x32xf32, #tpu.memory_space<vmem>>, vector<1x32x32xf32>
    %305 = vector.shape_cast %304 : vector<1x32x32xf32> to vector<32x32xf32>
    %c1_141 = arith.constant 1 : index
    %c0_142 = arith.constant 0 : index
    %c0_143 = arith.constant 0 : index
    %306 = vector.load %arg14[%c1_141, %c0_142, %c0_143] : memref<2x1x32xf32, #tpu.memory_space<vmem>>, vector<1x1x32xf32>
    %307 = vector.shape_cast %306 : vector<1x1x32xf32> to vector<1x32xf32>
    %308 = tpu.transpose %302, [1, 0] : vector<16x32xf32> -> vector<32x16xf32>
    %309 = tpu.concatenate %301, %301, %301, %301 in 0 : vector<16x32xf32>, vector<16x32xf32>, vector<16x32xf32>, vector<16x32xf32> -> vector<64x32xf32>
    %310 = arith.mulf %309, %4 : vector<64x32xf32>
    %cst_144 = arith.constant dense<0.000000e+00> : vector<64x16xf32>
    %311 = tpu.matmul %310, %308, %cst_144 {dimension_numbers = #tpu.dot_dimension_numbers<[1], [0], [0], [1], [0, 0, 1, 1], [], []>} : vector<64x32xf32>, vector<32x16xf32>, vector<64x16xf32> -> vector<64x16xf32>
    %312 = arith.addf %311, %3 : vector<64x16xf32>
    %cst_145 = arith.constant dense<0xFF800000> : vector<64xf32>
    %313 = vector.multi_reduction <maximumf>, %312, %cst_145 [1] : vector<64x16xf32> to vector<64xf32>
    %314 = vector.shape_cast %313 : vector<64xf32> to vector<64x1xf32>
    %315 = vector.broadcast %314 : vector<64x1xf32> to vector<64x16xf32>
    %316 = arith.subf %312, %315 : vector<64x16xf32>
    %317 = math.exp %316 : vector<64x16xf32>
    %cst_146 = arith.constant dense<0.000000e+00> : vector<64xf32>
    %318 = vector.multi_reduction <add>, %317, %cst_146 [1] : vector<64x16xf32> to vector<64xf32>
    %319 = vector.shape_cast %318 : vector<64xf32> to vector<64x1xf32>
    %320 = tpu.reciprocal %319 {approx = true} : vector<64x1xf32> -> vector<64x1xf32>
    %321 = vector.broadcast %320 : vector<64x1xf32> to vector<64x16xf32>
    %322 = arith.mulf %317, %321 : vector<64x16xf32>
    %323 = vector.extract_strided_slice %322 {offsets = [0, 0], sizes = [16, 16], strides = [1, 1]} : vector<64x16xf32> to vector<16x16xf32>
    %324 = vector.extract_strided_slice %303 {offsets = [0, 0], sizes = [16, 8], strides = [1, 1]} : vector<16x32xf32> to vector<16x8xf32>
    %cst_147 = arith.constant dense<0.000000e+00> : vector<16x8xf32>
    %325 = tpu.matmul %323, %324, %cst_147 {dimension_numbers = #tpu.dot_dimension_numbers<[1], [0], [0], [1], [0, 0, 1, 1], [], []>} : vector<16x16xf32>, vector<16x8xf32>, vector<16x8xf32> -> vector<16x8xf32>
    %326 = vector.extract_strided_slice %305 {offsets = [0, 0], sizes = [8, 32], strides = [1, 1]} : vector<32x32xf32> to vector<8x32xf32>
    %cst_148 = arith.constant dense<0.000000e+00> : vector<16x32xf32>
    %327 = tpu.matmul %325, %326, %cst_148 {dimension_numbers = #tpu.dot_dimension_numbers<[1], [0], [0], [1], [0, 0, 1, 1], [], []>} : vector<16x8xf32>, vector<8x32xf32>, vector<16x32xf32> -> vector<16x32xf32>
    %328 = vector.extract_strided_slice %322 {offsets = [16, 0], sizes = [16, 16], strides = [1, 1]} : vector<64x16xf32> to vector<16x16xf32>
    %329 = vector.extract_strided_slice %303 {offsets = [0, 8], sizes = [16, 8], strides = [1, 1]} : vector<16x32xf32> to vector<16x8xf32>
    %cst_149 = arith.constant dense<0.000000e+00> : vector<16x8xf32>
    %330 = tpu.matmul %328, %329, %cst_149 {dimension_numbers = #tpu.dot_dimension_numbers<[1], [0], [0], [1], [0, 0, 1, 1], [], []>} : vector<16x16xf32>, vector<16x8xf32>, vector<16x8xf32> -> vector<16x8xf32>
    %331 = vector.extract_strided_slice %305 {offsets = [8, 0], sizes = [8, 32], strides = [1, 1]} : vector<32x32xf32> to vector<8x32xf32>
    %cst_150 = arith.constant dense<0.000000e+00> : vector<16x32xf32>
    %332 = tpu.matmul %330, %331, %cst_150 {dimension_numbers = #tpu.dot_dimension_numbers<[1], [0], [0], [1], [0, 0, 1, 1], [], []>} : vector<16x8xf32>, vector<8x32xf32>, vector<16x32xf32> -> vector<16x32xf32>
    %333 = arith.addf %327, %332 : vector<16x32xf32>
    %334 = vector.extract_strided_slice %322 {offsets = [32, 0], sizes = [16, 16], strides = [1, 1]} : vector<64x16xf32> to vector<16x16xf32>
    %335 = vector.extract_strided_slice %303 {offsets = [0, 16], sizes = [16, 8], strides = [1, 1]} : vector<16x32xf32> to vector<16x8xf32>
    %cst_151 = arith.constant dense<0.000000e+00> : vector<16x8xf32>
    %336 = tpu.matmul %334, %335, %cst_151 {dimension_numbers = #tpu.dot_dimension_numbers<[1], [0], [0], [1], [0, 0, 1, 1], [], []>} : vector<16x16xf32>, vector<16x8xf32>, vector<16x8xf32> -> vector<16x8xf32>
    %337 = vector.extract_strided_slice %305 {offsets = [16, 0], sizes = [8, 32], strides = [1, 1]} : vector<32x32xf32> to vector<8x32xf32>
    %cst_152 = arith.constant dense<0.000000e+00> : vector<16x32xf32>
    %338 = tpu.matmul %336, %337, %cst_152 {dimension_numbers = #tpu.dot_dimension_numbers<[1], [0], [0], [1], [0, 0, 1, 1], [], []>} : vector<16x8xf32>, vector<8x32xf32>, vector<16x32xf32> -> vector<16x32xf32>
    %339 = arith.addf %333, %338 : vector<16x32xf32>
    %340 = vector.extract_strided_slice %322 {offsets = [48, 0], sizes = [16, 16], strides = [1, 1]} : vector<64x16xf32> to vector<16x16xf32>
    %341 = vector.extract_strided_slice %303 {offsets = [0, 24], sizes = [16, 8], strides = [1, 1]} : vector<16x32xf32> to vector<16x8xf32>
    %cst_153 = arith.constant dense<0.000000e+00> : vector<16x8xf32>
    %342 = tpu.matmul %340, %341, %cst_153 {dimension_numbers = #tpu.dot_dimension_numbers<[1], [0], [0], [1], [0, 0, 1, 1], [], []>} : vector<16x16xf32>, vector<16x8xf32>, vector<16x8xf32> -> vector<16x8xf32>
    %343 = vector.extract_strided_slice %305 {offsets = [24, 0], sizes = [8, 32], strides = [1, 1]} : vector<32x32xf32> to vector<8x32xf32>
    %cst_154 = arith.constant dense<0.000000e+00> : vector<16x32xf32>
    %344 = tpu.matmul %342, %343, %cst_154 {dimension_numbers = #tpu.dot_dimension_numbers<[1], [0], [0], [1], [0, 0, 1, 1], [], []>} : vector<16x8xf32>, vector<8x32xf32>, vector<16x32xf32> -> vector<16x32xf32>
    %345 = arith.addf %339, %344 : vector<16x32xf32>
    %346 = vector.broadcast %307 : vector<1x32xf32> to vector<16x32xf32>
    %347 = arith.addf %345, %346 : vector<16x32xf32>
    %348 = arith.addf %294, %347 : vector<16x32xf32>
    %349 = vector.extract_strided_slice %213 {offsets = [1, 0], sizes = [1, 32], strides = [1, 1]} : vector<3x32xf32> to vector<1x32xf32>
    %350 = vector.extract_strided_slice %215 {offsets = [1, 0], sizes = [1, 32], strides = [1, 1]} : vector<3x32xf32> to vector<1x32xf32>
    %cst_155 = arith.constant dense<0.000000e+00> : vector<16xf32>
    %351 = vector.multi_reduction <add>, %348, %cst_155 [1] : vector<16x32xf32> to vector<16xf32>
    %352 = vector.shape_cast %351 : vector<16xf32> to vector<16x1xf32>
    %cst_156 = arith.constant 3.200000e+01 : f32
    %353 = vector.broadcast %cst_156 : f32 to vector<16x1xf32>
    %354 = arith.divf %352, %353 : vector<16x1xf32>
    %355 = arith.mulf %348, %348 : vector<16x32xf32>
    %cst_157 = arith.constant dense<0.000000e+00> : vector<16xf32>
    %356 = vector.multi_reduction <add>, %355, %cst_157 [1] : vector<16x32xf32> to vector<16xf32>
    %357 = vector.shape_cast %356 : vector<16xf32> to vector<16x1xf32>
    %cst_158 = arith.constant 3.200000e+01 : f32
    %358 = vector.broadcast %cst_158 : f32 to vector<16x1xf32>
    %359 = arith.divf %357, %358 : vector<16x1xf32>
    %360 = vector.broadcast %354 : vector<16x1xf32> to vector<16x32xf32>
    %361 = arith.subf %348, %360 : vector<16x32xf32>
    %362 = arith.mulf %354, %354 : vector<16x1xf32>
    %363 = arith.subf %359, %362 : vector<16x1xf32>
    %cst_159 = arith.constant 9.99999974E-6 : f32
    %364 = vector.broadcast %cst_159 : f32 to vector<16x1xf32>
    %365 = arith.addf %363, %364 : vector<16x1xf32>
    %366 = math.rsqrt %365 : vector<16x1xf32>
    %367 = vector.broadcast %366 : vector<16x1xf32> to vector<16x32xf32>
    %368 = arith.mulf %361, %367 : vector<16x32xf32>
    %369 = vector.broadcast %349 : vector<1x32xf32> to vector<16x32xf32>
    %370 = arith.mulf %368, %369 : vector<16x32xf32>
    %371 = vector.broadcast %350 : vector<1x32xf32> to vector<16x32xf32>
    %372 = arith.addf %370, %371 : vector<16x32xf32>
    %c1_160 = arith.constant 1 : index
    %c0_161 = arith.constant 0 : index
    %c0_162 = arith.constant 0 : index
    %373 = vector.load %arg15[%c1_160, %c0_161, %c0_162] : memref<2x32x64xf32, #tpu.memory_space<vmem>>, vector<1x32x64xf32>
    %374 = vector.shape_cast %373 : vector<1x32x64xf32> to vector<32x64xf32>
    %cst_163 = arith.constant dense<0.000000e+00> : vector<16x64xf32>
    %375 = tpu.matmul %372, %374, %cst_163 {dimension_numbers = #tpu.dot_dimension_numbers<[1], [0], [0], [1], [0, 0, 1, 1], [], []>} : vector<16x32xf32>, vector<32x64xf32>, vector<16x64xf32> -> vector<16x64xf32>
    %c1_164 = arith.constant 1 : index
    %c0_165 = arith.constant 0 : index
    %c0_166 = arith.constant 0 : index
    %376 = vector.load %arg16[%c1_164, %c0_165, %c0_166] : memref<2x1x64xf32, #tpu.memory_space<vmem>>, vector<1x1x64xf32>
    %377 = vector.shape_cast %376 : vector<1x1x64xf32> to vector<1x64xf32>
    %378 = vector.broadcast %377 : vector<1x64xf32> to vector<16x64xf32>
    %379 = arith.addf %375, %378 : vector<16x64xf32>
    %cst_167 = arith.constant 0.000000e+00 : f32
    %380 = vector.broadcast %cst_167 : f32 to vector<16x64xf32>
    %381 = arith.maximumf %379, %380 : vector<16x64xf32>
    %c1_168 = arith.constant 1 : index
    %c0_169 = arith.constant 0 : index
    %c0_170 = arith.constant 0 : index
    %382 = vector.load %arg17[%c1_168, %c0_169, %c0_170] : memref<2x64x32xf32, #tpu.memory_space<vmem>>, vector<1x64x32xf32>
    %383 = vector.shape_cast %382 : vector<1x64x32xf32> to vector<64x32xf32>
    %cst_171 = arith.constant dense<0.000000e+00> : vector<16x32xf32>
    %384 = tpu.matmul %381, %383, %cst_171 {dimension_numbers = #tpu.dot_dimension_numbers<[1], [0], [0], [1], [0, 0, 1, 1], [], []>} : vector<16x64xf32>, vector<64x32xf32>, vector<16x32xf32> -> vector<16x32xf32>
    %c1_172 = arith.constant 1 : index
    %c0_173 = arith.constant 0 : index
    %c0_174 = arith.constant 0 : index
    %385 = vector.load %arg18[%c1_172, %c0_173, %c0_174] : memref<2x1x32xf32, #tpu.memory_space<vmem>>, vector<1x1x32xf32>
    %386 = vector.shape_cast %385 : vector<1x1x32xf32> to vector<1x32xf32>
    %387 = vector.broadcast %386 : vector<1x32xf32> to vector<16x32xf32>
    %388 = arith.addf %384, %387 : vector<16x32xf32>
    %389 = arith.addf %372, %388 : vector<16x32xf32>
    %390 = vector.extract_strided_slice %213 {offsets = [2, 0], sizes = [1, 32], strides = [1, 1]} : vector<3x32xf32> to vector<1x32xf32>
    %391 = vector.extract_strided_slice %215 {offsets = [2, 0], sizes = [1, 32], strides = [1, 1]} : vector<3x32xf32> to vector<1x32xf32>
    %cst_175 = arith.constant dense<0.000000e+00> : vector<16xf32>
    %392 = vector.multi_reduction <add>, %389, %cst_175 [1] : vector<16x32xf32> to vector<16xf32>
    %393 = vector.shape_cast %392 : vector<16xf32> to vector<16x1xf32>
    %cst_176 = arith.constant 3.200000e+01 : f32
    %394 = vector.broadcast %cst_176 : f32 to vector<16x1xf32>
    %395 = arith.divf %393, %394 : vector<16x1xf32>
    %396 = arith.mulf %389, %389 : vector<16x32xf32>
    %cst_177 = arith.constant dense<0.000000e+00> : vector<16xf32>
    %397 = vector.multi_reduction <add>, %396, %cst_177 [1] : vector<16x32xf32> to vector<16xf32>
    %398 = vector.shape_cast %397 : vector<16xf32> to vector<16x1xf32>
    %cst_178 = arith.constant 3.200000e+01 : f32
    %399 = vector.broadcast %cst_178 : f32 to vector<16x1xf32>
    %400 = arith.divf %398, %399 : vector<16x1xf32>
    %401 = vector.broadcast %395 : vector<16x1xf32> to vector<16x32xf32>
    %402 = arith.subf %389, %401 : vector<16x32xf32>
    %403 = arith.mulf %395, %395 : vector<16x1xf32>
    %404 = arith.subf %400, %403 : vector<16x1xf32>
    %cst_179 = arith.constant 9.99999974E-6 : f32
    %405 = vector.broadcast %cst_179 : f32 to vector<16x1xf32>
    %406 = arith.addf %404, %405 : vector<16x1xf32>
    %407 = math.rsqrt %406 : vector<16x1xf32>
    %408 = vector.broadcast %407 : vector<16x1xf32> to vector<16x32xf32>
    %409 = arith.mulf %402, %408 : vector<16x32xf32>
    %410 = vector.broadcast %390 : vector<1x32xf32> to vector<16x32xf32>
    %411 = arith.mulf %409, %410 : vector<16x32xf32>
    %412 = vector.broadcast %391 : vector<1x32xf32> to vector<16x32xf32>
    %413 = arith.addf %411, %412 : vector<16x32xf32>
    %c0_180 = arith.constant 0 : index
    %c0_181 = arith.constant 0 : index
    %414 = vector.load %arg21[%c0_180, %c0_181] : memref<32x128xf32, #tpu.memory_space<vmem>>, vector<32x128xf32>
    %cst_182 = arith.constant dense<0.000000e+00> : vector<16x128xf32>
    %415 = tpu.matmul %413, %414, %cst_182 {dimension_numbers = #tpu.dot_dimension_numbers<[1], [0], [0], [1], [0, 0, 1, 1], [], []>} : vector<16x32xf32>, vector<32x128xf32>, vector<16x128xf32> -> vector<16x128xf32>
    %c0_183 = arith.constant 0 : index
    %c0_184 = arith.constant 0 : index
    %416 = vector.load %arg22[%c0_183, %c0_184] : memref<1x128xf32, #tpu.memory_space<vmem>>, vector<1x128xf32>
    %417 = vector.broadcast %416 : vector<1x128xf32> to vector<16x128xf32>
    %418 = arith.addf %415, %417 : vector<16x128xf32>
    %c0_185 = arith.constant 0 : index
    %c0_186 = arith.constant 0 : index
    %419 = vector.load %arg23[%c0_185, %c0_186] : memref<16x128xf32, #tpu.memory_space<vmem>>, vector<16x128xf32>
    tpu.vector_store %arg23[%c0_185, %c0_186], %418 {strides = array<i32>} : memref<16x128xf32, #tpu.memory_space<vmem>>, vector<16x128xf32>,
    return
  }
}

</mosaic_0001>

<llo_original>
// kernel: decoder_forward.1
$region0: #{decoder_forward.1}
  #allocation0 [shape = 'u32[]', space=smem, size = 0x4, offset = 0x4, fixed_abs, tag = 'smem constant byte address 0x4 - core index']
  #allocation1 [shape = 'u32[72,128]{1,0:T(1,128)}', space=vmem, size = 0x9000, scoped, tag = 'internal scratch']
  %s0 = inlined_call_operand.vmem [shape: f32[16,32], index: 0, kind: input, shape index: {}]
  %s1 = inlined_call_operand.vmem [shape: f32[16,32], index: 1, kind: input, shape index: {}]
  %s2 = inlined_call_operand.vmem [shape: f32[64,16], index: 2, kind: input, shape index: {}]
  %s3 = inlined_call_operand.vmem [shape: f32[64,16], index: 3, kind: input, shape index: {}]
  %s4 = inlined_call_operand.vmem [shape: f32[64,32], index: 4, kind: input, shape index: {}]
  %s5 = inlined_call_operand.vmem [shape: f32[2,32,96], index: 5, kind: input, shape index: {}]
  %s6 = inlined_call_operand.vmem [shape: f32[2,1,96], index: 6, kind: input, shape index: {}]
  %s7 = inlined_call_operand.vmem [shape: f32[2,32,32], index: 7, kind: input, shape index: {}]
  %s8 = inlined_call_operand.vmem [shape: f32[2,1,32], index: 8, kind: input, shape index: {}]
  %s9 = inlined_call_operand.vmem [shape: f32[2,32,32], index: 9, kind: input, shape index: {}]
  %s10 = inlined_call_operand.vmem [shape: f32[2,1,32], index: 10, kind: input, shape index: {}]
  %s11 = inlined_call_operand.vmem [shape: f32[32,128], index: 11, kind: input, shape index: {}]
  %s12 = inlined_call_operand.vmem [shape: f32[1,128], index: 12, kind: input, shape index: {}]
  %s13 = inlined_call_operand.vmem [shape: f32[2,32,32], index: 13, kind: input, shape index: {}]
  %s14 = inlined_call_operand.vmem [shape: f32[2,1,32], index: 14, kind: input, shape index: {}]
  %s15 = inlined_call_operand.vmem [shape: f32[2,32,64], index: 15, kind: input, shape index: {}]
  %s16 = inlined_call_operand.vmem [shape: f32[2,1,64], index: 16, kind: input, shape index: {}]
  %s17 = inlined_call_operand.vmem [shape: f32[2,64,32], index: 17, kind: input, shape index: {}]
  %s18 = inlined_call_operand.vmem [shape: f32[2,1,32], index: 18, kind: input, shape index: {}]
  %s19 = inlined_call_operand.vmem [shape: f32[2,3,32], index: 19, kind: input, shape index: {}]
  %s20 = inlined_call_operand.vmem [shape: f32[2,3,32], index: 20, kind: input, shape index: {}]
  %s21 = inlined_call_operand.vmem [shape: f32[32,128], index: 21, kind: input, shape index: {}]
  %s22 = inlined_call_operand.vmem [shape: f32[1,128], index: 22, kind: input, shape index: {}]
  %s23 = inlined_call_operand.vmem [shape: f32[16,128], index: 23, kind: output, shape index: {}]
  %s24 = sld [smem:[#allocation0]]
  $region102: #{decoder_forward.1} parent=0
    _
  %s26 = ssub.s32 1, %s24
  %s27 = scalar_select 0, %s26, %s24
  // Predicated region
  $region2: #{decoder_forward.1} parent=0 // pred_check
    _
  $region3: #{decoder_forward.1} parent=0 // pred_check_branch
    %29 = sbr.rel (0) target = $region5
  $region4: #{decoder_forward.1} parent=0 // pred_region
    _
  $region5: #{decoder_forward.1} parent=0 // pred_fallthru
    _
  // Predicated region
  $region6: #{decoder_forward.1} parent=0 // pred_check
    _
  $region7: #{decoder_forward.1} parent=0 // pred_check_branch
    %31 = sbr.rel (0) target = $region9
  $region8: #{decoder_forward.1} parent=0 // pred_region
    _
  $region9: #{decoder_forward.1} parent=0 // pred_fallthru
    _
  // Predicated region
  $region10: #{decoder_forward.1} parent=0 // pred_check
    _
  $region11: #{decoder_forward.1} parent=0 // pred_check_branch
    %33 = sbr.rel (0) target = $region13
  $region12: #{decoder_forward.1} parent=0 // pred_region
    _
  $region13: #{decoder_forward.1} parent=0 // pred_fallthru
    _
  // Predicated region
  $region14: #{decoder_forward.1} parent=0 // pred_check
    _
  $region15: #{decoder_forward.1} parent=0 // pred_check_branch
    %35 = sbr.rel (0) target = $region17
  $region16: #{decoder_forward.1} parent=0 // pred_region
    _
  $region17: #{decoder_forward.1} parent=0 // pred_fallthru
    _
  // Predicated region
  $region18: #{decoder_forward.1} parent=0 // pred_check
    _
  $region19: #{decoder_forward.1} parent=0 // pred_check_branch
    %37 = sbr.rel (0) target = $region21
  $region20: #{decoder_forward.1} parent=0 // pred_region
    _
  $region21: #{decoder_forward.1} parent=0 // pred_fallthru
    _
  // Predicated region
  $region22: #{decoder_forward.1} parent=0 // pred_check
    _
  $region23: #{decoder_forward.1} parent=0 // pred_check_branch
    %39 = sbr.rel (0) target = $region25
  $region24: #{decoder_forward.1} parent=0 // pred_region
    _
  $region25: #{decoder_forward.1} parent=0 // pred_fallthru
    _
  // Predicated region
  $region26: #{decoder_forward.1} parent=0 // pred_check
    _
  $region27: #{decoder_forward.1} parent=0 // pred_check_branch
    %41 = sbr.rel (0) target = $region29
  $region28: #{decoder_forward.1} parent=0 // pred_region
    _
  $region29: #{decoder_forward.1} parent=0 // pred_fallthru
    _
  // Predicated region
  $region30: #{decoder_forward.1} parent=0 // pred_check
    _
  $region31: #{decoder_forward.1} parent=0 // pred_check_branch
    %43 = sbr.rel (0) target = $region33
  $region32: #{decoder_forward.1} parent=0 // pred_region
    _
  $region33: #{decoder_forward.1} parent=0 // pred_fallthru
    _
  // Predicated region
  $region34: #{decoder_forward.1} parent=0 // pred_check
    _
  $region35: #{decoder_forward.1} parent=0 // pred_check_branch
    %45 = sbr.rel (0) target = $region37
  $region36: #{decoder_forward.1} parent=0 // pred_region
    _
  $region37: #{decoder_forward.1} parent=0 // pred_fallthru
    _
  // Predicated region
  $region38: #{decoder_forward.1} parent=0 // pred_check
    _
  $region39: #{decoder_forward.1} parent=0 // pred_check_branch
    %47 = sbr.rel (0) target = $region41
  $region40: #{decoder_forward.1} parent=0 // pred_region
    _
  $region41: #{decoder_forward.1} parent=0 // pred_fallthru
    _
  // Predicated region
  $region42: #{decoder_forward.1} parent=0 // pred_check
    _
  $region43: #{decoder_forward.1} parent=0 // pred_check_branch
    %49 = sbr.rel (0) target = $region45
  $region44: #{decoder_forward.1} parent=0 // pred_region
    _
  $region45: #{decoder_forward.1} parent=0 // pred_fallthru
    _
  // Predicated region
  $region46: #{decoder_forward.1} parent=0 // pred_check
    _
  $region47: #{decoder_forward.1} parent=0 // pred_check_branch
    %51 = sbr.rel (0) target = $region49
  $region48: #{decoder_forward.1} parent=0 // pred_region
    _
  $region49: #{decoder_forward.1} parent=0 // pred_fallthru
    _
  // Predicated region
  $region50: #{decoder_forward.1} parent=0 // pred_check
    _
  $region51: #{decoder_forward.1} parent=0 // pred_check_branch
    %53 = sbr.rel (0) target = $region53
  $region52: #{decoder_forward.1} parent=0 // pred_region
    _
  $region53: #{decoder_forward.1} parent=0 // pred_fallthru
    _
  // Predicated region
  $region54: #{decoder_forward.1} parent=0 // pred_check
    _
  $region55: #{decoder_forward.1} parent=0 // pred_check_branch
    %55 = sbr.rel (0) target = $region57
  $region56: #{decoder_forward.1} parent=0 // pred_region
    _
  $region57: #{decoder_forward.1} parent=0 // pred_fallthru
    _
  // Predicated region
  $region58: #{decoder_forward.1} parent=0 // pred_check
    _
  $region59: #{decoder_forward.1} parent=0 // pred_check_branch
    %57 = sbr.rel (0) target = $region61
  $region60: #{decoder_forward.1} parent=0 // pred_region
    _
  $region61: #{decoder_forward.1} parent=0 // pred_fallthru
    _
  // Predicated region
  $region62: #{decoder_forward.1} parent=0 // pred_check
    _
  $region63: #{decoder_forward.1} parent=0 // pred_check_branch
    %59 = sbr.rel (0) target = $region65
  $region64: #{decoder_forward.1} parent=0 // pred_region
    _
  $region65: #{decoder_forward.1} parent=0 // pred_fallthru
    _
  // Predicated region
  $region66: #{decoder_forward.1} parent=0 // pred_check
    _
  $region67: #{decoder_forward.1} parent=0 // pred_check_branch
    %61 = sbr.rel (0) target = $region69
  $region68: #{decoder_forward.1} parent=0 // pred_region
    _
  $region69: #{decoder_forward.1} parent=0 // pred_fallthru
    _
  // Predicated region
  $region70: #{decoder_forward.1} parent=0 // pred_check
    _
  $region71: #{decoder_forward.1} parent=0 // pred_check_branch
    %63 = sbr.rel (0) target = $region73
  $region72: #{decoder_forward.1} parent=0 // pred_region
    _
  $region73: #{decoder_forward.1} parent=0 // pred_fallthru
    _
  // Predicated region
  $region74: #{decoder_forward.1} parent=0 // pred_check
    _
  $region75: #{decoder_forward.1} parent=0 // pred_check_branch
    %65 = sbr.rel (0) target = $region77
  $region76: #{decoder_forward.1} parent=0 // pred_region
    _
  $region77: #{decoder_forward.1} parent=0 // pred_fallthru
    _
  // Predicated region
  $region78: #{decoder_forward.1} parent=0 // pred_check
    _
  $region79: #{decoder_forward.1} parent=0 // pred_check_branch
    %67 = sbr.rel (0) target = $region81
  $region80: #{decoder_forward.1} parent=0 // pred_region
    _
  $region81: #{decoder_forward.1} parent=0 // pred_fallthru
    _
  // Predicated region
  $region82: #{decoder_forward.1} parent=0 // pred_check
    _
  $region83: #{decoder_forward.1} parent=0 // pred_check_branch
    %69 = sbr.rel (0) target = $region85
  $region84: #{decoder_forward.1} parent=0 // pred_region
    _
  $region85: #{decoder_forward.1} parent=0 // pred_fallthru
    _
  // Predicated region
  $region86: #{decoder_forward.1} parent=0 // pred_check
    _
  $region87: #{decoder_forward.1} parent=0 // pred_check_branch
    %71 = sbr.rel (0) target = $region89
  $region88: #{decoder_forward.1} parent=0 // pred_region
    _
  $region89: #{decoder_forward.1} parent=0 // pred_fallthru
    _
  // Predicated region
  $region90: #{decoder_forward.1} parent=0 // pred_check
    _
  $region91: #{decoder_forward.1} parent=0 // pred_check_branch
    %73 = sbr.rel (0) target = $region93
  $region92: #{decoder_forward.1} parent=0 // pred_region
    _
  $region93: #{decoder_forward.1} parent=0 // pred_fallthru
    _
  %v74 = vld [vmem:[%s0] sm:$0xff]
  %v75 = vld [vmem:[%s0 + $0x8] sm:$0xff]
  %v76 = vld [vmem:[%s1] sm:$0xff]
  %v77 = vld [vmem:[%s1 + $0x8] sm:$0xff]
  %v78 = vld [vmem:[%s2] sm:$0xff]
  %v79 = vld [vmem:[%s2 + $0x8] sm:$0xff]
  %v80 = vld [vmem:[%s2 + $0x10] sm:$0xff]
  %v81 = vld [vmem:[%s2 + $0x18] sm:$0xff]
  %v82 = vld [vmem:[%s2 + $0x20] sm:$0xff]
  %v83 = vld [vmem:[%s2 + $0x28] sm:$0xff]
  %v84 = vld [vmem:[%s2 + $0x30] sm:$0xff]
  %v85 = vld [vmem:[%s2 + $0x38] sm:$0xff]
  %v86 = vld [vmem:[%s3] sm:$0xff]
  %v87 = vld [vmem:[%s3 + $0x8] sm:$0xff]
  %v88 = vld [vmem:[%s3 + $0x10] sm:$0xff]
  %v89 = vld [vmem:[%s3 + $0x18] sm:$0xff]
  %v90 = vld [vmem:[%s3 + $0x20] sm:$0xff]
  %v91 = vld [vmem:[%s3 + $0x28] sm:$0xff]
  %v92 = vld [vmem:[%s3 + $0x30] sm:$0xff]
  %v93 = vld [vmem:[%s3 + $0x38] sm:$0xff]
  %v94 = vld [vmem:[%s4] sm:$0xff]
  %v95 = vld [vmem:[%s4 + $0x8] sm:$0xff]
  %v96 = vld [vmem:[%s4 + $0x10] sm:$0xff]
  %v97 = vld [vmem:[%s4 + $0x18] sm:$0xff]
  %v98 = vld [vmem:[%s4 + $0x20] sm:$0xff]
  %v99 = vld [vmem:[%s4 + $0x28] sm:$0xff]
  %v100 = vld [vmem:[%s4 + $0x30] sm:$0xff]
  %v101 = vld [vmem:[%s4 + $0x38] sm:$0xff]
  %v102 = vld [vmem:[%s11] sm:$0xff]
  %v103 = vld [vmem:[%s11 + $0x8] sm:$0xff]
  %v104 = vld [vmem:[%s11 + $0x10] sm:$0xff]
  %v105 = vld [vmem:[%s11 + $0x18] sm:$0xff]
  %v106 = vld [vmem:[%s12] sm:$0x1]
  %v108 = vperm.slane %v106, 0
  %vm110 = vcmask 261120
  %v112 = vsel %vm110, %v76, 0
  %v115 = vsel %vm110, %v77, 0
  %117 = vmatpush.msra.mxu0 0.0
  %118 = vmatpush.msra.mxu0 0.0
  %119 = vmatpush.msra.mxu0 0.0
  %120 = vmatpush.msra.mxu0 0.0
  %121 = vmatpush.msra.mxu0 0.0
  %122 = vmatpush.msra.mxu0 0.0
  %123 = vmatpush.msra.mxu0 0.0
  %124 = vmatpush.msra.mxu0 0.0
  %125 = vmatpush.msra.mxu0 0.0
  %126 = vmatpush.msra.mxu0 0.0
  %127 = vmatpush.msra.mxu0 0.0
  %128 = vmatpush.msra.mxu0 0.0
  %129 = vmatpush.msra.mxu0 %v105
  %130 = vmatpush.msra.mxu0 %v104
  %131 = vmatpush.msra.mxu0 %v103
  %132 = vmatpush.msra.mxu0 %v102
  %133 = vmatmul.f32.gmra.mxu0 %v112
  %v134 = vpop.f32.mrf.mxu0
  %v135 = vadd.f32 %v108, %v134
  %136 = vmatmul.f32.gmra.mxu0 %v115
  %v137 = vpop.f32.mrf.mxu0
  %v138 = vadd.f32 %v108, %v137
  %139 = vdwg.mxu0
  %v140 = vld [vmem:[%s19] sm:$0x7]
  %v141 = vld [vmem:[%s20] sm:$0x7]
  %v142 = vld [vmem:[%s5] sm:$0xff]
  %v143 = vld [vmem:[%s5 + $0x8] sm:$0xff]
  %v144 = vld [vmem:[%s5 + $0x10] sm:$0xff]
  %v145 = vld [vmem:[%s5 + $0x18] sm:$0xff]
  %v146 = vld [vmem:[%s6] sm:$0x1]
  %v148 = vperm.slane %v146, 0
  %v151 = vsel %vm110, %v74, 0
  %v154 = vsel %vm110, %v75, 0
  %156 = vmatpush.msra.mxu0 0.0
  %157 = vmatpush.msra.mxu0 0.0
  %158 = vmatpush.msra.mxu0 0.0
  %159 = vmatpush.msra.mxu0 0.0
  %160 = vmatpush.msra.mxu0 0.0
  %161 = vmatpush.msra.mxu0 0.0
  %162 = vmatpush.msra.mxu0 0.0
  %163 = vmatpush.msra.mxu0 0.0
  %164 = vmatpush.msra.mxu0 0.0
  %165 = vmatpush.msra.mxu0 0.0
  %166 = vmatpush.msra.mxu0 0.0
  %167 = vmatpush.msra.mxu0 0.0
  %168 = vmatpush.msra.mxu0 %v145
  %169 = vmatpush.msra.mxu0 %v144
  %170 = vmatpush.msra.mxu0 %v143
  %171 = vmatpush.msra.mxu0 %v142
  %172 = vmatmul.f32.gmra.mxu0 %v151
  %v173 = vpop.f32.mrf.mxu0
  %v174 = vadd.f32 %v148, %v173
  %175 = vmatmul.f32.gmra.mxu0 %v154
  %v176 = vpop.f32.mrf.mxu0
  %v177 = vadd.f32 %v148, %v176
  %178 = vdwg.mxu0
  %v179 = vld [vmem:[%s7] sm:$0xff]
  %v180 = vld [vmem:[%s7 + $0x8] sm:$0xff]
  %v181 = vld [vmem:[%s7 + $0x10] sm:$0xff]
  %v182 = vld [vmem:[%s7 + $0x18] sm:$0xff]
  %v183 = vld [vmem:[%s8] sm:$0x1]
  %v184 = vmul.f32 %v174, %v94
  %v185 = vmul.f32 %v177, %v95
  %v186 = vmul.f32 %v174, %v96
  %v187 = vmul.f32 %v177, %v97
  %v188 = vmul.f32 %v174, %v98
  %v189 = vmul.f32 %v177, %v99
  %v190 = vmul.f32 %v174, %v100
  %v191 = vmul.f32 %v177, %v101
  %194 = vrot.lane.b32.xlu0 %v174, 96
  %v195 = vpop.permute.xlu0 %194
  %196 = vrot.lane.b32.xlu0 %v177, 96
  %v197 = vpop.permute.xlu0 %196
  %v199 = vsel %vm110, %v184, 0
  %v202 = vsel %vm110, %v185, 0
  %v205 = vsel %vm110, %v186, 0
  %v208 = vsel %vm110, %v187, 0
  %v211 = vsel %vm110, %v188, 0
  %v214 = vsel %vm110, %v189, 0
  %v217 = vsel %vm110, %v190, 0
  %v220 = vsel %vm110, %v191, 0
  %v222 = vsel %vm110, %v195, 0
  %v224 = vsel %vm110, %v197, 0
  %226 = vmatpush.xpose.msra.mxu0 0.0
  %227 = vmatpush.xpose.msra.mxu0 0.0
  %228 = vmatpush.xpose.msra.mxu0 0.0
  %229 = vmatpush.xpose.msra.mxu0 0.0
  %230 = vmatpush.xpose.msra.mxu0 0.0
  %231 = vmatpush.xpose.msra.mxu0 0.0
  %232 = vmatpush.xpose.msra.mxu0 0.0
  %233 = vmatpush.xpose.msra.mxu0 0.0
  %234 = vmatpush.xpose.msra.mxu0 0.0
  %235 = vmatpush.xpose.msra.mxu0 0.0
  %236 = vmatpush.xpose.msra.mxu0 0.0
  %237 = vmatpush.xpose.msra.mxu0 0.0
  %238 = vmatpush.xpose.msra.mxu0 0.0
  %239 = vmatpush.xpose.msra.mxu0 0.0
  %240 = vmatpush.xpose.msra.mxu0 %v224
  %241 = vmatpush.xpose.msra.mxu0 %v222
  %242 = vmatmul.f32.gmra.mxu0 %v199
  %v243 = vpop.f32.mrf.mxu0
  %v244 = vadd.f32 %v78, %v243
  %245 = vmatmul.f32.gmra.mxu0 %v202
  %v246 = vpop.f32.mrf.mxu0
  %v247 = vadd.f32 %v79, %v246
  %248 = vmatmul.f32.gmra.mxu0 %v205
  %v249 = vpop.f32.mrf.mxu0
  %v250 = vadd.f32 %v80, %v249
  %251 = vmatmul.f32.gmra.mxu0 %v208
  %v252 = vpop.f32.mrf.mxu0
  %v253 = vadd.f32 %v81, %v252
  %254 = vmatmul.f32.gmra.mxu0 %v211
  %v255 = vpop.f32.mrf.mxu0
  %v256 = vadd.f32 %v82, %v255
  %257 = vmatmul.f32.gmra.mxu0 %v214
  %v258 = vpop.f32.mrf.mxu0
  %v259 = vadd.f32 %v83, %v258
  %260 = vmatmul.f32.gmra.mxu0 %v217
  %v261 = vpop.f32.mrf.mxu0
  %v262 = vadd.f32 %v84, %v261
  %263 = vmatmul.f32.gmra.mxu0 %v220
  %v264 = vpop.f32.mrf.mxu0
  %v265 = vadd.f32 %v85, %v264
  %266 = vdwg.mxu0
  %vm267 = vcmask 130048
  %v268 = vsel %vm267, %v244, -inf
  %269 = vmax.xlane.f32.xlu0 %v268
  %v270 = vpop.xlane.xlu0 %269
  %v271 = vsel %vm267, %v247, -inf
  %272 = vmax.xlane.f32.xlu0 %v271
  %v273 = vpop.xlane.xlu0 %272
  %v274 = vsel %vm267, %v250, -inf
  %275 = vmax.xlane.f32.xlu0 %v274
  %v276 = vpop.xlane.xlu0 %275
  %v277 = vsel %vm267, %v253, -inf
  %278 = vmax.xlane.f32.xlu0 %v277
  %v279 = vpop.xlane.xlu0 %278
  %v280 = vsel %vm267, %v256, -inf
  %281 = vmax.xlane.f32.xlu0 %v280
  %v282 = vpop.xlane.xlu0 %281
  %v283 = vsel %vm267, %v259, -inf
  %284 = vmax.xlane.f32.xlu0 %v283
  %v285 = vpop.xlane.xlu0 %284
  %v286 = vsel %vm267, %v262, -inf
  %287 = vmax.xlane.f32.xlu0 %v286
  %v288 = vpop.xlane.xlu0 %287
  %v289 = vsel %vm267, %v265, -inf
  %290 = vmax.xlane.f32.xlu0 %v289
  %v291 = vpop.xlane.xlu0 %290
  %v292 = vsub.f32 %v244, %v270
  %v293 = vsub.f32 %v247, %v273
  %v294 = vsub.f32 %v250, %v276
  %v295 = vsub.f32 %v253, %v279
  %v296 = vsub.f32 %v256, %v282
  %v297 = vsub.f32 %v259, %v285
  %v298 = vsub.f32 %v262, %v288
  %v299 = vsub.f32 %v265, %v291
  %v300 = vmul.f32 %v292, 1.442695
  %v301 = vpow.pop %v300
  %v302 = vmul.f32 %v293, 1.442695
  %v303 = vpow.pop %v302
  %v304 = vmul.f32 %v294, 1.442695
  %v305 = vpow.pop %v304
  %v306 = vmul.f32 %v295, 1.442695
  %v307 = vpow.pop %v306
  %v308 = vmul.f32 %v296, 1.442695
  %v309 = vpow.pop %v308
  %v310 = vmul.f32 %v297, 1.442695
  %v311 = vpow.pop %v310
  %v312 = vmul.f32 %v298, 1.442695
  %v313 = vpow.pop %v312
  %v314 = vmul.f32 %v299, 1.442695
  %v315 = vpow.pop %v314
  %v316 = vsel %vm267, %v301, 0.0
  %317 = vadd.xlane.f32.xlu0 %v316
  %v318 = vpop.xlane.xlu0 %317
  %v319 = vsel %vm267, %v303, 0.0
  %320 = vadd.xlane.f32.xlu0 %v319
  %v321 = vpop.xlane.xlu0 %320
  %v322 = vsel %vm267, %v305, 0.0
  %323 = vadd.xlane.f32.xlu0 %v322
  %v324 = vpop.xlane.xlu0 %323
  %v325 = vsel %vm267, %v307, 0.0
  %326 = vadd.xlane.f32.xlu0 %v325
  %v327 = vpop.xlane.xlu0 %326
  %v328 = vsel %vm267, %v309, 0.0
  %329 = vadd.xlane.f32.xlu0 %v328
  %v330 = vpop.xlane.xlu0 %329
  %v331 = vsel %vm267, %v311, 0.0
  %332 = vadd.xlane.f32.xlu0 %v331
  %v333 = vpop.xlane.xlu0 %332
  %v334 = vsel %vm267, %v313, 0.0
  %335 = vadd.xlane.f32.xlu0 %v334
  %v336 = vpop.xlane.xlu0 %335
  %v337 = vsel %vm267, %v315, 0.0
  %338 = vadd.xlane.f32.xlu0 %v337
  %v339 = vpop.xlane.xlu0 %338
  %v340 = vrcp.pop %v318
  %v341 = vrcp.pop %v321
  %v342 = vrcp.pop %v324
  %v343 = vrcp.pop %v327
  %v344 = vrcp.pop %v330
  %v345 = vrcp.pop %v333
  %v346 = vrcp.pop %v336
  %v347 = vrcp.pop %v339
  %v348 = vmul.f32 %v301, %v340
  %v349 = vmul.f32 %v303, %v341
  %v350 = vmul.f32 %v305, %v342
  %v351 = vmul.f32 %v307, %v343
  %v352 = vmul.f32 %v309, %v344
  %v353 = vmul.f32 %v311, %v345
  %v354 = vmul.f32 %v313, %v346
  %v355 = vmul.f32 %v315, %v347
  %356 = vrot.lane.b32.xlu0 %v174, 64
  %v357 = vpop.permute.xlu0 %356
  %358 = vrot.lane.b32.xlu0 %v177, 64
  %v359 = vpop.permute.xlu0 %358
  %v363 = vsel %vm267, %v348, 0
  %v366 = vsel %vm267, %v349, 0
  %368 = vmatpush.msra.mxu0 0.0
  %369 = vmatpush.msra.mxu0 0.0
  %370 = vmatpush.msra.mxu0 0.0
  %371 = vmatpush.msra.mxu0 0.0
  %372 = vmatpush.msra.mxu0 0.0
  %373 = vmatpush.msra.mxu0 0.0
  %374 = vmatpush.msra.mxu0 0.0
  %375 = vmatpush.msra.mxu0 0.0
  %376 = vmatpush.msra.mxu0 0.0
  %377 = vmatpush.msra.mxu0 0.0
  %378 = vmatpush.msra.mxu0 0.0
  %379 = vmatpush.msra.mxu0 0.0
  %380 = vmatpush.msra.mxu0 0.0
  %381 = vmatpush.msra.mxu0 0.0
  %382 = vmatpush.msra.mxu0 %v359
  %383 = vmatpush.msra.mxu0 %v357
  %384 = vmatmul.f32.gmra.mxu0 %v363
  %v385 = vpop.f32.mrf.mxu0
  %v386 = vadd.f32 0.0, %v385
  %387 = vmatmul.f32.gmra.mxu0 %v366
  %v388 = vpop.f32.mrf.mxu0
  %v389 = vadd.f32 0.0, %v388
  %390 = vdwg.mxu0
  %391 = vrot.lane.b32.xlu0 %v174, 56
  %v392 = vpop.permute.xlu0 %391
  %393 = vrot.lane.b32.xlu0 %v177, 56
  %v394 = vpop.permute.xlu0 %393
  %v398 = vsel %vm267, %v350, 0
  %v401 = vsel %vm267, %v351, 0
  %403 = vmatpush.msra.mxu0 0.0
  %404 = vmatpush.msra.mxu0 0.0
  %405 = vmatpush.msra.mxu0 0.0
  %406 = vmatpush.msra.mxu0 0.0
  %407 = vmatpush.msra.mxu0 0.0
  %408 = vmatpush.msra.mxu0 0.0
  %409 = vmatpush.msra.mxu0 0.0
  %410 = vmatpush.msra.mxu0 0.0
  %411 = vmatpush.msra.mxu0 0.0
  %412 = vmatpush.msra.mxu0 0.0
  %413 = vmatpush.msra.mxu0 0.0
  %414 = vmatpush.msra.mxu0 0.0
  %415 = vmatpush.msra.mxu0 0.0
  %416 = vmatpush.msra.mxu0 0.0
  %417 = vmatpush.msra.mxu0 %v394
  %418 = vmatpush.msra.mxu0 %v392
  %419 = vmatmul.f32.gmra.mxu0 %v398
  %v420 = vpop.f32.mrf.mxu0
  %v421 = vadd.f32 0.0, %v420
  %422 = vmatmul.f32.gmra.mxu0 %v401
  %v423 = vpop.f32.mrf.mxu0
  %v424 = vadd.f32 0.0, %v423
  %425 = vdwg.mxu0
  %vm426 = vcmask 64512
  %v428 = vsel %vm426, %v421, 0
  %v431 = vsel %vm426, %v424, 0
  %433 = vmatpush.msra.mxu0 0.0
  %434 = vmatpush.msra.mxu0 0.0
  %435 = vmatpush.msra.mxu0 0.0
  %436 = vmatpush.msra.mxu0 0.0
  %437 = vmatpush.msra.mxu0 0.0
  %438 = vmatpush.msra.mxu0 0.0
  %439 = vmatpush.msra.mxu0 0.0
  %440 = vmatpush.msra.mxu0 0.0
  %441 = vmatpush.msra.mxu0 0.0
  %442 = vmatpush.msra.mxu0 0.0
  %443 = vmatpush.msra.mxu0 0.0
  %444 = vmatpush.msra.mxu0 0.0
  %445 = vmatpush.msra.mxu0 0.0
  %446 = vmatpush.msra.mxu0 0.0
  %447 = vmatpush.msra.mxu0 0.0
  %448 = vmatpush.msra.mxu0 %v180
  %449 = vmatmul.f32.gmra.mxu0 %v428
  %v450 = vpop.f32.mrf.mxu0
  %v451 = vadd.f32 0.0, %v450
  %452 = vmatmul.f32.gmra.mxu0 %v431
  %v453 = vpop.f32.mrf.mxu0
  %v454 = vadd.f32 0.0, %v453
  %455 = vdwg.mxu0
  %v457 = vsel %vm426, %v386, 0
  %v460 = vsel %vm426, %v389, 0
  %462 = vmatpush.msra.mxu0 0.0
  %463 = vmatpush.msra.mxu0 0.0
  %464 = vmatpush.msra.mxu0 0.0
  %465 = vmatpush.msra.mxu0 0.0
  %466 = vmatpush.msra.mxu0 0.0
  %467 = vmatpush.msra.mxu0 0.0
  %468 = vmatpush.msra.mxu0 0.0
  %469 = vmatpush.msra.mxu0 0.0
  %470 = vmatpush.msra.mxu0 0.0
  %471 = vmatpush.msra.mxu0 0.0
  %472 = vmatpush.msra.mxu0 0.0
  %473 = vmatpush.msra.mxu0 0.0
  %474 = vmatpush.msra.mxu0 0.0
  %475 = vmatpush.msra.mxu0 0.0
  %476 = vmatpush.msra.mxu0 0.0
  %477 = vmatpush.msra.mxu0 %v179
  %478 = vmatmul.f32.gmra.mxu0 %v457
  %v479 = vpop.f32.mrf.mxu0
  %v480 = vadd.f32 %v451, %v479
  %481 = vmatmul.f32.gmra.mxu0 %v460
  %v482 = vpop.f32.mrf.mxu0
  %v483 = vadd.f32 %v454, %v482
  %484 = vdwg.mxu0
  %485 = vrot.lane.b32.xlu0 %v174, 48
  %v486 = vpop.permute.xlu0 %485
  %487 = vrot.lane.b32.xlu0 %v177, 48
  %v488 = vpop.permute.xlu0 %487
  %v492 = vsel %vm267, %v352, 0
  %v495 = vsel %vm267, %v353, 0
  %497 = vmatpush.msra.mxu0 0.0
  %498 = vmatpush.msra.mxu0 0.0
  %499 = vmatpush.msra.mxu0 0.0
  %500 = vmatpush.msra.mxu0 0.0
  %501 = vmatpush.msra.mxu0 0.0
  %502 = vmatpush.msra.mxu0 0.0
  %503 = vmatpush.msra.mxu0 0.0
  %504 = vmatpush.msra.mxu0 0.0
  %505 = vmatpush.msra.mxu0 0.0
  %506 = vmatpush.msra.mxu0 0.0
  %507 = vmatpush.msra.mxu0 0.0
  %508 = vmatpush.msra.mxu0 0.0
  %509 = vmatpush.msra.mxu0 0.0
  %510 = vmatpush.msra.mxu0 0.0
  %511 = vmatpush.msra.mxu0 %v488
  %512 = vmatpush.msra.mxu0 %v486
  %513 = vmatmul.f32.gmra.mxu0 %v492
  %v514 = vpop.f32.mrf.mxu0
  %v515 = vadd.f32 0.0, %v514
  %516 = vmatmul.f32.gmra.mxu0 %v495
  %v517 = vpop.f32.mrf.mxu0
  %v518 = vadd.f32 0.0, %v517
  %519 = vdwg.mxu0
  %v521 = vsel %vm426, %v515, 0
  %v524 = vsel %vm426, %v518, 0
  %526 = vmatpush.msra.mxu0 0.0
  %527 = vmatpush.msra.mxu0 0.0
  %528 = vmatpush.msra.mxu0 0.0
  %529 = vmatpush.msra.mxu0 0.0
  %530 = vmatpush.msra.mxu0 0.0
  %531 = vmatpush.msra.mxu0 0.0
  %532 = vmatpush.msra.mxu0 0.0
  %533 = vmatpush.msra.mxu0 0.0
  %534 = vmatpush.msra.mxu0 0.0
  %535 = vmatpush.msra.mxu0 0.0
  %536 = vmatpush.msra.mxu0 0.0
  %537 = vmatpush.msra.mxu0 0.0
  %538 = vmatpush.msra.mxu0 0.0
  %539 = vmatpush.msra.mxu0 0.0
  %540 = vmatpush.msra.mxu0 0.0
  %541 = vmatpush.msra.mxu0 %v181
  %542 = vmatmul.f32.gmra.mxu0 %v521
  %v543 = vpop.f32.mrf.mxu0
  %v544 = vadd.f32 0.0, %v543
  %545 = vmatmul.f32.gmra.mxu0 %v524
  %v546 = vpop.f32.mrf.mxu0
  %v547 = vadd.f32 0.0, %v546
  %548 = vdwg.mxu0
  %v549 = vadd.f32 %v480, %v544
  %v550 = vadd.f32 %v483, %v547
  %551 = vrot.lane.b32.xlu0 %v174, 40
  %v552 = vpop.permute.xlu0 %551
  %553 = vrot.lane.b32.xlu0 %v177, 40
  %v554 = vpop.permute.xlu0 %553
  %v558 = vsel %vm267, %v354, 0
  %v561 = vsel %vm267, %v355, 0
  %563 = vmatpush.msra.mxu0 0.0
  %564 = vmatpush.msra.mxu0 0.0
  %565 = vmatpush.msra.mxu0 0.0
  %566 = vmatpush.msra.mxu0 0.0
  %567 = vmatpush.msra.mxu0 0.0
  %568 = vmatpush.msra.mxu0 0.0
  %569 = vmatpush.msra.mxu0 0.0
  %570 = vmatpush.msra.mxu0 0.0
  %571 = vmatpush.msra.mxu0 0.0
  %572 = vmatpush.msra.mxu0 0.0
  %573 = vmatpush.msra.mxu0 0.0
  %574 = vmatpush.msra.mxu0 0.0
  %575 = vmatpush.msra.mxu0 0.0
  %576 = vmatpush.msra.mxu0 0.0
  %577 = vmatpush.msra.mxu0 %v554
  %578 = vmatpush.msra.mxu0 %v552
  %579 = vmatmul.f32.gmra.mxu0 %v558
  %v580 = vpop.f32.mrf.mxu0
  %v581 = vadd.f32 0.0, %v580
  %582 = vmatmul.f32.gmra.mxu0 %v561
  %v583 = vpop.f32.mrf.mxu0
  %v584 = vadd.f32 0.0, %v583
  %585 = vdwg.mxu0
  %v587 = vsel %vm426, %v581, 0
  %v590 = vsel %vm426, %v584, 0
  %592 = vmatpush.msra.mxu0 0.0
  %593 = vmatpush.msra.mxu0 0.0
  %594 = vmatpush.msra.mxu0 0.0
  %595 = vmatpush.msra.mxu0 0.0
  %596 = vmatpush.msra.mxu0 0.0
  %597 = vmatpush.msra.mxu0 0.0
  %598 = vmatpush.msra.mxu0 0.0
  %599 = vmatpush.msra.mxu0 0.0
  %600 = vmatpush.msra.mxu0 0.0
  %601 = vmatpush.msra.mxu0 0.0
  %602 = vmatpush.msra.mxu0 0.0
  %603 = vmatpush.msra.mxu0 0.0
  %604 = vmatpush.msra.mxu0 0.0
  %605 = vmatpush.msra.mxu0 0.0
  %606 = vmatpush.msra.mxu0 0.0
  %607 = vmatpush.msra.mxu0 %v182
  %608 = vmatmul.f32.gmra.mxu0 %v587
  %v609 = vpop.f32.mrf.mxu0
  %v610 = vadd.f32 0.0, %v609
  %611 = vmatmul.f32.gmra.mxu0 %v590
  %v612 = vpop.f32.mrf.mxu0
  %v613 = vadd.f32 0.0, %v612
  %614 = vdwg.mxu0
  %v615 = vadd.f32 %v549, %v610
  %v616 = vadd.f32 %v550, %v613
  %v618 = vperm.slane %v183, 0
  %v620 = vadd.f32 %v615, %v618
  %v621 = vadd.f32 %v616, %v618
  %v622 = vadd.f32 %v74, %v620
  %v623 = vadd.f32 %v75, %v621
  %v624 = vsel %vm110, %v622, 0.0
  %625 = vadd.xlane.f32.xlu0 %v624
  %v626 = vpop.xlane.xlu0 %625
  %v627 = vsel %vm110, %v623, 0.0
  %628 = vadd.xlane.f32.xlu0 %v627
  %v629 = vpop.xlane.xlu0 %628
  %v630 = vrcp.pop 32.0
  %v631 = vmul.f32 32.0, %v630
  %v632 = vsub.f32 1.0, %v631
  %v633 = vmul.f32 %v630, %v632
  %v634 = vadd.f32 %v630, %v633
  %vm635 = vweird.f32 %v630
  %v636 = vsel %vm635, %v630, %v634
  %v637 = vmul.f32 %v626, %v636
  %v638 = vmul.f32 %v629, %v636
  %v639 = vmul.f32 %v622, %v622
  %v640 = vmul.f32 %v623, %v623
  %v641 = vsel %vm110, %v639, 0.0
  %642 = vadd.xlane.f32.xlu0 %v641
  %v643 = vpop.xlane.xlu0 %642
  %v644 = vsel %vm110, %v640, 0.0
  %645 = vadd.xlane.f32.xlu0 %v644
  %v646 = vpop.xlane.xlu0 %645
  %v647 = vmul.f32 %v643, %v636
  %v648 = vmul.f32 %v646, %v636
  %v649 = vsub.f32 %v622, %v637
  %v650 = vsub.f32 %v623, %v638
  %v651 = vmul.f32 %v637, %v637
  %v652 = vmul.f32 %v638, %v638
  %v653 = vsub.f32 %v647, %v651
  %v654 = vsub.f32 %v648, %v652
  %v655 = vadd.f32 %v653, 1e-05
  %v656 = vadd.f32 %v654, 1e-05
  %v657 = vrsqrt.pop %v655
  %v658 = vmul.f32 %v657, %v655
  %v659 = vmul.f32 %v658, %v657
  %v660 = vmul.f32 0.5, %v659
  %v661 = vsub.f32 1.5, %v660
  %v662 = vmul.f32 %v657, %v661
  %vm663 = vweird.f32 %v655
  %vm664 = vweird.f32 %v657
  %vm665 = vmor %vm663, %vm664
  %v666 = vsel %vm665, %v657, %v662
  %v667 = vrsqrt.pop %v656
  %v668 = vmul.f32 %v667, %v656
  %v669 = vmul.f32 %v668, %v667
  %v670 = vmul.f32 0.5, %v669
  %v671 = vsub.f32 1.5, %v670
  %v672 = vmul.f32 %v667, %v671
  %vm673 = vweird.f32 %v656
  %vm674 = vweird.f32 %v667
  %vm675 = vmor %vm673, %vm674
  %v676 = vsel %vm675, %v667, %v672
  %v677 = vmul.f32 %v649, %v666
  %v678 = vmul.f32 %v650, %v676
  %v679 = vperm.slane %v140, 0
  %v680 = vmul.f32 %v677, %v679
  %v681 = vmul.f32 %v678, %v679
  %v682 = vperm.slane %v141, 0
  %v683 = vadd.f32 %v680, %v682
  %v684 = vadd.f32 %v681, %v682
  %v685 = vld [vmem:[%s9] sm:$0xff]
  %v686 = vld [vmem:[%s9 + $0x8] sm:$0xff]
  %v687 = vld [vmem:[%s9 + $0x10] sm:$0xff]
  %v688 = vld [vmem:[%s9 + $0x18] sm:$0xff]
  %v689 = vld [vmem:[%s10] sm:$0x1]
  %v691 = vperm.slane %v689, 0
  %v694 = vsel %vm110, %v683, 0
  %v697 = vsel %vm110, %v684, 0
  %699 = vmatpush.msra.mxu0 0.0
  %700 = vmatpush.msra.mxu0 0.0
  %701 = vmatpush.msra.mxu0 0.0
  %702 = vmatpush.msra.mxu0 0.0
  %703 = vmatpush.msra.mxu0 0.0
  %704 = vmatpush.msra.mxu0 0.0
  %705 = vmatpush.msra.mxu0 0.0
  %706 = vmatpush.msra.mxu0 0.0
  %707 = vmatpush.msra.mxu0 0.0
  %708 = vmatpush.msra.mxu0 0.0
  %709 = vmatpush.msra.mxu0 0.0
  %710 = vmatpush.msra.mxu0 0.0
  %711 = vmatpush.msra.mxu0 %v688
  %712 = vmatpush.msra.mxu0 %v687
  %713 = vmatpush.msra.mxu0 %v686
  %714 = vmatpush.msra.mxu0 %v685
  %715 = vmatmul.f32.gmra.mxu0 %v694
  %v716 = vpop.f32.mrf.mxu0
  %v717 = vadd.f32 %v691, %v716
  %718 = vmatmul.f32.gmra.mxu0 %v697
  %v719 = vpop.f32.mrf.mxu0
  %v720 = vadd.f32 %v691, %v719
  %721 = vdwg.mxu0
  %v722 = vld [vmem:[%s13] sm:$0xff]
  %v723 = vld [vmem:[%s13 + $0x8] sm:$0xff]
  %v724 = vld [vmem:[%s13 + $0x10] sm:$0xff]
  %v725 = vld [vmem:[%s13 + $0x18] sm:$0xff]
  %v726 = vld [vmem:[%s14] sm:$0x1]
  %v727 = vmul.f32 %v717, %v94
  %v728 = vmul.f32 %v720, %v95
  %v729 = vmul.f32 %v717, %v96
  %v730 = vmul.f32 %v720, %v97
  %v731 = vmul.f32 %v717, %v98
  %v732 = vmul.f32 %v720, %v99
  %v733 = vmul.f32 %v717, %v100
  %v734 = vmul.f32 %v720, %v101
  %v736 = vsel %vm110, %v727, 0
  %v739 = vsel %vm110, %v728, 0
  %v742 = vsel %vm110, %v729, 0
  %v745 = vsel %vm110, %v730, 0
  %v748 = vsel %vm110, %v731, 0
  %v751 = vsel %vm110, %v732, 0
  %v754 = vsel %vm110, %v733, 0
  %v757 = vsel %vm110, %v734, 0
  %v760 = vsel %vm110, %v135, 0
  %v763 = vsel %vm110, %v138, 0
  %765 = vmatpush.xpose.msra.mxu0 0.0
  %766 = vmatpush.xpose.msra.mxu0 0.0
  %767 = vmatpush.xpose.msra.mxu0 0.0
  %768 = vmatpush.xpose.msra.mxu0 0.0
  %769 = vmatpush.xpose.msra.mxu0 0.0
  %770 = vmatpush.xpose.msra.mxu0 0.0
  %771 = vmatpush.xpose.msra.mxu0 0.0
  %772 = vmatpush.xpose.msra.mxu0 0.0
  %773 = vmatpush.xpose.msra.mxu0 0.0
  %774 = vmatpush.xpose.msra.mxu0 0.0
  %775 = vmatpush.xpose.msra.mxu0 0.0
  %776 = vmatpush.xpose.msra.mxu0 0.0
  %777 = vmatpush.xpose.msra.mxu0 0.0
  %778 = vmatpush.xpose.msra.mxu0 0.0
  %779 = vmatpush.xpose.msra.mxu0 %v763
  %780 = vmatpush.xpose.msra.mxu0 %v760
  %781 = vmatmul.f32.gmra.mxu0 %v736
  %v782 = vpop.f32.mrf.mxu0
  %v783 = vadd.f32 %v86, %v782
  %784 = vmatmul.f32.gmra.mxu0 %v739
  %v785 = vpop.f32.mrf.mxu0
  %v786 = vadd.f32 %v87, %v785
  %787 = vmatmul.f32.gmra.mxu0 %v742
  %v788 = vpop.f32.mrf.mxu0
  %v789 = vadd.f32 %v88, %v788
  %790 = vmatmul.f32.gmra.mxu0 %v745
  %v791 = vpop.f32.mrf.mxu0
  %v792 = vadd.f32 %v89, %v791
  %793 = vmatmul.f32.gmra.mxu0 %v748
  %v794 = vpop.f32.mrf.mxu0
  %v795 = vadd.f32 %v90, %v794
  %796 = vmatmul.f32.gmra.mxu0 %v751
  %v797 = vpop.f32.mrf.mxu0
  %v798 = vadd.f32 %v91, %v797
  %799 = vmatmul.f32.gmra.mxu0 %v754
  %v800 = vpop.f32.mrf.mxu0
  %v801 = vadd.f32 %v92, %v800
  %802 = vmatmul.f32.gmra.mxu0 %v757
  %v803 = vpop.f32.mrf.mxu0
  %v804 = vadd.f32 %v93, %v803
  %805 = vdwg.mxu0
  %v806 = vsel %vm267, %v783, -inf
  %807 = vmax.xlane.f32.xlu0 %v806
  %v808 = vpop.xlane.xlu0 %807
  %v809 = vsel %vm267, %v786, -inf
  %810 = vmax.xlane.f32.xlu0 %v809
  %v811 = vpop.xlane.xlu0 %810
  %v812 = vsel %vm267, %v789, -inf
  %813 = vmax.xlane.f32.xlu0 %v812
  %v814 = vpop.xlane.xlu0 %813
  %v815 = vsel %vm267, %v792, -inf
  %816 = vmax.xlane.f32.xlu0 %v815
  %v817 = vpop.xlane.xlu0 %816
  %v818 = vsel %vm267, %v795, -inf
  %819 = vmax.xlane.f32.xlu0 %v818
  %v820 = vpop.xlane.xlu0 %819
  %v821 = vsel %vm267, %v798, -inf
  %822 = vmax.xlane.f32.xlu0 %v821
  %v823 = vpop.xlane.xlu0 %822
  %v824 = vsel %vm267, %v801, -inf
  %825 = vmax.xlane.f32.xlu0 %v824
  %v826 = vpop.xlane.xlu0 %825
  %v827 = vsel %vm267, %v804, -inf
  %828 = vmax.xlane.f32.xlu0 %v827
  %v829 = vpop.xlane.xlu0 %828
  %v830 = vsub.f32 %v783, %v808
  %v831 = vsub.f32 %v786, %v811
  %v832 = vsub.f32 %v789, %v814
  %v833 = vsub.f32 %v792, %v817
  %v834 = vsub.f32 %v795, %v820
  %v835 = vsub.f32 %v798, %v823
  %v836 = vsub.f32 %v801, %v826
  %v837 = vsub.f32 %v804, %v829
  %v838 = vmul.f32 %v830, 1.442695
  %v839 = vpow.pop %v838
  %v840 = vmul.f32 %v831, 1.442695
  %v841 = vpow.pop %v840
  %v842 = vmul.f32 %v832, 1.442695
  %v843 = vpow.pop %v842
  %v844 = vmul.f32 %v833, 1.442695
  %v845 = vpow.pop %v844
  %v846 = vmul.f32 %v834, 1.442695
  %v847 = vpow.pop %v846
  %v848 = vmul.f32 %v835, 1.442695
  %v849 = vpow.pop %v848
  %v850 = vmul.f32 %v836, 1.442695
  %v851 = vpow.pop %v850
  %v852 = vmul.f32 %v837, 1.442695
  %v853 = vpow.pop %v852
  %v854 = vsel %vm267, %v839, 0.0
  %855 = vadd.xlane.f32.xlu0 %v854
  %v856 = vpop.xlane.xlu0 %855
  %v857 = vsel %vm267, %v841, 0.0
  %858 = vadd.xlane.f32.xlu0 %v857
  %v859 = vpop.xlane.xlu0 %858
  %v860 = vsel %vm267, %v843, 0.0
  %861 = vadd.xlane.f32.xlu0 %v860
  %v862 = vpop.xlane.xlu0 %861
  %v863 = vsel %vm267, %v845, 0.0
  %864 = vadd.xlane.f32.xlu0 %v863
  %v865 = vpop.xlane.xlu0 %864
  %v866 = vsel %vm267, %v847, 0.0
  %867 = vadd.xlane.f32.xlu0 %v866
  %v868 = vpop.xlane.xlu0 %867
  %v869 = vsel %vm267, %v849, 0.0
  %870 = vadd.xlane.f32.xlu0 %v869
  %v871 = vpop.xlane.xlu0 %870
  %v872 = vsel %vm267, %v851, 0.0
  %873 = vadd.xlane.f32.xlu0 %v872
  %v874 = vpop.xlane.xlu0 %873
  %v875 = vsel %vm267, %v853, 0.0
  %876 = vadd.xlane.f32.xlu0 %v875
  %v877 = vpop.xlane.xlu0 %876
  %v878 = vrcp.pop %v856
  %v879 = vrcp.pop %v859
  %v880 = vrcp.pop %v862
  %v881 = vrcp.pop %v865
  %v882 = vrcp.pop %v868
  %v883 = vrcp.pop %v871
  %v884 = vrcp.pop %v874
  %v885 = vrcp.pop %v877
  %v886 = vmul.f32 %v839, %v878
  %v887 = vmul.f32 %v841, %v879
  %v888 = vmul.f32 %v843, %v880
  %v889 = vmul.f32 %v845, %v881
  %v890 = vmul.f32 %v847, %v882
  %v891 = vmul.f32 %v849, %v883
  %v892 = vmul.f32 %v851, %v884
  %v893 = vmul.f32 %v853, %v885
  %894 = vrot.lane.b32.xlu0 %v135, 96
  %v895 = vpop.permute.xlu0 %894
  %896 = vrot.lane.b32.xlu0 %v138, 96
  %v897 = vpop.permute.xlu0 %896
  %v901 = vsel %vm267, %v886, 0
  %v904 = vsel %vm267, %v887, 0
  %906 = vmatpush.msra.mxu0 0.0
  %907 = vmatpush.msra.mxu0 0.0
  %908 = vmatpush.msra.mxu0 0.0
  %909 = vmatpush.msra.mxu0 0.0
  %910 = vmatpush.msra.mxu0 0.0
  %911 = vmatpush.msra.mxu0 0.0
  %912 = vmatpush.msra.mxu0 0.0
  %913 = vmatpush.msra.mxu0 0.0
  %914 = vmatpush.msra.mxu0 0.0
  %915 = vmatpush.msra.mxu0 0.0
  %916 = vmatpush.msra.mxu0 0.0
  %917 = vmatpush.msra.mxu0 0.0
  %918 = vmatpush.msra.mxu0 0.0
  %919 = vmatpush.msra.mxu0 0.0
  %920 = vmatpush.msra.mxu0 %v897
  %921 = vmatpush.msra.mxu0 %v895
  %922 = vmatmul.f32.gmra.mxu0 %v901
  %v923 = vpop.f32.mrf.mxu0
  %v924 = vadd.f32 0.0, %v923
  %925 = vmatmul.f32.gmra.mxu0 %v904
  %v926 = vpop.f32.mrf.mxu0
  %v927 = vadd.f32 0.0, %v926
  %928 = vdwg.mxu0
  %929 = vrot.lane.b32.xlu0 %v135, 88
  %v930 = vpop.permute.xlu0 %929
  %931 = vrot.lane.b32.xlu0 %v138, 88
  %v932 = vpop.permute.xlu0 %931
  %v936 = vsel %vm267, %v888, 0
  %v939 = vsel %vm267, %v889, 0
  %941 = vmatpush.msra.mxu0 0.0
  %942 = vmatpush.msra.mxu0 0.0
  %943 = vmatpush.msra.mxu0 0.0
  %944 = vmatpush.msra.mxu0 0.0
  %945 = vmatpush.msra.mxu0 0.0
  %946 = vmatpush.msra.mxu0 0.0
  %947 = vmatpush.msra.mxu0 0.0
  %948 = vmatpush.msra.mxu0 0.0
  %949 = vmatpush.msra.mxu0 0.0
  %950 = vmatpush.msra.mxu0 0.0
  %951 = vmatpush.msra.mxu0 0.0
  %952 = vmatpush.msra.mxu0 0.0
  %953 = vmatpush.msra.mxu0 0.0
  %954 = vmatpush.msra.mxu0 0.0
  %955 = vmatpush.msra.mxu0 %v932
  %956 = vmatpush.msra.mxu0 %v930
  %957 = vmatmul.f32.gmra.mxu0 %v936
  %v958 = vpop.f32.mrf.mxu0
  %v959 = vadd.f32 0.0, %v958
  %960 = vmatmul.f32.gmra.mxu0 %v939
  %v961 = vpop.f32.mrf.mxu0
  %v962 = vadd.f32 0.0, %v961
  %963 = vdwg.mxu0
  %v965 = vsel %vm426, %v959, 0
  %v968 = vsel %vm426, %v962, 0
  %970 = vmatpush.msra.mxu0 0.0
  %971 = vmatpush.msra.mxu0 0.0
  %972 = vmatpush.msra.mxu0 0.0
  %973 = vmatpush.msra.mxu0 0.0
  %974 = vmatpush.msra.mxu0 0.0
  %975 = vmatpush.msra.mxu0 0.0
  %976 = vmatpush.msra.mxu0 0.0
  %977 = vmatpush.msra.mxu0 0.0
  %978 = vmatpush.msra.mxu0 0.0
  %979 = vmatpush.msra.mxu0 0.0
  %980 = vmatpush.msra.mxu0 0.0
  %981 = vmatpush.msra.mxu0 0.0
  %982 = vmatpush.msra.mxu0 0.0
  %983 = vmatpush.msra.mxu0 0.0
  %984 = vmatpush.msra.mxu0 0.0
  %985 = vmatpush.msra.mxu0 %v723
  %986 = vmatmul.f32.gmra.mxu0 %v965
  %v987 = vpop.f32.mrf.mxu0
  %v988 = vadd.f32 0.0, %v987
  %989 = vmatmul.f32.gmra.mxu0 %v968
  %v990 = vpop.f32.mrf.mxu0
  %v991 = vadd.f32 0.0, %v990
  %992 = vdwg.mxu0
  %v994 = vsel %vm426, %v924, 0
  %v997 = vsel %vm426, %v927, 0
  %999 = vmatpush.msra.mxu0 0.0
  %1000 = vmatpush.msra.mxu0 0.0
  %1001 = vmatpush.msra.mxu0 0.0
  %1002 = vmatpush.msra.mxu0 0.0
  %1003 = vmatpush.msra.mxu0 0.0
  %1004 = vmatpush.msra.mxu0 0.0
  %1005 = vmatpush.msra.mxu0 0.0
  %1006 = vmatpush.msra.mxu0 0.0
  %1007 = vmatpush.msra.mxu0 0.0
  %1008 = vmatpush.msra.mxu0 0.0
  %1009 = vmatpush.msra.mxu0 0.0
  %1010 = vmatpush.msra.mxu0 0.0
  %1011 = vmatpush.msra.mxu0 0.0
  %1012 = vmatpush.msra.mxu0 0.0
  %1013 = vmatpush.msra.mxu0 0.0
  %1014 = vmatpush.msra.mxu0 %v722
  %1015 = vmatmul.f32.gmra.mxu0 %v994
  %v1016 = vpop.f32.mrf.mxu0
  %v1017 = vadd.f32 %v988, %v1016
  %1018 = vmatmul.f32.gmra.mxu0 %v997
  %v1019 = vpop.f32.mrf.mxu0
  %v1020 = vadd.f32 %v991, %v1019
  %1021 = vdwg.mxu0
  %1022 = vrot.lane.b32.xlu0 %v135, 80
  %v1023 = vpop.permute.xlu0 %1022
  %1024 = vrot.lane.b32.xlu0 %v138, 80
  %v1025 = vpop.permute.xlu0 %1024
  %v1029 = vsel %vm267, %v890, 0
  %v1032 = vsel %vm267, %v891, 0
  %1034 = vmatpush.msra.mxu0 0.0
  %1035 = vmatpush.msra.mxu0 0.0
  %1036 = vmatpush.msra.mxu0 0.0
  %1037 = vmatpush.msra.mxu0 0.0
  %1038 = vmatpush.msra.mxu0 0.0
  %1039 = vmatpush.msra.mxu0 0.0
  %1040 = vmatpush.msra.mxu0 0.0
  %1041 = vmatpush.msra.mxu0 0.0
  %1042 = vmatpush.msra.mxu0 0.0
  %1043 = vmatpush.msra.mxu0 0.0
  %1044 = vmatpush.msra.mxu0 0.0
  %1045 = vmatpush.msra.mxu0 0.0
  %1046 = vmatpush.msra.mxu0 0.0
  %1047 = vmatpush.msra.mxu0 0.0
  %1048 = vmatpush.msra.mxu0 %v1025
  %1049 = vmatpush.msra.mxu0 %v1023
  %1050 = vmatmul.f32.gmra.mxu0 %v1029
  %v1051 = vpop.f32.mrf.mxu0
  %v1052 = vadd.f32 0.0, %v1051
  %1053 = vmatmul.f32.gmra.mxu0 %v1032
  %v1054 = vpop.f32.mrf.mxu0
  %v1055 = vadd.f32 0.0, %v1054
  %1056 = vdwg.mxu0
  %v1058 = vsel %vm426, %v1052, 0
  %v1061 = vsel %vm426, %v1055, 0
  %1063 = vmatpush.msra.mxu0 0.0
  %1064 = vmatpush.msra.mxu0 0.0
  %1065 = vmatpush.msra.mxu0 0.0
  %1066 = vmatpush.msra.mxu0 0.0
  %1067 = vmatpush.msra.mxu0 0.0
  %1068 = vmatpush.msra.mxu0 0.0
  %1069 = vmatpush.msra.mxu0 0.0
  %1070 = vmatpush.msra.mxu0 0.0
  %1071 = vmatpush.msra.mxu0 0.0
  %1072 = vmatpush.msra.mxu0 0.0
  %1073 = vmatpush.msra.mxu0 0.0
  %1074 = vmatpush.msra.mxu0 0.0
  %1075 = vmatpush.msra.mxu0 0.0
  %1076 = vmatpush.msra.mxu0 0.0
  %1077 = vmatpush.msra.mxu0 0.0
  %1078 = vmatpush.msra.mxu0 %v724
  %1079 = vmatmul.f32.gmra.mxu0 %v1058
  %v1080 = vpop.f32.mrf.mxu0
  %v1081 = vadd.f32 0.0, %v1080
  %1082 = vmatmul.f32.gmra.mxu0 %v1061
  %v1083 = vpop.f32.mrf.mxu0
  %v1084 = vadd.f32 0.0, %v1083
  %1085 = vdwg.mxu0
  %v1086 = vadd.f32 %v1017, %v1081
  %v1087 = vadd.f32 %v1020, %v1084
  %1088 = vrot.lane.b32.xlu0 %v135, 72
  %v1089 = vpop.permute.xlu0 %1088
  %1090 = vrot.lane.b32.xlu0 %v138, 72
  %v1091 = vpop.permute.xlu0 %1090
  %v1095 = vsel %vm267, %v892, 0
  %v1098 = vsel %vm267, %v893, 0
  %1100 = vmatpush.msra.mxu0 0.0
  %1101 = vmatpush.msra.mxu0 0.0
  %1102 = vmatpush.msra.mxu0 0.0
  %1103 = vmatpush.msra.mxu0 0.0
  %1104 = vmatpush.msra.mxu0 0.0
  %1105 = vmatpush.msra.mxu0 0.0
  %1106 = vmatpush.msra.mxu0 0.0
  %1107 = vmatpush.msra.mxu0 0.0
  %1108 = vmatpush.msra.mxu0 0.0
  %1109 = vmatpush.msra.mxu0 0.0
  %1110 = vmatpush.msra.mxu0 0.0
  %1111 = vmatpush.msra.mxu0 0.0
  %1112 = vmatpush.msra.mxu0 0.0
  %1113 = vmatpush.msra.mxu0 0.0
  %1114 = vmatpush.msra.mxu0 %v1091
  %1115 = vmatpush.msra.mxu0 %v1089
  %1116 = vmatmul.f32.gmra.mxu0 %v1095
  %v1117 = vpop.f32.mrf.mxu0
  %v1118 = vadd.f32 0.0, %v1117
  %1119 = vmatmul.f32.gmra.mxu0 %v1098
  %v1120 = vpop.f32.mrf.mxu0
  %v1121 = vadd.f32 0.0, %v1120
  %1122 = vdwg.mxu0
  %v1124 = vsel %vm426, %v1118, 0
  %v1127 = vsel %vm426, %v1121, 0
  %1129 = vmatpush.msra.mxu0 0.0
  %1130 = vmatpush.msra.mxu0 0.0
  %1131 = vmatpush.msra.mxu0 0.0
  %1132 = vmatpush.msra.mxu0 0.0
  %1133 = vmatpush.msra.mxu0 0.0
  %1134 = vmatpush.msra.mxu0 0.0
  %1135 = vmatpush.msra.mxu0 0.0
  %1136 = vmatpush.msra.mxu0 0.0
  %1137 = vmatpush.msra.mxu0 0.0
  %1138 = vmatpush.msra.mxu0 0.0
  %1139 = vmatpush.msra.mxu0 0.0
  %1140 = vmatpush.msra.mxu0 0.0
  %1141 = vmatpush.msra.mxu0 0.0
  %1142 = vmatpush.msra.mxu0 0.0
  %1143 = vmatpush.msra.mxu0 0.0
  %1144 = vmatpush.msra.mxu0 %v725
  %1145 = vmatmul.f32.gmra.mxu0 %v1124
  %v1146 = vpop.f32.mrf.mxu0
  %v1147 = vadd.f32 0.0, %v1146
  %1148 = vmatmul.f32.gmra.mxu0 %v1127
  %v1149 = vpop.f32.mrf.mxu0
  %v1150 = vadd.f32 0.0, %v1149
  %1151 = vdwg.mxu0
  %v1152 = vadd.f32 %v1086, %v1147
  %v1153 = vadd.f32 %v1087, %v1150
  %v1155 = vperm.slane %v726, 0
  %v1157 = vadd.f32 %v1152, %v1155
  %v1158 = vadd.f32 %v1153, %v1155
  %v1159 = vadd.f32 %v683, %v1157
  %v1160 = vadd.f32 %v684, %v1158
  %v1161 = vsel %vm110, %v1159, 0.0
  %1162 = vadd.xlane.f32.xlu0 %v1161
  %v1163 = vpop.xlane.xlu0 %1162
  %v1164 = vsel %vm110, %v1160, 0.0
  %1165 = vadd.xlane.f32.xlu0 %v1164
  %v1166 = vpop.xlane.xlu0 %1165
  %v1167 = vmul.f32 %v1163, %v636
  %v1168 = vmul.f32 %v1166, %v636
  %v1169 = vmul.f32 %v1159, %v1159
  %v1170 = vmul.f32 %v1160, %v1160
  %v1171 = vsel %vm110, %v1169, 0.0
  %1172 = vadd.xlane.f32.xlu0 %v1171
  %v1173 = vpop.xlane.xlu0 %1172
  %v1174 = vsel %vm110, %v1170, 0.0
  %1175 = vadd.xlane.f32.xlu0 %v1174
  %v1176 = vpop.xlane.xlu0 %1175
  %v1177 = vmul.f32 %v1173, %v636
  %v1178 = vmul.f32 %v1176, %v636
  %v1179 = vsub.f32 %v1159, %v1167
  %v1180 = vsub.f32 %v1160, %v1168
  %v1181 = vmul.f32 %v1167, %v1167
  %v1182 = vmul.f32 %v1168, %v1168
  %v1183 = vsub.f32 %v1177, %v1181
  %v1184 = vsub.f32 %v1178, %v1182
  %v1185 = vadd.f32 %v1183, 1e-05
  %v1186 = vadd.f32 %v1184, 1e-05
  %v1187 = vrsqrt.pop %v1185
  %v1188 = vmul.f32 %v1187, %v1185
  %v1189 = vmul.f32 %v1188, %v1187
  %v1190 = vmul.f32 0.5, %v1189
  %v1191 = vsub.f32 1.5, %v1190
  %v1192 = vmul.f32 %v1187, %v1191
  %vm1193 = vweird.f32 %v1185
  %vm1194 = vweird.f32 %v1187
  %vm1195 = vmor %vm1193, %vm1194
  %v1196 = vsel %vm1195, %v1187, %v1192
  %v1197 = vrsqrt.pop %v1186
  %v1198 = vmul.f32 %v1197, %v1186
  %v1199 = vmul.f32 %v1198, %v1197
  %v1200 = vmul.f32 0.5, %v1199
  %v1201 = vsub.f32 1.5, %v1200
  %v1202 = vmul.f32 %v1197, %v1201
  %vm1203 = vweird.f32 %v1186
  %vm1204 = vweird.f32 %v1197
  %vm1205 = vmor %vm1203, %vm1204
  %v1206 = vsel %vm1205, %v1197, %v1202
  %v1207 = vmul.f32 %v1179, %v1196
  %v1208 = vmul.f32 %v1180, %v1206
  %v1209 = vperm.slane %v140, 1
  %v1210 = vmul.f32 %v1207, %v1209
  %v1211 = vmul.f32 %v1208, %v1209
  %v1212 = vperm.slane %v141, 1
  %v1213 = vadd.f32 %v1210, %v1212
  %v1214 = vadd.f32 %v1211, %v1212
  %v1215 = vld [vmem:[%s15] sm:$0xff]
  %v1216 = vld [vmem:[%s15 + $0x8] sm:$0xff]
  %v1217 = vld [vmem:[%s15 + $0x10] sm:$0xff]
  %v1218 = vld [vmem:[%s15 + $0x18] sm:$0xff]
  %v1219 = vld [vmem:[%s16] sm:$0x1]
  %v1221 = vperm.slane %v1219, 0
  %v1224 = vsel %vm110, %v1213, 0
  %v1227 = vsel %vm110, %v1214, 0
  %1229 = vmatpush.msra.mxu0 0.0
  %1230 = vmatpush.msra.mxu0 0.0
  %1231 = vmatpush.msra.mxu0 0.0
  %1232 = vmatpush.msra.mxu0 0.0
  %1233 = vmatpush.msra.mxu0 0.0
  %1234 = vmatpush.msra.mxu0 0.0
  %1235 = vmatpush.msra.mxu0 0.0
  %1236 = vmatpush.msra.mxu0 0.0
  %1237 = vmatpush.msra.mxu0 0.0
  %1238 = vmatpush.msra.mxu0 0.0
  %1239 = vmatpush.msra.mxu0 0.0
  %1240 = vmatpush.msra.mxu0 0.0
  %1241 = vmatpush.msra.mxu0 %v1218
  %1242 = vmatpush.msra.mxu0 %v1217
  %1243 = vmatpush.msra.mxu0 %v1216
  %1244 = vmatpush.msra.mxu0 %v1215
  %1245 = vmatmul.f32.gmra.mxu0 %v1224
  %v1246 = vpop.f32.mrf.mxu0
  %v1247 = vadd.f32 %v1221, %v1246
  %1248 = vmatmul.f32.gmra.mxu0 %v1227
  %v1249 = vpop.f32.mrf.mxu0
  %v1250 = vadd.f32 %v1221, %v1249
  %1251 = vdwg.mxu0
  %v1252 = vmax.f32 %v1247, 0.0
  %v1253 = vmax.f32 %v1250, 0.0
  %v1254 = vld [vmem:[%s17] sm:$0xff]
  %v1255 = vld [vmem:[%s17 + $0x8] sm:$0xff]
  %v1256 = vld [vmem:[%s17 + $0x10] sm:$0xff]
  %v1257 = vld [vmem:[%s17 + $0x18] sm:$0xff]
  %v1258 = vld [vmem:[%s17 + $0x20] sm:$0xff]
  %v1259 = vld [vmem:[%s17 + $0x28] sm:$0xff]
  %v1260 = vld [vmem:[%s17 + $0x30] sm:$0xff]
  %v1261 = vld [vmem:[%s17 + $0x38] sm:$0xff]
  %v1262 = vld [vmem:[%s18] sm:$0x1]
  %v1264 = vperm.slane %v1262, 0
  %vm1266 = vcmask 523264
  %v1268 = vsel %vm1266, %v1252, 0
  %v1271 = vsel %vm1266, %v1253, 0
  %1273 = vmatpush.msra.mxu0 0.0
  %1274 = vmatpush.msra.mxu0 0.0
  %1275 = vmatpush.msra.mxu0 0.0
  %1276 = vmatpush.msra.mxu0 0.0
  %1277 = vmatpush.msra.mxu0 0.0
  %1278 = vmatpush.msra.mxu0 0.0
  %1279 = vmatpush.msra.mxu0 0.0
  %1280 = vmatpush.msra.mxu0 0.0
  %1281 = vmatpush.msra.mxu0 %v1261
  %1282 = vmatpush.msra.mxu0 %v1260
  %1283 = vmatpush.msra.mxu0 %v1259
  %1284 = vmatpush.msra.mxu0 %v1258
  %1285 = vmatpush.msra.mxu0 %v1257
  %1286 = vmatpush.msra.mxu0 %v1256
  %1287 = vmatpush.msra.mxu0 %v1255
  %1288 = vmatpush.msra.mxu0 %v1254
  %1289 = vmatmul.f32.gmra.mxu0 %v1268
  %v1290 = vpop.f32.mrf.mxu0
  %v1291 = vadd.f32 %v1264, %v1290
  %1292 = vmatmul.f32.gmra.mxu0 %v1271
  %v1293 = vpop.f32.mrf.mxu0
  %v1294 = vadd.f32 %v1264, %v1293
  %1295 = vdwg.mxu0
  %v1296 = vadd.f32 %v1213, %v1291
  %v1297 = vadd.f32 %v1214, %v1294
  %v1298 = vsel %vm110, %v1296, 0.0
  %1299 = vadd.xlane.f32.xlu0 %v1298
  %v1300 = vpop.xlane.xlu0 %1299
  %v1301 = vsel %vm110, %v1297, 0.0
  %1302 = vadd.xlane.f32.xlu0 %v1301
  %v1303 = vpop.xlane.xlu0 %1302
  %v1304 = vmul.f32 %v1300, %v636
  %v1305 = vmul.f32 %v1303, %v636
  %v1306 = vmul.f32 %v1296, %v1296
  %v1307 = vmul.f32 %v1297, %v1297
  %v1308 = vsel %vm110, %v1306, 0.0
  %1309 = vadd.xlane.f32.xlu0 %v1308
  %v1310 = vpop.xlane.xlu0 %1309
  %v1311 = vsel %vm110, %v1307, 0.0
  %1312 = vadd.xlane.f32.xlu0 %v1311
  %v1313 = vpop.xlane.xlu0 %1312
  %v1314 = vmul.f32 %v1310, %v636
  %v1315 = vmul.f32 %v1313, %v636
  %v1316 = vsub.f32 %v1296, %v1304
  %v1317 = vsub.f32 %v1297, %v1305
  %v1318 = vmul.f32 %v1304, %v1304
  %v1319 = vmul.f32 %v1305, %v1305
  %v1320 = vsub.f32 %v1314, %v1318
  %v1321 = vsub.f32 %v1315, %v1319
  %v1322 = vadd.f32 %v1320, 1e-05
  %v1323 = vadd.f32 %v1321, 1e-05
  %v1324 = vrsqrt.pop %v1322
  %v1325 = vmul.f32 %v1324, %v1322
  %v1326 = vmul.f32 %v1325, %v1324
  %v1327 = vmul.f32 0.5, %v1326
  %v1328 = vsub.f32 1.5, %v1327
  %v1329 = vmul.f32 %v1324, %v1328
  %vm1330 = vweird.f32 %v1322
  %vm1331 = vweird.f32 %v1324
  %vm1332 = vmor %vm1330, %vm1331
  %v1333 = vsel %vm1332, %v1324, %v1329
  %v1334 = vrsqrt.pop %v1323
  %v1335 = vmul.f32 %v1334, %v1323
  %v1336 = vmul.f32 %v1335, %v1334
  %v1337 = vmul.f32 0.5, %v1336
  %v1338 = vsub.f32 1.5, %v1337
  %v1339 = vmul.f32 %v1334, %v1338
  %vm1340 = vweird.f32 %v1323
  %vm1341 = vweird.f32 %v1334
  %vm1342 = vmor %vm1340, %vm1341
  %v1343 = vsel %vm1342, %v1334, %v1339
  %v1344 = vmul.f32 %v1316, %v1333
  %v1345 = vmul.f32 %v1317, %v1343
  %v1346 = vperm.slane %v140, 2
  %v1347 = vmul.f32 %v1344, %v1346
  %v1348 = vmul.f32 %v1345, %v1346
  %v1349 = vperm.slane %v141, 2
  %v1350 = vadd.f32 %v1347, %v1349
  %v1351 = vadd.f32 %v1348, %v1349
  %s1352 = scalar_lea.vmem %s19, 4
  %v1353 = vld [vmem:[%s1352] sm:$0x7]
  %s1354 = scalar_lea.vmem %s20, 4
  %v1355 = vld [vmem:[%s1354] sm:$0x7]
  %s1356 = scalar_lea.vmem %s5, 32
  %v1357 = vld [vmem:[%s1356] sm:$0xff]
  %v1358 = vld [vmem:[%s1356 + $0x8] sm:$0xff]
  %v1359 = vld [vmem:[%s1356 + $0x10] sm:$0xff]
  %v1360 = vld [vmem:[%s1356 + $0x18] sm:$0xff]
  %s1361 = scalar_lea.vmem %s6, 1
  %v1362 = vld [vmem:[%s1361] sm:$0x1]
  %v1364 = vperm.slane %v1362, 0
  %v1367 = vsel %vm110, %v1350, 0
  %v1370 = vsel %vm110, %v1351, 0
  %1372 = vmatpush.msra.mxu0 0.0
  %1373 = vmatpush.msra.mxu0 0.0
  %1374 = vmatpush.msra.mxu0 0.0
  %1375 = vmatpush.msra.mxu0 0.0
  %1376 = vmatpush.msra.mxu0 0.0
  %1377 = vmatpush.msra.mxu0 0.0
  %1378 = vmatpush.msra.mxu0 0.0
  %1379 = vmatpush.msra.mxu0 0.0
  %1380 = vmatpush.msra.mxu0 0.0
  %1381 = vmatpush.msra.mxu0 0.0
  %1382 = vmatpush.msra.mxu0 0.0
  %1383 = vmatpush.msra.mxu0 0.0
  %1384 = vmatpush.msra.mxu0 %v1360
  %1385 = vmatpush.msra.mxu0 %v1359
  %1386 = vmatpush.msra.mxu0 %v1358
  %1387 = vmatpush.msra.mxu0 %v1357
  %1388 = vmatmul.f32.gmra.mxu0 %v1367
  %v1389 = vpop.f32.mrf.mxu0
  %v1390 = vadd.f32 %v1364, %v1389
  %1391 = vmatmul.f32.gmra.mxu0 %v1370
  %v1392 = vpop.f32.mrf.mxu0
  %v1393 = vadd.f32 %v1364, %v1392
  %1394 = vdwg.mxu0
  %s1395 = scalar_lea.vmem %s7, 32
  %v1396 = vld [vmem:[%s1395] sm:$0xff]
  %v1397 = vld [vmem:[%s1395 + $0x8] sm:$0xff]
  %v1398 = vld [vmem:[%s1395 + $0x10] sm:$0xff]
  %v1399 = vld [vmem:[%s1395 + $0x18] sm:$0xff]
  %s1400 = scalar_lea.vmem %s8, 1
  %v1401 = vld [vmem:[%s1400] sm:$0x1]
  %v1402 = vmul.f32 %v1390, %v94
  %v1403 = vmul.f32 %v1393, %v95
  %v1404 = vmul.f32 %v1390, %v96
  %v1405 = vmul.f32 %v1393, %v97
  %v1406 = vmul.f32 %v1390, %v98
  %v1407 = vmul.f32 %v1393, %v99
  %v1408 = vmul.f32 %v1390, %v100
  %v1409 = vmul.f32 %v1393, %v101
  %1412 = vrot.lane.b32.xlu0 %v1390, 96
  %v1413 = vpop.permute.xlu0 %1412
  %1414 = vrot.lane.b32.xlu0 %v1393, 96
  %v1415 = vpop.permute.xlu0 %1414
  %v1417 = vsel %vm110, %v1402, 0
  %v1420 = vsel %vm110, %v1403, 0
  %v1423 = vsel %vm110, %v1404, 0
  %v1426 = vsel %vm110, %v1405, 0
  %v1429 = vsel %vm110, %v1406, 0
  %v1432 = vsel %vm110, %v1407, 0
  %v1435 = vsel %vm110, %v1408, 0
  %v1438 = vsel %vm110, %v1409, 0
  %v1440 = vsel %vm110, %v1413, 0
  %v1442 = vsel %vm110, %v1415, 0
  %1444 = vmatpush.xpose.msra.mxu0 0.0
  %1445 = vmatpush.xpose.msra.mxu0 0.0
  %1446 = vmatpush.xpose.msra.mxu0 0.0
  %1447 = vmatpush.xpose.msra.mxu0 0.0
  %1448 = vmatpush.xpose.msra.mxu0 0.0
  %1449 = vmatpush.xpose.msra.mxu0 0.0
  %1450 = vmatpush.xpose.msra.mxu0 0.0
  %1451 = vmatpush.xpose.msra.mxu0 0.0
  %1452 = vmatpush.xpose.msra.mxu0 0.0
  %1453 = vmatpush.xpose.msra.mxu0 0.0
  %1454 = vmatpush.xpose.msra.mxu0 0.0
  %1455 = vmatpush.xpose.msra.mxu0 0.0
  %1456 = vmatpush.xpose.msra.mxu0 0.0
  %1457 = vmatpush.xpose.msra.mxu0 0.0
  %1458 = vmatpush.xpose.msra.mxu0 %v1442
  %1459 = vmatpush.xpose.msra.mxu0 %v1440
  %1460 = vmatmul.f32.gmra.mxu0 %v1417
  %v1461 = vpop.f32.mrf.mxu0
  %v1462 = vadd.f32 %v78, %v1461
  %1463 = vmatmul.f32.gmra.mxu0 %v1420
  %v1464 = vpop.f32.mrf.mxu0
  %v1465 = vadd.f32 %v79, %v1464
  %1466 = vmatmul.f32.gmra.mxu0 %v1423
  %v1467 = vpop.f32.mrf.mxu0
  %v1468 = vadd.f32 %v80, %v1467
  %1469 = vmatmul.f32.gmra.mxu0 %v1426
  %v1470 = vpop.f32.mrf.mxu0
  %v1471 = vadd.f32 %v81, %v1470
  %1472 = vmatmul.f32.gmra.mxu0 %v1429
  %v1473 = vpop.f32.mrf.mxu0
  %v1474 = vadd.f32 %v82, %v1473
  %1475 = vmatmul.f32.gmra.mxu0 %v1432
  %v1476 = vpop.f32.mrf.mxu0
  %v1477 = vadd.f32 %v83, %v1476
  %1478 = vmatmul.f32.gmra.mxu0 %v1435
  %v1479 = vpop.f32.mrf.mxu0
  %v1480 = vadd.f32 %v84, %v1479
  %1481 = vmatmul.f32.gmra.mxu0 %v1438
  %v1482 = vpop.f32.mrf.mxu0
  %v1483 = vadd.f32 %v85, %v1482
  %1484 = vdwg.mxu0
  %v1485 = vsel %vm267, %v1462, -inf
  %1486 = vmax.xlane.f32.xlu0 %v1485
  %v1487 = vpop.xlane.xlu0 %1486
  %v1488 = vsel %vm267, %v1465, -inf
  %1489 = vmax.xlane.f32.xlu0 %v1488
  %v1490 = vpop.xlane.xlu0 %1489
  %v1491 = vsel %vm267, %v1468, -inf
  %1492 = vmax.xlane.f32.xlu0 %v1491
  %v1493 = vpop.xlane.xlu0 %1492
  %v1494 = vsel %vm267, %v1471, -inf
  %1495 = vmax.xlane.f32.xlu0 %v1494
  %v1496 = vpop.xlane.xlu0 %1495
  %v1497 = vsel %vm267, %v1474, -inf
  %1498 = vmax.xlane.f32.xlu0 %v1497
  %v1499 = vpop.xlane.xlu0 %1498
  %v1500 = vsel %vm267, %v1477, -inf
  %1501 = vmax.xlane.f32.xlu0 %v1500
  %v1502 = vpop.xlane.xlu0 %1501
  %v1503 = vsel %vm267, %v1480, -inf
  %1504 = vmax.xlane.f32.xlu0 %v1503
  %v1505 = vpop.xlane.xlu0 %1504
  %v1506 = vsel %vm267, %v1483, -inf
  %1507 = vmax.xlane.f32.xlu0 %v1506
  %v1508 = vpop.xlane.xlu0 %1507
  %v1509 = vsub.f32 %v1462, %v1487
  %v1510 = vsub.f32 %v1465, %v1490
  %v1511 = vsub.f32 %v1468, %v1493
  %v1512 = vsub.f32 %v1471, %v1496
  %v1513 = vsub.f32 %v1474, %v1499
  %v1514 = vsub.f32 %v1477, %v1502
  %v1515 = vsub.f32 %v1480, %v1505
  %v1516 = vsub.f32 %v1483, %v1508
  %v1517 = vmul.f32 %v1509, 1.442695
  %v1518 = vpow.pop %v1517
  %v1519 = vmul.f32 %v1510, 1.442695
  %v1520 = vpow.pop %v1519
  %v1521 = vmul.f32 %v1511, 1.442695
  %v1522 = vpow.pop %v1521
  %v1523 = vmul.f32 %v1512, 1.442695
  %v1524 = vpow.pop %v1523
  %v1525 = vmul.f32 %v1513, 1.442695
  %v1526 = vpow.pop %v1525
  %v1527 = vmul.f32 %v1514, 1.442695
  %v1528 = vpow.pop %v1527
  %v1529 = vmul.f32 %v1515, 1.442695
  %v1530 = vpow.pop %v1529
  %v1531 = vmul.f32 %v1516, 1.442695
  %v1532 = vpow.pop %v1531
  %v1533 = vsel %vm267, %v1518, 0.0
  %1534 = vadd.xlane.f32.xlu0 %v1533
  %v1535 = vpop.xlane.xlu0 %1534
  %v1536 = vsel %vm267, %v1520, 0.0
  %1537 = vadd.xlane.f32.xlu0 %v1536
  %v1538 = vpop.xlane.xlu0 %1537
  %v1539 = vsel %vm267, %v1522, 0.0
  %1540 = vadd.xlane.f32.xlu0 %v1539
  %v1541 = vpop.xlane.xlu0 %1540
  %v1542 = vsel %vm267, %v1524, 0.0
  %1543 = vadd.xlane.f32.xlu0 %v1542
  %v1544 = vpop.xlane.xlu0 %1543
  %v1545 = vsel %vm267, %v1526, 0.0
  %1546 = vadd.xlane.f32.xlu0 %v1545
  %v1547 = vpop.xlane.xlu0 %1546
  %v1548 = vsel %vm267, %v1528, 0.0
  %1549 = vadd.xlane.f32.xlu0 %v1548
  %v1550 = vpop.xlane.xlu0 %1549
  %v1551 = vsel %vm267, %v1530, 0.0
  %1552 = vadd.xlane.f32.xlu0 %v1551
  %v1553 = vpop.xlane.xlu0 %1552
  %v1554 = vsel %vm267, %v1532, 0.0
  %1555 = vadd.xlane.f32.xlu0 %v1554
  %v1556 = vpop.xlane.xlu0 %1555
  %v1557 = vrcp.pop %v1535
  %v1558 = vrcp.pop %v1538
  %v1559 = vrcp.pop %v1541
  %v1560 = vrcp.pop %v1544
  %v1561 = vrcp.pop %v1547
  %v1562 = vrcp.pop %v1550
  %v1563 = vrcp.pop %v1553
  %v1564 = vrcp.pop %v1556
  %v1565 = vmul.f32 %v1518, %v1557
  %v1566 = vmul.f32 %v1520, %v1558
  %v1567 = vmul.f32 %v1522, %v1559
  %v1568 = vmul.f32 %v1524, %v1560
  %v1569 = vmul.f32 %v1526, %v1561
  %v1570 = vmul.f32 %v1528, %v1562
  %v1571 = vmul.f32 %v1530, %v1563
  %v1572 = vmul.f32 %v1532, %v1564
  %1573 = vrot.lane.b32.xlu0 %v1390, 64
  %v1574 = vpop.permute.xlu0 %1573
  %1575 = vrot.lane.b32.xlu0 %v1393, 64
  %v1576 = vpop.permute.xlu0 %1575
  %v1580 = vsel %vm267, %v1565, 0
  %v1583 = vsel %vm267, %v1566, 0
  %1585 = vmatpush.msra.mxu0 0.0
  %1586 = vmatpush.msra.mxu0 0.0
  %1587 = vmatpush.msra.mxu0 0.0
  %1588 = vmatpush.msra.mxu0 0.0
  %1589 = vmatpush.msra.mxu0 0.0
  %1590 = vmatpush.msra.mxu0 0.0
  %1591 = vmatpush.msra.mxu0 0.0
  %1592 = vmatpush.msra.mxu0 0.0
  %1593 = vmatpush.msra.mxu0 0.0
  %1594 = vmatpush.msra.mxu0 0.0
  %1595 = vmatpush.msra.mxu0 0.0
  %1596 = vmatpush.msra.mxu0 0.0
  %1597 = vmatpush.msra.mxu0 0.0
  %1598 = vmatpush.msra.mxu0 0.0
  %1599 = vmatpush.msra.mxu0 %v1576
  %1600 = vmatpush.msra.mxu0 %v1574
  %1601 = vmatmul.f32.gmra.mxu0 %v1580
  %v1602 = vpop.f32.mrf.mxu0
  %v1603 = vadd.f32 0.0, %v1602
  %1604 = vmatmul.f32.gmra.mxu0 %v1583
  %v1605 = vpop.f32.mrf.mxu0
  %v1606 = vadd.f32 0.0, %v1605
  %1607 = vdwg.mxu0
  %1608 = vrot.lane.b32.xlu0 %v1390, 56
  %v1609 = vpop.permute.xlu0 %1608
  %1610 = vrot.lane.b32.xlu0 %v1393, 56
  %v1611 = vpop.permute.xlu0 %1610
  %v1615 = vsel %vm267, %v1567, 0
  %v1618 = vsel %vm267, %v1568, 0
  %1620 = vmatpush.msra.mxu0 0.0
  %1621 = vmatpush.msra.mxu0 0.0
  %1622 = vmatpush.msra.mxu0 0.0
  %1623 = vmatpush.msra.mxu0 0.0
  %1624 = vmatpush.msra.mxu0 0.0
  %1625 = vmatpush.msra.mxu0 0.0
  %1626 = vmatpush.msra.mxu0 0.0
  %1627 = vmatpush.msra.mxu0 0.0
  %1628 = vmatpush.msra.mxu0 0.0
  %1629 = vmatpush.msra.mxu0 0.0
  %1630 = vmatpush.msra.mxu0 0.0
  %1631 = vmatpush.msra.mxu0 0.0
  %1632 = vmatpush.msra.mxu0 0.0
  %1633 = vmatpush.msra.mxu0 0.0
  %1634 = vmatpush.msra.mxu0 %v1611
  %1635 = vmatpush.msra.mxu0 %v1609
  %1636 = vmatmul.f32.gmra.mxu0 %v1615
  %v1637 = vpop.f32.mrf.mxu0
  %v1638 = vadd.f32 0.0, %v1637
  %1639 = vmatmul.f32.gmra.mxu0 %v1618
  %v1640 = vpop.f32.mrf.mxu0
  %v1641 = vadd.f32 0.0, %v1640
  %1642 = vdwg.mxu0
  %v1644 = vsel %vm426, %v1638, 0
  %v1647 = vsel %vm426, %v1641, 0
  %1649 = vmatpush.msra.mxu0 0.0
  %1650 = vmatpush.msra.mxu0 0.0
  %1651 = vmatpush.msra.mxu0 0.0
  %1652 = vmatpush.msra.mxu0 0.0
  %1653 = vmatpush.msra.mxu0 0.0
  %1654 = vmatpush.msra.mxu0 0.0
  %1655 = vmatpush.msra.mxu0 0.0
  %1656 = vmatpush.msra.mxu0 0.0
  %1657 = vmatpush.msra.mxu0 0.0
  %1658 = vmatpush.msra.mxu0 0.0
  %1659 = vmatpush.msra.mxu0 0.0
  %1660 = vmatpush.msra.mxu0 0.0
  %1661 = vmatpush.msra.mxu0 0.0
  %1662 = vmatpush.msra.mxu0 0.0
  %1663 = vmatpush.msra.mxu0 0.0
  %1664 = vmatpush.msra.mxu0 %v1397
  %1665 = vmatmul.f32.gmra.mxu0 %v1644
  %v1666 = vpop.f32.mrf.mxu0
  %v1667 = vadd.f32 0.0, %v1666
  %1668 = vmatmul.f32.gmra.mxu0 %v1647
  %v1669 = vpop.f32.mrf.mxu0
  %v1670 = vadd.f32 0.0, %v1669
  %1671 = vdwg.mxu0
  %v1673 = vsel %vm426, %v1603, 0
  %v1676 = vsel %vm426, %v1606, 0
  %1678 = vmatpush.msra.mxu0 0.0
  %1679 = vmatpush.msra.mxu0 0.0
  %1680 = vmatpush.msra.mxu0 0.0
  %1681 = vmatpush.msra.mxu0 0.0
  %1682 = vmatpush.msra.mxu0 0.0
  %1683 = vmatpush.msra.mxu0 0.0
  %1684 = vmatpush.msra.mxu0 0.0
  %1685 = vmatpush.msra.mxu0 0.0
  %1686 = vmatpush.msra.mxu0 0.0
  %1687 = vmatpush.msra.mxu0 0.0
  %1688 = vmatpush.msra.mxu0 0.0
  %1689 = vmatpush.msra.mxu0 0.0
  %1690 = vmatpush.msra.mxu0 0.0
  %1691 = vmatpush.msra.mxu0 0.0
  %1692 = vmatpush.msra.mxu0 0.0
  %1693 = vmatpush.msra.mxu0 %v1396
  %1694 = vmatmul.f32.gmra.mxu0 %v1673
  %v1695 = vpop.f32.mrf.mxu0
  %v1696 = vadd.f32 %v1667, %v1695
  %1697 = vmatmul.f32.gmra.mxu0 %v1676
  %v1698 = vpop.f32.mrf.mxu0
  %v1699 = vadd.f32 %v1670, %v1698
  %1700 = vdwg.mxu0
  %1701 = vrot.lane.b32.xlu0 %v1390, 48
  %v1702 = vpop.permute.xlu0 %1701
  %1703 = vrot.lane.b32.xlu0 %v1393, 48
  %v1704 = vpop.permute.xlu0 %1703
  %v1708 = vsel %vm267, %v1569, 0
  %v1711 = vsel %vm267, %v1570, 0
  %1713 = vmatpush.msra.mxu0 0.0
  %1714 = vmatpush.msra.mxu0 0.0
  %1715 = vmatpush.msra.mxu0 0.0
  %1716 = vmatpush.msra.mxu0 0.0
  %1717 = vmatpush.msra.mxu0 0.0
  %1718 = vmatpush.msra.mxu0 0.0
  %1719 = vmatpush.msra.mxu0 0.0
  %1720 = vmatpush.msra.mxu0 0.0
  %1721 = vmatpush.msra.mxu0 0.0
  %1722 = vmatpush.msra.mxu0 0.0
  %1723 = vmatpush.msra.mxu0 0.0
  %1724 = vmatpush.msra.mxu0 0.0
  %1725 = vmatpush.msra.mxu0 0.0
  %1726 = vmatpush.msra.mxu0 0.0
  %1727 = vmatpush.msra.mxu0 %v1704
  %1728 = vmatpush.msra.mxu0 %v1702
  %1729 = vmatmul.f32.gmra.mxu0 %v1708
  %v1730 = vpop.f32.mrf.mxu0
  %v1731 = vadd.f32 0.0, %v1730
  %1732 = vmatmul.f32.gmra.mxu0 %v1711
  %v1733 = vpop.f32.mrf.mxu0
  %v1734 = vadd.f32 0.0, %v1733
  %1735 = vdwg.mxu0
  %v1737 = vsel %vm426, %v1731, 0
  %v1740 = vsel %vm426, %v1734, 0
  %1742 = vmatpush.msra.mxu0 0.0
  %1743 = vmatpush.msra.mxu0 0.0
  %1744 = vmatpush.msra.mxu0 0.0
  %1745 = vmatpush.msra.mxu0 0.0
  %1746 = vmatpush.msra.mxu0 0.0
  %1747 = vmatpush.msra.mxu0 0.0
  %1748 = vmatpush.msra.mxu0 0.0
  %1749 = vmatpush.msra.mxu0 0.0
  %1750 = vmatpush.msra.mxu0 0.0
  %1751 = vmatpush.msra.mxu0 0.0
  %1752 = vmatpush.msra.mxu0 0.0
  %1753 = vmatpush.msra.mxu0 0.0
  %1754 = vmatpush.msra.mxu0 0.0
  %1755 = vmatpush.msra.mxu0 0.0
  %1756 = vmatpush.msra.mxu0 0.0
  %1757 = vmatpush.msra.mxu0 %v1398
  %1758 = vmatmul.f32.gmra.mxu0 %v1737
  %v1759 = vpop.f32.mrf.mxu0
  %v1760 = vadd.f32 0.0, %v1759
  %1761 = vmatmul.f32.gmra.mxu0 %v1740
  %v1762 = vpop.f32.mrf.mxu0
  %v1763 = vadd.f32 0.0, %v1762
  %1764 = vdwg.mxu0
  %v1765 = vadd.f32 %v1696, %v1760
  %v1766 = vadd.f32 %v1699, %v1763
  %1767 = vrot.lane.b32.xlu0 %v1390, 40
  %v1768 = vpop.permute.xlu0 %1767
  %1769 = vrot.lane.b32.xlu0 %v1393, 40
  %v1770 = vpop.permute.xlu0 %1769
  %v1774 = vsel %vm267, %v1571, 0
  %v1777 = vsel %vm267, %v1572, 0
  %1779 = vmatpush.msra.mxu0 0.0
  %1780 = vmatpush.msra.mxu0 0.0
  %1781 = vmatpush.msra.mxu0 0.0
  %1782 = vmatpush.msra.mxu0 0.0
  %1783 = vmatpush.msra.mxu0 0.0
  %1784 = vmatpush.msra.mxu0 0.0
  %1785 = vmatpush.msra.mxu0 0.0
  %1786 = vmatpush.msra.mxu0 0.0
  %1787 = vmatpush.msra.mxu0 0.0
  %1788 = vmatpush.msra.mxu0 0.0
  %1789 = vmatpush.msra.mxu0 0.0
  %1790 = vmatpush.msra.mxu0 0.0
  %1791 = vmatpush.msra.mxu0 0.0
  %1792 = vmatpush.msra.mxu0 0.0
  %1793 = vmatpush.msra.mxu0 %v1770
  %1794 = vmatpush.msra.mxu0 %v1768
  %1795 = vmatmul.f32.gmra.mxu0 %v1774
  %v1796 = vpop.f32.mrf.mxu0
  %v1797 = vadd.f32 0.0, %v1796
  %1798 = vmatmul.f32.gmra.mxu0 %v1777
  %v1799 = vpop.f32.mrf.mxu0
  %v1800 = vadd.f32 0.0, %v1799
  %1801 = vdwg.mxu0
  %v1803 = vsel %vm426, %v1797, 0
  %v1806 = vsel %vm426, %v1800, 0
  %1808 = vmatpush.msra.mxu0 0.0
  %1809 = vmatpush.msra.mxu0 0.0
  %1810 = vmatpush.msra.mxu0 0.0
  %1811 = vmatpush.msra.mxu0 0.0
  %1812 = vmatpush.msra.mxu0 0.0
  %1813 = vmatpush.msra.mxu0 0.0
  %1814 = vmatpush.msra.mxu0 0.0
  %1815 = vmatpush.msra.mxu0 0.0
  %1816 = vmatpush.msra.mxu0 0.0
  %1817 = vmatpush.msra.mxu0 0.0
  %1818 = vmatpush.msra.mxu0 0.0
  %1819 = vmatpush.msra.mxu0 0.0
  %1820 = vmatpush.msra.mxu0 0.0
  %1821 = vmatpush.msra.mxu0 0.0
  %1822 = vmatpush.msra.mxu0 0.0
  %1823 = vmatpush.msra.mxu0 %v1399
  %1824 = vmatmul.f32.gmra.mxu0 %v1803
  %v1825 = vpop.f32.mrf.mxu0
  %v1826 = vadd.f32 0.0, %v1825
  %1827 = vmatmul.f32.gmra.mxu0 %v1806
  %v1828 = vpop.f32.mrf.mxu0
  %v1829 = vadd.f32 0.0, %v1828
  %1830 = vdwg.mxu0
  %v1831 = vadd.f32 %v1765, %v1826
  %v1832 = vadd.f32 %v1766, %v1829
  %v1834 = vperm.slane %v1401, 0
  %v1836 = vadd.f32 %v1831, %v1834
  %v1837 = vadd.f32 %v1832, %v1834
  %v1838 = vadd.f32 %v1350, %v1836
  %v1839 = vadd.f32 %v1351, %v1837
  %v1840 = vsel %vm110, %v1838, 0.0
  %1841 = vadd.xlane.f32.xlu0 %v1840
  %v1842 = vpop.xlane.xlu0 %1841
  %v1843 = vsel %vm110, %v1839, 0.0
  %1844 = vadd.xlane.f32.xlu0 %v1843
  %v1845 = vpop.xlane.xlu0 %1844
  %v1846 = vmul.f32 %v1842, %v636
  %v1847 = vmul.f32 %v1845, %v636
  %v1848 = vmul.f32 %v1838, %v1838
  %v1849 = vmul.f32 %v1839, %v1839
  %v1850 = vsel %vm110, %v1848, 0.0
  %1851 = vadd.xlane.f32.xlu0 %v1850
  %v1852 = vpop.xlane.xlu0 %1851
  %v1853 = vsel %vm110, %v1849, 0.0
  %1854 = vadd.xlane.f32.xlu0 %v1853
  %v1855 = vpop.xlane.xlu0 %1854
  %v1856 = vmul.f32 %v1852, %v636
  %v1857 = vmul.f32 %v1855, %v636
  %v1858 = vsub.f32 %v1838, %v1846
  %v1859 = vsub.f32 %v1839, %v1847
  %v1860 = vmul.f32 %v1846, %v1846
  %v1861 = vmul.f32 %v1847, %v1847
  %v1862 = vsub.f32 %v1856, %v1860
  %v1863 = vsub.f32 %v1857, %v1861
  %v1864 = vadd.f32 %v1862, 1e-05
  %v1865 = vadd.f32 %v1863, 1e-05
  %v1866 = vrsqrt.pop %v1864
  %v1867 = vmul.f32 %v1866, %v1864
  %v1868 = vmul.f32 %v1867, %v1866
  %v1869 = vmul.f32 0.5, %v1868
  %v1870 = vsub.f32 1.5, %v1869
  %v1871 = vmul.f32 %v1866, %v1870
  %vm1872 = vweird.f32 %v1864
  %vm1873 = vweird.f32 %v1866
  %vm1874 = vmor %vm1872, %vm1873
  %v1875 = vsel %vm1874, %v1866, %v1871
  %v1876 = vrsqrt.pop %v1865
  %v1877 = vmul.f32 %v1876, %v1865
  %v1878 = vmul.f32 %v1877, %v1876
  %v1879 = vmul.f32 0.5, %v1878
  %v1880 = vsub.f32 1.5, %v1879
  %v1881 = vmul.f32 %v1876, %v1880
  %vm1882 = vweird.f32 %v1865
  %vm1883 = vweird.f32 %v1876
  %vm1884 = vmor %vm1882, %vm1883
  %v1885 = vsel %vm1884, %v1876, %v1881
  %v1886 = vmul.f32 %v1858, %v1875
  %v1887 = vmul.f32 %v1859, %v1885
  %v1888 = vperm.slane %v1353, 0
  %v1889 = vmul.f32 %v1886, %v1888
  %v1890 = vmul.f32 %v1887, %v1888
  %v1891 = vperm.slane %v1355, 0
  %v1892 = vadd.f32 %v1889, %v1891
  %v1893 = vadd.f32 %v1890, %v1891
  %s1894 = scalar_lea.vmem %s9, 32
  %v1895 = vld [vmem:[%s1894] sm:$0xff]
  %v1896 = vld [vmem:[%s1894 + $0x8] sm:$0xff]
  %v1897 = vld [vmem:[%s1894 + $0x10] sm:$0xff]
  %v1898 = vld [vmem:[%s1894 + $0x18] sm:$0xff]
  %s1899 = scalar_lea.vmem %s10, 1
  %v1900 = vld [vmem:[%s1899] sm:$0x1]
  %v1902 = vperm.slane %v1900, 0
  %v1905 = vsel %vm110, %v1892, 0
  %v1908 = vsel %vm110, %v1893, 0
  %1910 = vmatpush.msra.mxu0 0.0
  %1911 = vmatpush.msra.mxu0 0.0
  %1912 = vmatpush.msra.mxu0 0.0
  %1913 = vmatpush.msra.mxu0 0.0
  %1914 = vmatpush.msra.mxu0 0.0
  %1915 = vmatpush.msra.mxu0 0.0
  %1916 = vmatpush.msra.mxu0 0.0
  %1917 = vmatpush.msra.mxu0 0.0
  %1918 = vmatpush.msra.mxu0 0.0
  %1919 = vmatpush.msra.mxu0 0.0
  %1920 = vmatpush.msra.mxu0 0.0
  %1921 = vmatpush.msra.mxu0 0.0
  %1922 = vmatpush.msra.mxu0 %v1898
  %1923 = vmatpush.msra.mxu0 %v1897
  %1924 = vmatpush.msra.mxu0 %v1896
  %1925 = vmatpush.msra.mxu0 %v1895
  %1926 = vmatmul.f32.gmra.mxu0 %v1905
  %v1927 = vpop.f32.mrf.mxu0
  %v1928 = vadd.f32 %v1902, %v1927
  %1929 = vmatmul.f32.gmra.mxu0 %v1908
  %v1930 = vpop.f32.mrf.mxu0
  %v1931 = vadd.f32 %v1902, %v1930
  %1932 = vdwg.mxu0
  %s1933 = scalar_lea.vmem %s13, 32
  %v1934 = vld [vmem:[%s1933] sm:$0xff]
  %v1935 = vld [vmem:[%s1933 + $0x8] sm:$0xff]
  %v1936 = vld [vmem:[%s1933 + $0x10] sm:$0xff]
  %v1937 = vld [vmem:[%s1933 + $0x18] sm:$0xff]
  %s1938 = scalar_lea.vmem %s14, 1
  %v1939 = vld [vmem:[%s1938] sm:$0x1]
  %v1940 = vmul.f32 %v1928, %v94
  %v1941 = vmul.f32 %v1931, %v95
  %v1942 = vmul.f32 %v1928, %v96
  %v1943 = vmul.f32 %v1931, %v97
  %v1944 = vmul.f32 %v1928, %v98
  %v1945 = vmul.f32 %v1931, %v99
  %v1946 = vmul.f32 %v1928, %v100
  %v1947 = vmul.f32 %v1931, %v101
  %1948 = vrot.lane.b32.xlu0 %v135, 64
  %v1949 = vpop.permute.xlu0 %1948
  %1950 = vrot.lane.b32.xlu0 %v138, 64
  %v1951 = vpop.permute.xlu0 %1950
  %v1953 = vsel %vm110, %v1940, 0
  %v1956 = vsel %vm110, %v1941, 0
  %v1959 = vsel %vm110, %v1942, 0
  %v1962 = vsel %vm110, %v1943, 0
  %v1965 = vsel %vm110, %v1944, 0
  %v1968 = vsel %vm110, %v1945, 0
  %v1971 = vsel %vm110, %v1946, 0
  %v1974 = vsel %vm110, %v1947, 0
  %v1976 = vsel %vm110, %v1949, 0
  %v1978 = vsel %vm110, %v1951, 0
  %1980 = vmatpush.xpose.msra.mxu0 0.0
  %1981 = vmatpush.xpose.msra.mxu0 0.0
  %1982 = vmatpush.xpose.msra.mxu0 0.0
  %1983 = vmatpush.xpose.msra.mxu0 0.0
  %1984 = vmatpush.xpose.msra.mxu0 0.0
  %1985 = vmatpush.xpose.msra.mxu0 0.0
  %1986 = vmatpush.xpose.msra.mxu0 0.0
  %1987 = vmatpush.xpose.msra.mxu0 0.0
  %1988 = vmatpush.xpose.msra.mxu0 0.0
  %1989 = vmatpush.xpose.msra.mxu0 0.0
  %1990 = vmatpush.xpose.msra.mxu0 0.0
  %1991 = vmatpush.xpose.msra.mxu0 0.0
  %1992 = vmatpush.xpose.msra.mxu0 0.0
  %1993 = vmatpush.xpose.msra.mxu0 0.0
  %1994 = vmatpush.xpose.msra.mxu0 %v1978
  %1995 = vmatpush.xpose.msra.mxu0 %v1976
  %1996 = vmatmul.f32.gmra.mxu0 %v1953
  %v1997 = vpop.f32.mrf.mxu0
  %v1998 = vadd.f32 %v86, %v1997
  %1999 = vmatmul.f32.gmra.mxu0 %v1956
  %v2000 = vpop.f32.mrf.mxu0
  %v2001 = vadd.f32 %v87, %v2000
  %2002 = vmatmul.f32.gmra.mxu0 %v1959
  %v2003 = vpop.f32.mrf.mxu0
  %v2004 = vadd.f32 %v88, %v2003
  %2005 = vmatmul.f32.gmra.mxu0 %v1962
  %v2006 = vpop.f32.mrf.mxu0
  %v2007 = vadd.f32 %v89, %v2006
  %2008 = vmatmul.f32.gmra.mxu0 %v1965
  %v2009 = vpop.f32.mrf.mxu0
  %v2010 = vadd.f32 %v90, %v2009
  %2011 = vmatmul.f32.gmra.mxu0 %v1968
  %v2012 = vpop.f32.mrf.mxu0
  %v2013 = vadd.f32 %v91, %v2012
  %2014 = vmatmul.f32.gmra.mxu0 %v1971
  %v2015 = vpop.f32.mrf.mxu0
  %v2016 = vadd.f32 %v92, %v2015
  %2017 = vmatmul.f32.gmra.mxu0 %v1974
  %v2018 = vpop.f32.mrf.mxu0
  %v2019 = vadd.f32 %v93, %v2018
  %2020 = vdwg.mxu0
  %v2021 = vsel %vm267, %v1998, -inf
  %2022 = vmax.xlane.f32.xlu0 %v2021
  %v2023 = vpop.xlane.xlu0 %2022
  %v2024 = vsel %vm267, %v2001, -inf
  %2025 = vmax.xlane.f32.xlu0 %v2024
  %v2026 = vpop.xlane.xlu0 %2025
  %v2027 = vsel %vm267, %v2004, -inf
  %2028 = vmax.xlane.f32.xlu0 %v2027
  %v2029 = vpop.xlane.xlu0 %2028
  %v2030 = vsel %vm267, %v2007, -inf
  %2031 = vmax.xlane.f32.xlu0 %v2030
  %v2032 = vpop.xlane.xlu0 %2031
  %v2033 = vsel %vm267, %v2010, -inf
  %2034 = vmax.xlane.f32.xlu0 %v2033
  %v2035 = vpop.xlane.xlu0 %2034
  %v2036 = vsel %vm267, %v2013, -inf
  %2037 = vmax.xlane.f32.xlu0 %v2036
  %v2038 = vpop.xlane.xlu0 %2037
  %v2039 = vsel %vm267, %v2016, -inf
  %2040 = vmax.xlane.f32.xlu0 %v2039
  %v2041 = vpop.xlane.xlu0 %2040
  %v2042 = vsel %vm267, %v2019, -inf
  %2043 = vmax.xlane.f32.xlu0 %v2042
  %v2044 = vpop.xlane.xlu0 %2043
  %v2045 = vsub.f32 %v1998, %v2023
  %v2046 = vsub.f32 %v2001, %v2026
  %v2047 = vsub.f32 %v2004, %v2029
  %v2048 = vsub.f32 %v2007, %v2032
  %v2049 = vsub.f32 %v2010, %v2035
  %v2050 = vsub.f32 %v2013, %v2038
  %v2051 = vsub.f32 %v2016, %v2041
  %v2052 = vsub.f32 %v2019, %v2044
  %v2053 = vmul.f32 %v2045, 1.442695
  %v2054 = vpow.pop %v2053
  %v2055 = vmul.f32 %v2046, 1.442695
  %v2056 = vpow.pop %v2055
  %v2057 = vmul.f32 %v2047, 1.442695
  %v2058 = vpow.pop %v2057
  %v2059 = vmul.f32 %v2048, 1.442695
  %v2060 = vpow.pop %v2059
  %v2061 = vmul.f32 %v2049, 1.442695
  %v2062 = vpow.pop %v2061
  %v2063 = vmul.f32 %v2050, 1.442695
  %v2064 = vpow.pop %v2063
  %v2065 = vmul.f32 %v2051, 1.442695
  %v2066 = vpow.pop %v2065
  %v2067 = vmul.f32 %v2052, 1.442695
  %v2068 = vpow.pop %v2067
  %v2069 = vsel %vm267, %v2054, 0.0
  %2070 = vadd.xlane.f32.xlu0 %v2069
  %v2071 = vpop.xlane.xlu0 %2070
  %v2072 = vsel %vm267, %v2056, 0.0
  %2073 = vadd.xlane.f32.xlu0 %v2072
  %v2074 = vpop.xlane.xlu0 %2073
  %v2075 = vsel %vm267, %v2058, 0.0
  %2076 = vadd.xlane.f32.xlu0 %v2075
  %v2077 = vpop.xlane.xlu0 %2076
  %v2078 = vsel %vm267, %v2060, 0.0
  %2079 = vadd.xlane.f32.xlu0 %v2078
  %v2080 = vpop.xlane.xlu0 %2079
  %v2081 = vsel %vm267, %v2062, 0.0
  %2082 = vadd.xlane.f32.xlu0 %v2081
  %v2083 = vpop.xlane.xlu0 %2082
  %v2084 = vsel %vm267, %v2064, 0.0
  %2085 = vadd.xlane.f32.xlu0 %v2084
  %v2086 = vpop.xlane.xlu0 %2085
  %v2087 = vsel %vm267, %v2066, 0.0
  %2088 = vadd.xlane.f32.xlu0 %v2087
  %v2089 = vpop.xlane.xlu0 %2088
  %v2090 = vsel %vm267, %v2068, 0.0
  %2091 = vadd.xlane.f32.xlu0 %v2090
  %v2092 = vpop.xlane.xlu0 %2091
  %v2093 = vrcp.pop %v2071
  %v2094 = vrcp.pop %v2074
  %v2095 = vrcp.pop %v2077
  %v2096 = vrcp.pop %v2080
  %v2097 = vrcp.pop %v2083
  %v2098 = vrcp.pop %v2086
  %v2099 = vrcp.pop %v2089
  %v2100 = vrcp.pop %v2092
  %v2101 = vmul.f32 %v2054, %v2093
  %v2102 = vmul.f32 %v2056, %v2094
  %v2103 = vmul.f32 %v2058, %v2095
  %v2104 = vmul.f32 %v2060, %v2096
  %v2105 = vmul.f32 %v2062, %v2097
  %v2106 = vmul.f32 %v2064, %v2098
  %v2107 = vmul.f32 %v2066, %v2099
  %v2108 = vmul.f32 %v2068, %v2100
  %2109 = vrot.lane.b32.xlu0 %v135, 32
  %v2110 = vpop.permute.xlu0 %2109
  %2111 = vrot.lane.b32.xlu0 %v138, 32
  %v2112 = vpop.permute.xlu0 %2111
  %v2116 = vsel %vm267, %v2101, 0
  %v2119 = vsel %vm267, %v2102, 0
  %2121 = vmatpush.msra.mxu0 0.0
  %2122 = vmatpush.msra.mxu0 0.0
  %2123 = vmatpush.msra.mxu0 0.0
  %2124 = vmatpush.msra.mxu0 0.0
  %2125 = vmatpush.msra.mxu0 0.0
  %2126 = vmatpush.msra.mxu0 0.0
  %2127 = vmatpush.msra.mxu0 0.0
  %2128 = vmatpush.msra.mxu0 0.0
  %2129 = vmatpush.msra.mxu0 0.0
  %2130 = vmatpush.msra.mxu0 0.0
  %2131 = vmatpush.msra.mxu0 0.0
  %2132 = vmatpush.msra.mxu0 0.0
  %2133 = vmatpush.msra.mxu0 0.0
  %2134 = vmatpush.msra.mxu0 0.0
  %2135 = vmatpush.msra.mxu0 %v2112
  %2136 = vmatpush.msra.mxu0 %v2110
  %2137 = vmatmul.f32.gmra.mxu0 %v2116
  %v2138 = vpop.f32.mrf.mxu0
  %v2139 = vadd.f32 0.0, %v2138
  %2140 = vmatmul.f32.gmra.mxu0 %v2119
  %v2141 = vpop.f32.mrf.mxu0
  %v2142 = vadd.f32 0.0, %v2141
  %2143 = vdwg.mxu0
  %2144 = vrot.lane.b32.xlu0 %v135, 24
  %v2145 = vpop.permute.xlu0 %2144
  %2146 = vrot.lane.b32.xlu0 %v138, 24
  %v2147 = vpop.permute.xlu0 %2146
  %v2151 = vsel %vm267, %v2103, 0
  %v2154 = vsel %vm267, %v2104, 0
  %2156 = vmatpush.msra.mxu0 0.0
  %2157 = vmatpush.msra.mxu0 0.0
  %2158 = vmatpush.msra.mxu0 0.0
  %2159 = vmatpush.msra.mxu0 0.0
  %2160 = vmatpush.msra.mxu0 0.0
  %2161 = vmatpush.msra.mxu0 0.0
  %2162 = vmatpush.msra.mxu0 0.0
  %2163 = vmatpush.msra.mxu0 0.0
  %2164 = vmatpush.msra.mxu0 0.0
  %2165 = vmatpush.msra.mxu0 0.0
  %2166 = vmatpush.msra.mxu0 0.0
  %2167 = vmatpush.msra.mxu0 0.0
  %2168 = vmatpush.msra.mxu0 0.0
  %2169 = vmatpush.msra.mxu0 0.0
  %2170 = vmatpush.msra.mxu0 %v2147
  %2171 = vmatpush.msra.mxu0 %v2145
  %2172 = vmatmul.f32.gmra.mxu0 %v2151
  %v2173 = vpop.f32.mrf.mxu0
  %v2174 = vadd.f32 0.0, %v2173
  %2175 = vmatmul.f32.gmra.mxu0 %v2154
  %v2176 = vpop.f32.mrf.mxu0
  %v2177 = vadd.f32 0.0, %v2176
  %2178 = vdwg.mxu0
  %v2180 = vsel %vm426, %v2174, 0
  %v2183 = vsel %vm426, %v2177, 0
  %2185 = vmatpush.msra.mxu0 0.0
  %2186 = vmatpush.msra.mxu0 0.0
  %2187 = vmatpush.msra.mxu0 0.0
  %2188 = vmatpush.msra.mxu0 0.0
  %2189 = vmatpush.msra.mxu0 0.0
  %2190 = vmatpush.msra.mxu0 0.0
  %2191 = vmatpush.msra.mxu0 0.0
  %2192 = vmatpush.msra.mxu0 0.0
  %2193 = vmatpush.msra.mxu0 0.0
  %2194 = vmatpush.msra.mxu0 0.0
  %2195 = vmatpush.msra.mxu0 0.0
  %2196 = vmatpush.msra.mxu0 0.0
  %2197 = vmatpush.msra.mxu0 0.0
  %2198 = vmatpush.msra.mxu0 0.0
  %2199 = vmatpush.msra.mxu0 0.0
  %2200 = vmatpush.msra.mxu0 %v1935
  %2201 = vmatmul.f32.gmra.mxu0 %v2180
  %v2202 = vpop.f32.mrf.mxu0
  %v2203 = vadd.f32 0.0, %v2202
  %2204 = vmatmul.f32.gmra.mxu0 %v2183
  %v2205 = vpop.f32.mrf.mxu0
  %v2206 = vadd.f32 0.0, %v2205
  %2207 = vdwg.mxu0
  %v2209 = vsel %vm426, %v2139, 0
  %v2212 = vsel %vm426, %v2142, 0
  %2214 = vmatpush.msra.mxu0 0.0
  %2215 = vmatpush.msra.mxu0 0.0
  %2216 = vmatpush.msra.mxu0 0.0
  %2217 = vmatpush.msra.mxu0 0.0
  %2218 = vmatpush.msra.mxu0 0.0
  %2219 = vmatpush.msra.mxu0 0.0
  %2220 = vmatpush.msra.mxu0 0.0
  %2221 = vmatpush.msra.mxu0 0.0
  %2222 = vmatpush.msra.mxu0 0.0
  %2223 = vmatpush.msra.mxu0 0.0
  %2224 = vmatpush.msra.mxu0 0.0
  %2225 = vmatpush.msra.mxu0 0.0
  %2226 = vmatpush.msra.mxu0 0.0
  %2227 = vmatpush.msra.mxu0 0.0
  %2228 = vmatpush.msra.mxu0 0.0
  %2229 = vmatpush.msra.mxu0 %v1934
  %2230 = vmatmul.f32.gmra.mxu0 %v2209
  %v2231 = vpop.f32.mrf.mxu0
  %v2232 = vadd.f32 %v2203, %v2231
  %2233 = vmatmul.f32.gmra.mxu0 %v2212
  %v2234 = vpop.f32.mrf.mxu0
  %v2235 = vadd.f32 %v2206, %v2234
  %2236 = vdwg.mxu0
  %2237 = vrot.lane.b32.xlu0 %v135, 16
  %v2238 = vpop.permute.xlu0 %2237
  %2239 = vrot.lane.b32.xlu0 %v138, 16
  %v2240 = vpop.permute.xlu0 %2239
  %v2244 = vsel %vm267, %v2105, 0
  %v2247 = vsel %vm267, %v2106, 0
  %2249 = vmatpush.msra.mxu0 0.0
  %2250 = vmatpush.msra.mxu0 0.0
  %2251 = vmatpush.msra.mxu0 0.0
  %2252 = vmatpush.msra.mxu0 0.0
  %2253 = vmatpush.msra.mxu0 0.0
  %2254 = vmatpush.msra.mxu0 0.0
  %2255 = vmatpush.msra.mxu0 0.0
  %2256 = vmatpush.msra.mxu0 0.0
  %2257 = vmatpush.msra.mxu0 0.0
  %2258 = vmatpush.msra.mxu0 0.0
  %2259 = vmatpush.msra.mxu0 0.0
  %2260 = vmatpush.msra.mxu0 0.0
  %2261 = vmatpush.msra.mxu0 0.0
  %2262 = vmatpush.msra.mxu0 0.0
  %2263 = vmatpush.msra.mxu0 %v2240
  %2264 = vmatpush.msra.mxu0 %v2238
  %2265 = vmatmul.f32.gmra.mxu0 %v2244
  %v2266 = vpop.f32.mrf.mxu0
  %v2267 = vadd.f32 0.0, %v2266
  %2268 = vmatmul.f32.gmra.mxu0 %v2247
  %v2269 = vpop.f32.mrf.mxu0
  %v2270 = vadd.f32 0.0, %v2269
  %2271 = vdwg.mxu0
  %v2273 = vsel %vm426, %v2267, 0
  %v2276 = vsel %vm426, %v2270, 0
  %2278 = vmatpush.msra.mxu0 0.0
  %2279 = vmatpush.msra.mxu0 0.0
  %2280 = vmatpush.msra.mxu0 0.0
  %2281 = vmatpush.msra.mxu0 0.0
  %2282 = vmatpush.msra.mxu0 0.0
  %2283 = vmatpush.msra.mxu0 0.0
  %2284 = vmatpush.msra.mxu0 0.0
  %2285 = vmatpush.msra.mxu0 0.0
  %2286 = vmatpush.msra.mxu0 0.0
  %2287 = vmatpush.msra.mxu0 0.0
  %2288 = vmatpush.msra.mxu0 0.0
  %2289 = vmatpush.msra.mxu0 0.0
  %2290 = vmatpush.msra.mxu0 0.0
  %2291 = vmatpush.msra.mxu0 0.0
  %2292 = vmatpush.msra.mxu0 0.0
  %2293 = vmatpush.msra.mxu0 %v1936
  %2294 = vmatmul.f32.gmra.mxu0 %v2273
  %v2295 = vpop.f32.mrf.mxu0
  %v2296 = vadd.f32 0.0, %v2295
  %2297 = vmatmul.f32.gmra.mxu0 %v2276
  %v2298 = vpop.f32.mrf.mxu0
  %v2299 = vadd.f32 0.0, %v2298
  %2300 = vdwg.mxu0
  %v2301 = vadd.f32 %v2232, %v2296
  %v2302 = vadd.f32 %v2235, %v2299
  %2303 = vrot.lane.b32.xlu0 %v135, 8
  %v2304 = vpop.permute.xlu0 %2303
  %2305 = vrot.lane.b32.xlu0 %v138, 8
  %v2306 = vpop.permute.xlu0 %2305
  %v2310 = vsel %vm267, %v2107, 0
  %v2313 = vsel %vm267, %v2108, 0
  %2315 = vmatpush.msra.mxu0 0.0
  %2316 = vmatpush.msra.mxu0 0.0
  %2317 = vmatpush.msra.mxu0 0.0
  %2318 = vmatpush.msra.mxu0 0.0
  %2319 = vmatpush.msra.mxu0 0.0
  %2320 = vmatpush.msra.mxu0 0.0
  %2321 = vmatpush.msra.mxu0 0.0
  %2322 = vmatpush.msra.mxu0 0.0
  %2323 = vmatpush.msra.mxu0 0.0
  %2324 = vmatpush.msra.mxu0 0.0
  %2325 = vmatpush.msra.mxu0 0.0
  %2326 = vmatpush.msra.mxu0 0.0
  %2327 = vmatpush.msra.mxu0 0.0
  %2328 = vmatpush.msra.mxu0 0.0
  %2329 = vmatpush.msra.mxu0 %v2306
  %2330 = vmatpush.msra.mxu0 %v2304
  %2331 = vmatmul.f32.gmra.mxu0 %v2310
  %v2332 = vpop.f32.mrf.mxu0
  %v2333 = vadd.f32 0.0, %v2332
  %2334 = vmatmul.f32.gmra.mxu0 %v2313
  %v2335 = vpop.f32.mrf.mxu0
  %v2336 = vadd.f32 0.0, %v2335
  %2337 = vdwg.mxu0
  %v2339 = vsel %vm426, %v2333, 0
  %v2342 = vsel %vm426, %v2336, 0
  %2344 = vmatpush.msra.mxu0 0.0
  %2345 = vmatpush.msra.mxu0 0.0
  %2346 = vmatpush.msra.mxu0 0.0
  %2347 = vmatpush.msra.mxu0 0.0
  %2348 = vmatpush.msra.mxu0 0.0
  %2349 = vmatpush.msra.mxu0 0.0
  %2350 = vmatpush.msra.mxu0 0.0
  %2351 = vmatpush.msra.mxu0 0.0
  %2352 = vmatpush.msra.mxu0 0.0
  %2353 = vmatpush.msra.mxu0 0.0
  %2354 = vmatpush.msra.mxu0 0.0
  %2355 = vmatpush.msra.mxu0 0.0
  %2356 = vmatpush.msra.mxu0 0.0
  %2357 = vmatpush.msra.mxu0 0.0
  %2358 = vmatpush.msra.mxu0 0.0
  %2359 = vmatpush.msra.mxu0 %v1937
  %2360 = vmatmul.f32.gmra.mxu0 %v2339
  %v2361 = vpop.f32.mrf.mxu0
  %v2362 = vadd.f32 0.0, %v2361
  %2363 = vmatmul.f32.gmra.mxu0 %v2342
  %v2364 = vpop.f32.mrf.mxu0
  %v2365 = vadd.f32 0.0, %v2364
  %2366 = vdwg.mxu0
  %v2367 = vadd.f32 %v2301, %v2362
  %v2368 = vadd.f32 %v2302, %v2365
  %v2370 = vperm.slane %v1939, 0
  %v2372 = vadd.f32 %v2367, %v2370
  %v2373 = vadd.f32 %v2368, %v2370
  %v2374 = vadd.f32 %v1892, %v2372
  %v2375 = vadd.f32 %v1893, %v2373
  %v2376 = vsel %vm110, %v2374, 0.0
  %2377 = vadd.xlane.f32.xlu0 %v2376
  %v2378 = vpop.xlane.xlu0 %2377
  %v2379 = vsel %vm110, %v2375, 0.0
  %2380 = vadd.xlane.f32.xlu0 %v2379
  %v2381 = vpop.xlane.xlu0 %2380
  %v2382 = vmul.f32 %v2378, %v636
  %v2383 = vmul.f32 %v2381, %v636
  %v2384 = vmul.f32 %v2374, %v2374
  %v2385 = vmul.f32 %v2375, %v2375
  %v2386 = vsel %vm110, %v2384, 0.0
  %2387 = vadd.xlane.f32.xlu0 %v2386
  %v2388 = vpop.xlane.xlu0 %2387
  %v2389 = vsel %vm110, %v2385, 0.0
  %2390 = vadd.xlane.f32.xlu0 %v2389
  %v2391 = vpop.xlane.xlu0 %2390
  %v2392 = vmul.f32 %v2388, %v636
  %v2393 = vmul.f32 %v2391, %v636
  %v2394 = vsub.f32 %v2374, %v2382
  %v2395 = vsub.f32 %v2375, %v2383
  %v2396 = vmul.f32 %v2382, %v2382
  %v2397 = vmul.f32 %v2383, %v2383
  %v2398 = vsub.f32 %v2392, %v2396
  %v2399 = vsub.f32 %v2393, %v2397
  %v2400 = vadd.f32 %v2398, 1e-05
  %v2401 = vadd.f32 %v2399, 1e-05
  %v2402 = vrsqrt.pop %v2400
  %v2403 = vmul.f32 %v2402, %v2400
  %v2404 = vmul.f32 %v2403, %v2402
  %v2405 = vmul.f32 0.5, %v2404
  %v2406 = vsub.f32 1.5, %v2405
  %v2407 = vmul.f32 %v2402, %v2406
  %vm2408 = vweird.f32 %v2400
  %vm2409 = vweird.f32 %v2402
  %vm2410 = vmor %vm2408, %vm2409
  %v2411 = vsel %vm2410, %v2402, %v2407
  %v2412 = vrsqrt.pop %v2401
  %v2413 = vmul.f32 %v2412, %v2401
  %v2414 = vmul.f32 %v2413, %v2412
  %v2415 = vmul.f32 0.5, %v2414
  %v2416 = vsub.f32 1.5, %v2415
  %v2417 = vmul.f32 %v2412, %v2416
  %vm2418 = vweird.f32 %v2401
  %vm2419 = vweird.f32 %v2412
  %vm2420 = vmor %vm2418, %vm2419
  %v2421 = vsel %vm2420, %v2412, %v2417
  %v2422 = vmul.f32 %v2394, %v2411
  %v2423 = vmul.f32 %v2395, %v2421
  %v2424 = vperm.slane %v1353, 1
  %v2425 = vmul.f32 %v2422, %v2424
  %v2426 = vmul.f32 %v2423, %v2424
  %v2427 = vperm.slane %v1355, 1
  %v2428 = vadd.f32 %v2425, %v2427
  %v2429 = vadd.f32 %v2426, %v2427
  %s2430 = scalar_lea.vmem %s15, 32
  %v2431 = vld [vmem:[%s2430] sm:$0xff]
  %v2432 = vld [vmem:[%s2430 + $0x8] sm:$0xff]
  %v2433 = vld [vmem:[%s2430 + $0x10] sm:$0xff]
  %v2434 = vld [vmem:[%s2430 + $0x18] sm:$0xff]
  %s2435 = scalar_lea.vmem %s16, 1
  %v2436 = vld [vmem:[%s2435] sm:$0x1]
  %v2438 = vperm.slane %v2436, 0
  %v2441 = vsel %vm110, %v2428, 0
  %v2444 = vsel %vm110, %v2429, 0
  %2446 = vmatpush.msra.mxu0 0.0
  %2447 = vmatpush.msra.mxu0 0.0
  %2448 = vmatpush.msra.mxu0 0.0
  %2449 = vmatpush.msra.mxu0 0.0
  %2450 = vmatpush.msra.mxu0 0.0
  %2451 = vmatpush.msra.mxu0 0.0
  %2452 = vmatpush.msra.mxu0 0.0
  %2453 = vmatpush.msra.mxu0 0.0
  %2454 = vmatpush.msra.mxu0 0.0
  %2455 = vmatpush.msra.mxu0 0.0
  %2456 = vmatpush.msra.mxu0 0.0
  %2457 = vmatpush.msra.mxu0 0.0
  %2458 = vmatpush.msra.mxu0 %v2434
  %2459 = vmatpush.msra.mxu0 %v2433
  %2460 = vmatpush.msra.mxu0 %v2432
  %2461 = vmatpush.msra.mxu0 %v2431
  %2462 = vmatmul.f32.gmra.mxu0 %v2441
  %v2463 = vpop.f32.mrf.mxu0
  %v2464 = vadd.f32 %v2438, %v2463
  %2465 = vmatmul.f32.gmra.mxu0 %v2444
  %v2466 = vpop.f32.mrf.mxu0
  %v2467 = vadd.f32 %v2438, %v2466
  %2468 = vdwg.mxu0
  %v2469 = vmax.f32 %v2464, 0.0
  %v2470 = vmax.f32 %v2467, 0.0
  %s2471 = scalar_lea.vmem %s17, 64
  %v2472 = vld [vmem:[%s2471] sm:$0xff]
  %v2473 = vld [vmem:[%s2471 + $0x8] sm:$0xff]
  %v2474 = vld [vmem:[%s2471 + $0x10] sm:$0xff]
  %v2475 = vld [vmem:[%s2471 + $0x18] sm:$0xff]
  %v2476 = vld [vmem:[%s2471 + $0x20] sm:$0xff]
  %v2477 = vld [vmem:[%s2471 + $0x28] sm:$0xff]
  %v2478 = vld [vmem:[%s2471 + $0x30] sm:$0xff]
  %v2479 = vld [vmem:[%s2471 + $0x38] sm:$0xff]
  %s2480 = scalar_lea.vmem %s18, 1
  %v2481 = vld [vmem:[%s2480] sm:$0x1]
  %v2483 = vperm.slane %v2481, 0
  %v2486 = vsel %vm1266, %v2469, 0
  %v2489 = vsel %vm1266, %v2470, 0
  %2491 = vmatpush.msra.mxu0 0.0
  %2492 = vmatpush.msra.mxu0 0.0
  %2493 = vmatpush.msra.mxu0 0.0
  %2494 = vmatpush.msra.mxu0 0.0
  %2495 = vmatpush.msra.mxu0 0.0
  %2496 = vmatpush.msra.mxu0 0.0
  %2497 = vmatpush.msra.mxu0 0.0
  %2498 = vmatpush.msra.mxu0 0.0
  %2499 = vmatpush.msra.mxu0 %v2479
  %2500 = vmatpush.msra.mxu0 %v2478
  %2501 = vmatpush.msra.mxu0 %v2477
  %2502 = vmatpush.msra.mxu0 %v2476
  %2503 = vmatpush.msra.mxu0 %v2475
  %2504 = vmatpush.msra.mxu0 %v2474
  %2505 = vmatpush.msra.mxu0 %v2473
  %2506 = vmatpush.msra.mxu0 %v2472
  %2507 = vmatmul.f32.gmra.mxu0 %v2486
  %v2508 = vpop.f32.mrf.mxu0
  %v2509 = vadd.f32 %v2483, %v2508
  %2510 = vmatmul.f32.gmra.mxu0 %v2489
  %v2511 = vpop.f32.mrf.mxu0
  %v2512 = vadd.f32 %v2483, %v2511
  %2513 = vdwg.mxu0
  %v2514 = vadd.f32 %v2428, %v2509
  %v2515 = vadd.f32 %v2429, %v2512
  %v2516 = vsel %vm110, %v2514, 0.0
  %2517 = vadd.xlane.f32.xlu0 %v2516
  %v2518 = vpop.xlane.xlu0 %2517
  %v2519 = vsel %vm110, %v2515, 0.0
  %2520 = vadd.xlane.f32.xlu0 %v2519
  %v2521 = vpop.xlane.xlu0 %2520
  %v2522 = vmul.f32 %v2518, %v636
  %v2523 = vmul.f32 %v2521, %v636
  %v2524 = vmul.f32 %v2514, %v2514
  %v2525 = vmul.f32 %v2515, %v2515
  %v2526 = vsel %vm110, %v2524, 0.0
  %2527 = vadd.xlane.f32.xlu0 %v2526
  %v2528 = vpop.xlane.xlu0 %2527
  %v2529 = vsel %vm110, %v2525, 0.0
  %2530 = vadd.xlane.f32.xlu0 %v2529
  %v2531 = vpop.xlane.xlu0 %2530
  %v2532 = vmul.f32 %v2528, %v636
  %v2533 = vmul.f32 %v2531, %v636
  %v2534 = vsub.f32 %v2514, %v2522
  %v2535 = vsub.f32 %v2515, %v2523
  %v2536 = vmul.f32 %v2522, %v2522
  %v2537 = vmul.f32 %v2523, %v2523
  %v2538 = vsub.f32 %v2532, %v2536
  %v2539 = vsub.f32 %v2533, %v2537
  %v2540 = vadd.f32 %v2538, 1e-05
  %v2541 = vadd.f32 %v2539, 1e-05
  %v2542 = vrsqrt.pop %v2540
  %v2543 = vmul.f32 %v2542, %v2540
  %v2544 = vmul.f32 %v2543, %v2542
  %v2545 = vmul.f32 0.5, %v2544
  %v2546 = vsub.f32 1.5, %v2545
  %v2547 = vmul.f32 %v2542, %v2546
  %vm2548 = vweird.f32 %v2540
  %vm2549 = vweird.f32 %v2542
  %vm2550 = vmor %vm2548, %vm2549
  %v2551 = vsel %vm2550, %v2542, %v2547
  %v2552 = vrsqrt.pop %v2541
  %v2553 = vmul.f32 %v2552, %v2541
  %v2554 = vmul.f32 %v2553, %v2552
  %v2555 = vmul.f32 0.5, %v2554
  %v2556 = vsub.f32 1.5, %v2555
  %v2557 = vmul.f32 %v2552, %v2556
  %vm2558 = vweird.f32 %v2541
  %vm2559 = vweird.f32 %v2552
  %vm2560 = vmor %vm2558, %vm2559
  %v2561 = vsel %vm2560, %v2552, %v2557
  %v2562 = vmul.f32 %v2534, %v2551
  %v2563 = vmul.f32 %v2535, %v2561
  %v2564 = vperm.slane %v1353, 2
  %v2565 = vmul.f32 %v2562, %v2564
  %v2566 = vmul.f32 %v2563, %v2564
  %v2567 = vperm.slane %v1355, 2
  %v2568 = vadd.f32 %v2565, %v2567
  %v2569 = vadd.f32 %v2566, %v2567
  %v2570 = vld [vmem:[%s21] sm:$0xff]
  %v2571 = vld [vmem:[%s21 + $0x8] sm:$0xff]
  %v2572 = vld [vmem:[%s21 + $0x10] sm:$0xff]
  %v2573 = vld [vmem:[%s21 + $0x18] sm:$0xff]
  %v2574 = vld [vmem:[%s22] sm:$0x1]
  %v2576 = vperm.slane %v2574, 0
  %v2579 = vsel %vm110, %v2568, 0
  %v2582 = vsel %vm110, %v2569, 0
  %2584 = vmatpush.msra.mxu0 0.0
  %2585 = vmatpush.msra.mxu0 0.0
  %2586 = vmatpush.msra.mxu0 0.0
  %2587 = vmatpush.msra.mxu0 0.0
  %2588 = vmatpush.msra.mxu0 0.0
  %2589 = vmatpush.msra.mxu0 0.0
  %2590 = vmatpush.msra.mxu0 0.0
  %2591 = vmatpush.msra.mxu0 0.0
  %2592 = vmatpush.msra.mxu0 0.0
  %2593 = vmatpush.msra.mxu0 0.0
  %2594 = vmatpush.msra.mxu0 0.0
  %2595 = vmatpush.msra.mxu0 0.0
  %2596 = vmatpush.msra.mxu0 %v2573
  %2597 = vmatpush.msra.mxu0 %v2572
  %2598 = vmatpush.msra.mxu0 %v2571
  %2599 = vmatpush.msra.mxu0 %v2570
  %2600 = vmatmul.f32.gmra.mxu0 %v2579
  %v2601 = vpop.f32.mrf.mxu0
  %v2602 = vadd.f32 %v2576, %v2601
  %2603 = vmatmul.f32.gmra.mxu0 %v2582
  %v2604 = vpop.f32.mrf.mxu0
  %v2605 = vadd.f32 %v2576, %v2604
  %2606 = vdwg.mxu0
  %2607 = vst [vmem:[%s23] sm:$0xff] %v2602
  %2608 = vst [vmem:[%s23 + $0x8] sm:$0xff] %v2605
  // Predicated region
  $region94: #{decoder_forward.1} parent=0 // pred_check
    _
  $region95: #{decoder_forward.1} parent=0 // pred_check_branch
    %2610 = sbr.rel (0) target = $region97
  $region96: #{decoder_forward.1} parent=0 // pred_region
    _
  $region97: #{decoder_forward.1} parent=0 // pred_fallthru
    _
  // Predicated region
  $region98: #{decoder_forward.1} parent=0 // pred_check
    _
  $region99: #{decoder_forward.1} parent=0 // pred_check_branch
    %2612 = sbr.rel (0) target = $region101
  $region100: #{decoder_forward.1} parent=0 // pred_region
    _
  $region101: #{decoder_forward.1} parent=0 // pred_fallthru
    _

</llo_original>
